<compile_context>
chip_gen: v7x
topology: tpu7x:2x2x1
jax: 0.10.0
libtpu: 0.0.40
codegen_flags: <defaults>
</compile_context>

<pallas_src>
import math
import functools

import jax
import jax.numpy as jnp
from jax import lax
from jax.experimental import pallas as pl
from jax.experimental.pallas import tpu as pltpu

EPS = 1e-5
NEG = -1e30


# ---------------------------------------------------------------------------
# Lane-dense pack/unpack helpers (static slices + concats only)
# ---------------------------------------------------------------------------
def _unpack_rows(x2d, S, D):
    """(S*D//128, 128) -> (S, D); requires 128 % D == 0."""
    per = 128 // D
    rows = []
    for i in range(S):
        g, j = divmod(i, per)
        rows.append(x2d[g:g + 1, j * D:(j + 1) * D])
    return jnp.concatenate(rows, axis=0)


def _pack_rows(y, S, D):
    """(S, D) -> (S*D//128, 128); requires 128 % D == 0 and S*D % 128 == 0."""
    per = 128 // D
    groups = []
    for g in range(S // per):
        groups.append(jnp.concatenate(
            [y[g * per + j:g * per + j + 1, :] for j in range(per)], axis=1))
    return jnp.concatenate(groups, axis=0)


# ---------------------------------------------------------------------------
# Pallas kernel: one batch element per grid step, everything fused in VMEM.
# ---------------------------------------------------------------------------
def _transformer_block_kernel(x_ref, bias_ref, g1_ref, g2_ref, wqkv_ref, woh_ref,
                              w1v_ref, w1g_ref, b1v_ref, b1g_ref, w2_ref, b2_ref,
                              o_ref, *, num_heads, seq_len, d_model, packed):
    S, D, H = seq_len, d_model, num_heads
    d_k = D // H
    scale = 1.0 / math.sqrt(d_k)
    bf16 = jnp.bfloat16

    x = _unpack_rows(x_ref[0], S, D) if packed else x_ref[0]        # (S, D) f32

    # ---- RMSNorm #1 (f32 elementwise, rsqrt on the EUP) ----
    inv1 = lax.rsqrt(jnp.sum(x * x, axis=-1, keepdims=True) + EPS)
    n1 = (x * inv1) * g1_ref[0]

    # ---- fused q/k/v projection: ONE bf16 MXU pass against the pre-fused (D, 3D) weight
    qkv = jnp.dot(n1.astype(bf16), wqkv_ref[...],
                  preferred_element_type=jnp.float32)               # (S, 3D) f32
    q = qkv[:, :D] * scale                                          # scale folded once
    k = qkv[:, D:2 * D]
    v = qkv[:, 2 * D:]

    # ---- head-batched attention: (H, S, d_k) layout, no per-head matmul loop ----
    def to_heads(t):                                                # (S,D) -> (H,S,d_k)
        return jnp.stack([t[:, h * d_k:(h + 1) * d_k] for h in range(H)],
                         axis=0).astype(bf16)

    qh, kh, vh = to_heads(q), to_heads(k), to_heads(v)

    s = jnp.einsum('hqd,hkd->hqk', qh, kh,
                   preferred_element_type=jnp.float32) + bias_ref[...]   # (H, S, S)
    m = jnp.max(s, axis=-1, keepdims=True)
    e = jnp.exp(s - m)
    p = e * pl.reciprocal(jnp.sum(e, axis=-1, keepdims=True), approx=True)
    ctx = jnp.einsum('hqk,hkd->hqd', p.astype(bf16), vh,
                     preferred_element_type=jnp.float32)                  # (H, S, d_k)

    # output projection: batched per-head matmul + head-sum (no lane-dim concatenate).
    # TODO(synk): K=d_k under-fills the MXU at real sizes; pack heads (K>=256) later.
    attn = jnp.einsum('hsd,hde->hse', ctx.astype(bf16), woh_ref[...],
                      preferred_element_type=jnp.float32).sum(axis=0)     # (S, D)

    x2 = x + attn                                                         # residual 1

    # ---- RMSNorm #2 ----
    inv2 = lax.rsqrt(jnp.sum(x2 * x2, axis=-1, keepdims=True) + EPS)
    n2 = ((x2 * inv2) * g2_ref[0]).astype(bf16)

    # ---- GLU feed-forward: value * relu(gate), weight halves pre-split (lane-dense)
    value = jnp.dot(n2, w1v_ref[...], preferred_element_type=jnp.float32) + b1v_ref[0]
    gate = jnp.dot(n2, w1g_ref[...], preferred_element_type=jnp.float32) + b1g_ref[0]
    act = (value * jnp.maximum(gate, 0.0)).astype(bf16)
    ff = jnp.dot(act, w2_ref[...], preferred_element_type=jnp.float32) + b2_ref[0]

    y = x2 + ff                                                           # residual 2
    o_ref[0] = _pack_rows(y, S, D) if packed else y


# ---------------------------------------------------------------------------
# One-time parameter layout prep (hoisted out of the per-call wrapper)
# ---------------------------------------------------------------------------
def prepare_params(params, num_heads):
    D = params["wq"].shape[0]
    d_ff = params["w2"].shape[0]
    d_k = D // num_heads
    bf16 = jnp.bfloat16
    return dict(
        g1=params["g1"], g2=params["g2"],
        wqkv=jnp.concatenate([params["wq"].T, params["wk"].T, params["wv"].T],
                             axis=1).astype(bf16),                     # (D, 3D)
        woh=params["wo"].T.reshape(num_heads, d_k, D).astype(bf16),    # (H, d_k, D)
        w1v=params["w1"][:, :d_ff].astype(bf16),                       # (D, d_ff)
        w1g=params["w1"][:, d_ff:].astype(bf16),                       # (D, d_ff)
        b1v=params["b1"][:, :d_ff], b1g=params["b1"][:, d_ff:],
        w2=params["w2"].astype(bf16),                                  # (d_ff, D)
        b2=params["b2"],
    )


# ---------------------------------------------------------------------------
# Wrapper
# ---------------------------------------------------------------------------
def transformer_block(x, token_positions, prep, *, num_heads):
    del token_positions  # TODO(synk): rope=self in the reference is not runnable; identity RoPE.
    B, S, D = x.shape
    d_ff = prep["w2"].shape[0]
    d_k = D // num_heads

    # Exactly as written in the reference: torch.triu(ones) used as keep-mask
    # (position i may attend to positions j >= i). Hoisted out of the kernel body.
    keep = jnp.triu(jnp.ones((S, S), dtype=bool))
    bias = jnp.where(keep, 0.0, NEG).astype(jnp.float32)

    # Lane-dense activation I/O: view (B, S, D) as (B, S*D/128, 128) when possible.
    packed = (D < 128) and (128 % D == 0) and ((S * D) % 128 == 0)
    if packed:
        x_in = x.reshape(B, (S * D) // 128, 128)
        act_blk = (1, (S * D) // 128, 128)
    else:
        x_in = x
        act_blk = (1, S, D)

    consts = (bias, prep["g1"], prep["g2"], prep["wqkv"], prep["woh"],
              prep["w1v"], prep["w1g"], prep["b1v"], prep["b1g"],
              prep["w2"], prep["b2"])

    # ---- VMEM budget: blocks + weights + in-kernel intermediates, generation-aware cap
    def nbytes(a):
        return int(a.size) * a.dtype.itemsize

    act_bytes = S * D * 4
    weight_bytes = sum(nbytes(a) for a in consts)
    inter_bytes = (
        3 * S * D * 4                       # qkv (S, 3D) f32
        + 3 * num_heads * S * d_k * 2       # qh/kh/vh bf16
        + 4 * num_heads * S * S * 4         # scores / exp / probs (+slack) f32
        + num_heads * S * d_k * 4           # ctx f32
        + num_heads * S * D * 4             # per-head out-proj partials f32
        + 5 * S * D * 4                     # n1, attn, x2, ff, y f32
        + 2 * S * d_ff * 4 + S * d_ff * 2)  # value / gate f32, act bf16
    need = 2 * 2 * act_bytes + 2 * weight_bytes + 2 * inter_bytes
    try:
        cap = int(pltpu.get_tpu_info().vmem_capacity_bytes)
    except Exception:
        cap = 128 * 2 ** 20
    vmem_limit = int(min(max(need, 32 * 2 ** 20), int(0.75 * cap)))

    kern = functools.partial(_transformer_block_kernel, num_heads=num_heads,
                             seq_len=S, d_model=D, packed=packed)
    out_shape = jax.ShapeDtypeStruct(x_in.shape, jnp.float32)

    def build(single_buffer_consts):
        def rep(a):
            n = a.ndim
            kwargs = {}
            if single_buffer_consts:
                # constant index_map -> fetched once; double-buffering only wastes VMEM
                kwargs["pipeline_mode"] = pl.Buffered(1)
            return pl.BlockSpec(a.shape, lambda b, _n=n: (0,) * _n, **kwargs)

        return pl.pallas_call(
            kern,
            out_shape=out_shape,
            grid=(B,),   # B even & >=2 keeps both v7x TCs busy; plain loop on v5e/v6e
            in_specs=[pl.BlockSpec(act_blk, lambda b: (b, 0, 0))]
                     + [rep(a) for a in consts],
            out_specs=pl.BlockSpec(act_blk, lambda b: (b, 0, 0)),
            compiler_params=pltpu.CompilerParams(
                dimension_semantics=("parallel",),
                vmem_limit_bytes=vmem_limit),
        )

    last_err = None
    for single_buffer in (True, False):
        try:
            out = build(single_buffer)(x_in, *consts)
            break
        except Exception as err:   # pipeline_mode=Buffered(1) unsupported -> plain specs
            last_err = err
    else:
        raise last_err

    return out.reshape(B, S, D) if packed else out


# ---------------------------------------------------------------------------
# Deterministic parameter init (shapes from the module __init__)
# ---------------------------------------------------------------------------
def init_params(key, d_model, d_ff):
    ks = jax.random.split(key, 6)

    def tn(k, shape, lo, hi):
        return jax.random.truncated_normal(k, lo, hi, shape, jnp.float32)

    return dict(
        g1=jnp.ones((1, d_model), jnp.float32),
        g2=jnp.ones((1, d_model), jnp.float32),
        wq=tn(ks[0], (d_model, d_model), -3.0, 3.0),
        wk=tn(ks[1], (d_model, d_model), -3.0, 3.0),
        wv=tn(ks[2], (d_model, d_model), -3.0, 3.0),
        wo=tn(ks[3], (d_model, d_model), -3.0, 3.0),
        w1=tn(ks[4], (d_model, 2 * d_ff), -2.0, 2.0),
        b1=jnp.zeros((1, 2 * d_ff), jnp.float32),
        w2=tn(ks[5], (d_ff, d_model), -2.0, 2.0),
        b2=jnp.zeros((1, d_model), jnp.float32),
    )


# ---------------------------------------------------------------------------
# Pure-JAX f32 reference (same semantics) for a sanity check
# ---------------------------------------------------------------------------
def reference(x, params, num_heads):
    B, S, D = x.shape
    d_k = D // num_heads
    d_ff = params["w2"].shape[0]

    def rmsnorm(t, g):
        rms = jnp.sqrt(jnp.sum(t * t, axis=-1, keepdims=True) + EPS)
        return (t / rms) * g[0]

    n1 = rmsnorm(x, params["g1"])
    q = n1 @ params["wq"].T
    k = n1 @ params["wk"].T
    v = n1 @ params["wv"].T

    def split(t):
        return t.reshape(B, S, num_heads, d_k).transpose(0, 2, 1, 3)

    q, k, v = split(q), split(k), split(v)
    scores = jnp.einsum("bhik,bhjk->bhij", q, k) / math.sqrt(d_k)
    keep = jnp.triu(jnp.ones((S, S), bool))
    scores = jnp.where(keep, scores, -jnp.inf)
    m = jnp.max(scores, axis=-1, keepdims=True)
    e = jnp.exp(scores - m)
    p = e / jnp.sum(e, axis=-1, keepdims=True)
    o = jnp.einsum("bhij,bhjd->bhid", p, v)
    o = o.transpose(0, 2, 1, 3).reshape(B, S, D)
    x2 = x + o @ params["wo"].T

    n2 = rmsnorm(x2, params["g2"])
    h12 = n2 @ params["w1"] + params["b1"][0]
    act = h12[..., :d_ff] * jnp.maximum(h12[..., d_ff:], 0.0)
    return x2 + act @ params["w2"] + params["b2"][0]


if __name__ == "__main__":
    B, S, D, H = 2, 8, 32, 4
    d_ff = int(math.ceil((D * 8 / 3) / 64) * 64)      # = 128, as in SwiGLUFeedForward

    key = jax.random.PRNGKey(0)
    kx, kp = jax.random.split(key)
    x = jax.random.normal(kx, (B, S, D), jnp.float32)
    token_positions = jnp.arange(S, dtype=jnp.int32)
    params = init_params(kp, D, d_ff)
    prep = prepare_params(params, num_heads=H)        # one-time layout prep, not per call

    out = transformer_block(x, token_positions, prep, num_heads=H)
    out = jax.block_until_ready(out)

    ref = reference(x, params, H)
    rel_err = float(jnp.max(jnp.abs(out - ref)) / (jnp.max(jnp.abs(ref)) + 1e-6))
    assert out.shape == (B, S, D)
    assert jnp.all(jnp.isfinite(out))
    # bf16 MXU matmuls (f32 accumulate) + approx reciprocal -> allow small drift
    assert rel_err < 5e-2, f"mismatch vs reference, rel_err={rel_err}"
    print("KERNEL_OK")
</pallas_src>

<mosaic_0001>
module attributes {stable_mosaic.version = 11 : i64} {
  func.func @_transformer_block_kernel(%arg0: i32, %arg1: memref<1x2x128xf32, #tpu.memory_space<vmem>>, %arg2: memref<8x8xf32, #tpu.memory_space<vmem>>, %arg3: memref<1x32xf32, #tpu.memory_space<vmem>>, %arg4: memref<1x32xf32, #tpu.memory_space<vmem>>, %arg5: memref<32x96xbf16, #tpu.memory_space<vmem>>, %arg6: memref<4x8x32xbf16, #tpu.memory_space<vmem>>, %arg7: memref<32x128xbf16, #tpu.memory_space<vmem>>, %arg8: memref<32x128xbf16, #tpu.memory_space<vmem>>, %arg9: memref<1x128xf32, #tpu.memory_space<vmem>>, %arg10: memref<1x128xf32, #tpu.memory_space<vmem>>, %arg11: memref<128x32xbf16, #tpu.memory_space<vmem>>, %arg12: memref<1x32xf32, #tpu.memory_space<vmem>>, %arg13: memref<1x2x128xf32, #tpu.memory_space<vmem>>) attributes {dimension_semantics = [#tpu.dimension_semantics<parallel>], iteration_bounds = array<i64: 2>, scalar_prefetch = 0 : i64, scratch_operands = 0 : i64, tpu.core_type = #tpu.core_type<tc>, window_params = [{transform_indices = @transform_0, window_bounds = array<i64: 1, 2, 128>}, {pipeline_mode = #tpu.pipeline_mode<synchronous>, transform_indices = @transform_1, window_bounds = array<i64: 8, 8>}, {pipeline_mode = #tpu.pipeline_mode<synchronous>, transform_indices = @transform_2, window_bounds = array<i64: 1, 32>}, {pipeline_mode = #tpu.pipeline_mode<synchronous>, transform_indices = @transform_3, window_bounds = array<i64: 1, 32>}, {pipeline_mode = #tpu.pipeline_mode<synchronous>, transform_indices = @transform_4, window_bounds = array<i64: 32, 96>}, {pipeline_mode = #tpu.pipeline_mode<synchronous>, transform_indices = @transform_5, window_bounds = array<i64: 4, 8, 32>}, {pipeline_mode = #tpu.pipeline_mode<synchronous>, transform_indices = @transform_6, window_bounds = array<i64: 32, 128>}, {pipeline_mode = #tpu.pipeline_mode<synchronous>, transform_indices = @transform_7, window_bounds = array<i64: 32, 128>}, {pipeline_mode = #tpu.pipeline_mode<synchronous>, transform_indices = @transform_8, window_bounds = array<i64: 1, 128>}, {pipeline_mode = #tpu.pipeline_mode<synchronous>, transform_indices = @transform_9, window_bounds = array<i64: 1, 128>}, {pipeline_mode = #tpu.pipeline_mode<synchronous>, transform_indices = @transform_10, window_bounds = array<i64: 128, 32>}, {pipeline_mode = #tpu.pipeline_mode<synchronous>, transform_indices = @transform_11, window_bounds = array<i64: 1, 32>}, {transform_indices = @transform_12, window_bounds = array<i64: 1, 2, 128>}]} {
    %c0 = arith.constant 0 : index
    %c0_0 = arith.constant 0 : index
    %c0_1 = arith.constant 0 : index
    %0 = vector.load %arg1[%c0, %c0_0, %c0_1] : memref<1x2x128xf32, #tpu.memory_space<vmem>>, vector<1x2x128xf32>
    %1 = vector.shape_cast %0 : vector<1x2x128xf32> to vector<2x128xf32>
    %2 = vector.extract_strided_slice %1 {offsets = [0, 0], sizes = [1, 32], strides = [1, 1]} : vector<2x128xf32> to vector<1x32xf32>
    %3 = vector.extract_strided_slice %1 {offsets = [0, 32], sizes = [1, 32], strides = [1, 1]} : vector<2x128xf32> to vector<1x32xf32>
    %4 = vector.extract_strided_slice %1 {offsets = [0, 64], sizes = [1, 32], strides = [1, 1]} : vector<2x128xf32> to vector<1x32xf32>
    %5 = vector.extract_strided_slice %1 {offsets = [0, 96], sizes = [1, 32], strides = [1, 1]} : vector<2x128xf32> to vector<1x32xf32>
    %6 = vector.extract_strided_slice %1 {offsets = [1, 0], sizes = [1, 32], strides = [1, 1]} : vector<2x128xf32> to vector<1x32xf32>
    %7 = vector.extract_strided_slice %1 {offsets = [1, 32], sizes = [1, 32], strides = [1, 1]} : vector<2x128xf32> to vector<1x32xf32>
    %8 = vector.extract_strided_slice %1 {offsets = [1, 64], sizes = [1, 32], strides = [1, 1]} : vector<2x128xf32> to vector<1x32xf32>
    %9 = vector.extract_strided_slice %1 {offsets = [1, 96], sizes = [1, 32], strides = [1, 1]} : vector<2x128xf32> to vector<1x32xf32>
    %10 = tpu.concatenate %2, %3, %4, %5, %6, %7, %8, %9 in 0 : vector<1x32xf32>, vector<1x32xf32>, vector<1x32xf32>, vector<1x32xf32>, vector<1x32xf32>, vector<1x32xf32>, vector<1x32xf32>, vector<1x32xf32> -> vector<8x32xf32>
    %11 = arith.mulf %10, %10 : vector<8x32xf32>
    %cst = arith.constant dense<0.000000e+00> : vector<8xf32>
    %12 = vector.multi_reduction <add>, %11, %cst [1] : vector<8x32xf32> to vector<8xf32>
    %13 = vector.shape_cast %12 : vector<8xf32> to vector<8x1xf32>
    %cst_2 = arith.constant 9.99999974E-6 : f32
    %14 = vector.broadcast %cst_2 : f32 to vector<8x1xf32>
    %15 = arith.addf %13, %14 : vector<8x1xf32>
    %16 = math.rsqrt %15 : vector<8x1xf32>
    %17 = vector.broadcast %16 : vector<8x1xf32> to vector<8x32xf32>
    %18 = arith.mulf %10, %17 : vector<8x32xf32>
    %c0_3 = arith.constant 0 : index
    %c0_4 = arith.constant 0 : index
    %19 = vector.load %arg3[%c0_3, %c0_4] : memref<1x32xf32, #tpu.memory_space<vmem>>, vector<1x32xf32>
    %20 = vector.shape_cast %19 : vector<1x32xf32> to vector<32xf32>
    %21 = vector.shape_cast %20 : vector<32xf32> to vector<1x32xf32>
    %22 = vector.broadcast %21 : vector<1x32xf32> to vector<8x32xf32>
    %23 = arith.mulf %18, %22 : vector<8x32xf32>
    %24 = arith.truncf %23 : vector<8x32xf32> to vector<8x32xbf16>
    %c0_5 = arith.constant 0 : index
    %c0_6 = arith.constant 0 : index
    %25 = vector.load %arg5[%c0_5, %c0_6] : memref<32x96xbf16, #tpu.memory_space<vmem>>, vector<32x96xbf16>
    %cst_7 = arith.constant dense<0.000000e+00> : vector<8x96xf32>
    %26 = tpu.matmul %24, %25, %cst_7 {dimension_numbers = #tpu.dot_dimension_numbers<[1], [0], [0], [1], [0, 0, 1, 1], [], []>} : vector<8x32xbf16>, vector<32x96xbf16>, vector<8x96xf32> -> vector<8x96xf32>
    %27 = vector.extract_strided_slice %26 {offsets = [0, 0], sizes = [8, 32], strides = [1, 1]} : vector<8x96xf32> to vector<8x32xf32>
    %cst_8 = arith.constant 0.353553385 : f32
    %28 = vector.broadcast %cst_8 : f32 to vector<8x32xf32>
    %29 = arith.mulf %27, %28 : vector<8x32xf32>
    %30 = vector.extract_strided_slice %26 {offsets = [0, 32], sizes = [8, 32], strides = [1, 1]} : vector<8x96xf32> to vector<8x32xf32>
    %31 = vector.extract_strided_slice %26 {offsets = [0, 64], sizes = [8, 32], strides = [1, 1]} : vector<8x96xf32> to vector<8x32xf32>
    %32 = vector.extract_strided_slice %29 {offsets = [0, 0], sizes = [8, 8], strides = [1, 1]} : vector<8x32xf32> to vector<8x8xf32>
    %33 = vector.extract_strided_slice %29 {offsets = [0, 8], sizes = [8, 8], strides = [1, 1]} : vector<8x32xf32> to vector<8x8xf32>
    %34 = vector.extract_strided_slice %29 {offsets = [0, 16], sizes = [8, 8], strides = [1, 1]} : vector<8x32xf32> to vector<8x8xf32>
    %35 = vector.extract_strided_slice %29 {offsets = [0, 24], sizes = [8, 8], strides = [1, 1]} : vector<8x32xf32> to vector<8x8xf32>
    %36 = vector.shape_cast %32 : vector<8x8xf32> to vector<1x8x8xf32>
    %37 = vector.shape_cast %33 : vector<8x8xf32> to vector<1x8x8xf32>
    %38 = vector.shape_cast %34 : vector<8x8xf32> to vector<1x8x8xf32>
    %39 = vector.shape_cast %35 : vector<8x8xf32> to vector<1x8x8xf32>
    %40 = tpu.concatenate %36, %37, %38, %39 in 0 : vector<1x8x8xf32>, vector<1x8x8xf32>, vector<1x8x8xf32>, vector<1x8x8xf32> -> vector<4x8x8xf32>
    %41 = arith.truncf %40 : vector<4x8x8xf32> to vector<4x8x8xbf16>
    %42 = vector.extract_strided_slice %30 {offsets = [0, 0], sizes = [8, 8], strides = [1, 1]} : vector<8x32xf32> to vector<8x8xf32>
    %43 = vector.extract_strided_slice %30 {offsets = [0, 8], sizes = [8, 8], strides = [1, 1]} : vector<8x32xf32> to vector<8x8xf32>
    %44 = vector.extract_strided_slice %30 {offsets = [0, 16], sizes = [8, 8], strides = [1, 1]} : vector<8x32xf32> to vector<8x8xf32>
    %45 = vector.extract_strided_slice %30 {offsets = [0, 24], sizes = [8, 8], strides = [1, 1]} : vector<8x32xf32> to vector<8x8xf32>
    %46 = vector.shape_cast %42 : vector<8x8xf32> to vector<1x8x8xf32>
    %47 = vector.shape_cast %43 : vector<8x8xf32> to vector<1x8x8xf32>
    %48 = vector.shape_cast %44 : vector<8x8xf32> to vector<1x8x8xf32>
    %49 = vector.shape_cast %45 : vector<8x8xf32> to vector<1x8x8xf32>
    %50 = tpu.concatenate %46, %47, %48, %49 in 0 : vector<1x8x8xf32>, vector<1x8x8xf32>, vector<1x8x8xf32>, vector<1x8x8xf32> -> vector<4x8x8xf32>
    %51 = arith.truncf %50 : vector<4x8x8xf32> to vector<4x8x8xbf16>
    %52 = vector.extract_strided_slice %31 {offsets = [0, 0], sizes = [8, 8], strides = [1, 1]} : vector<8x32xf32> to vector<8x8xf32>
    %53 = vector.extract_strided_slice %31 {offsets = [0, 8], sizes = [8, 8], strides = [1, 1]} : vector<8x32xf32> to vector<8x8xf32>
    %54 = vector.extract_strided_slice %31 {offsets = [0, 16], sizes = [8, 8], strides = [1, 1]} : vector<8x32xf32> to vector<8x8xf32>
    %55 = vector.extract_strided_slice %31 {offsets = [0, 24], sizes = [8, 8], strides = [1, 1]} : vector<8x32xf32> to vector<8x8xf32>
    %56 = vector.shape_cast %52 : vector<8x8xf32> to vector<1x8x8xf32>
    %57 = vector.shape_cast %53 : vector<8x8xf32> to vector<1x8x8xf32>
    %58 = vector.shape_cast %54 : vector<8x8xf32> to vector<1x8x8xf32>
    %59 = vector.shape_cast %55 : vector<8x8xf32> to vector<1x8x8xf32>
    %60 = tpu.concatenate %56, %57, %58, %59 in 0 : vector<1x8x8xf32>, vector<1x8x8xf32>, vector<1x8x8xf32>, vector<1x8x8xf32> -> vector<4x8x8xf32>
    %61 = arith.truncf %60 : vector<4x8x8xf32> to vector<4x8x8xbf16>
    "tpu.trace_start"() <{level = 10 : i32, message = "hqd,hkd->hqk"}> : () -> ()
    %cst_9 = arith.constant dense<0.000000e+00> : vector<4x8x8xf32>
    %62 = tpu.matmul %41, %51, %cst_9 {dimension_numbers = #tpu.dot_dimension_numbers<[2], [2], [1], [1], [0, 0, 0, 1, 1, 1], [0], [0]>} : vector<4x8x8xbf16>, vector<4x8x8xbf16>, vector<4x8x8xf32> -> vector<4x8x8xf32>
    "tpu.trace_stop"() : () -> ()
    %c0_10 = arith.constant 0 : index
    %c0_11 = arith.constant 0 : index
    %63 = vector.load %arg2[%c0_10, %c0_11] : memref<8x8xf32, #tpu.memory_space<vmem>>, vector<8x8xf32>
    %64 = vector.shape_cast %63 : vector<8x8xf32> to vector<1x8x8xf32>
    %65 = vector.broadcast %64 : vector<1x8x8xf32> to vector<4x8x8xf32>
    %66 = arith.addf %62, %65 : vector<4x8x8xf32>
    %cst_12 = arith.constant dense<0xFF800000> : vector<4x8xf32>
    %67 = vector.multi_reduction <maximumf>, %66, %cst_12 [2] : vector<4x8x8xf32> to vector<4x8xf32>
    %68 = vector.shape_cast %67 : vector<4x8xf32> to vector<4x8x1xf32>
    %69 = vector.broadcast %68 : vector<4x8x1xf32> to vector<4x8x8xf32>
    %70 = arith.subf %66, %69 : vector<4x8x8xf32>
    %71 = math.exp %70 : vector<4x8x8xf32>
    %cst_13 = arith.constant dense<0.000000e+00> : vector<4x8xf32>
    %72 = vector.multi_reduction <add>, %71, %cst_13 [2] : vector<4x8x8xf32> to vector<4x8xf32>
    %73 = vector.shape_cast %72 : vector<4x8xf32> to vector<4x8x1xf32>
    %74 = tpu.reciprocal %73 {approx = true} : vector<4x8x1xf32> -> vector<4x8x1xf32>
    %75 = vector.broadcast %74 : vector<4x8x1xf32> to vector<4x8x8xf32>
    %76 = arith.mulf %71, %75 : vector<4x8x8xf32>
    %77 = arith.truncf %76 : vector<4x8x8xf32> to vector<4x8x8xbf16>
    "tpu.trace_start"() <{level = 10 : i32, message = "hqk,hkd->hqd"}> : () -> ()
    %cst_14 = arith.constant dense<0.000000e+00> : vector<4x8x8xf32>
    %78 = tpu.matmul %77, %61, %cst_14 {dimension_numbers = #tpu.dot_dimension_numbers<[2], [1], [1], [2], [0, 0, 0, 1, 1, 2], [0], [0]>} : vector<4x8x8xbf16>, vector<4x8x8xbf16>, vector<4x8x8xf32> -> vector<4x8x8xf32>
    "tpu.trace_stop"() : () -> ()
    %79 = arith.truncf %78 : vector<4x8x8xf32> to vector<4x8x8xbf16>
    %c0_15 = arith.constant 0 : index
    %c0_16 = arith.constant 0 : index
    %c0_17 = arith.constant 0 : index
    %80 = vector.load %arg6[%c0_15, %c0_16, %c0_17] : memref<4x8x32xbf16, #tpu.memory_space<vmem>>, vector<4x8x32xbf16>
    "tpu.trace_start"() <{level = 10 : i32, message = "hsd,hde->hse"}> : () -> ()
    %cst_18 = arith.constant dense<0.000000e+00> : vector<4x8x32xf32>
    %81 = tpu.matmul %79, %80, %cst_18 {dimension_numbers = #tpu.dot_dimension_numbers<[2], [1], [1], [2], [0, 0, 0, 1, 1, 2], [0], [0]>} : vector<4x8x8xbf16>, vector<4x8x32xbf16>, vector<4x8x32xf32> -> vector<4x8x32xf32>
    "tpu.trace_stop"() : () -> ()
    %cst_19 = arith.constant dense<0.000000e+00> : vector<8x32xf32>
    %82 = vector.multi_reduction <add>, %81, %cst_19 [0] : vector<4x8x32xf32> to vector<8x32xf32>
    %83 = arith.addf %10, %82 : vector<8x32xf32>
    %84 = arith.mulf %83, %83 : vector<8x32xf32>
    %cst_20 = arith.constant dense<0.000000e+00> : vector<8xf32>
    %85 = vector.multi_reduction <add>, %84, %cst_20 [1] : vector<8x32xf32> to vector<8xf32>
    %86 = vector.shape_cast %85 : vector<8xf32> to vector<8x1xf32>
    %cst_21 = arith.constant 9.99999974E-6 : f32
    %87 = vector.broadcast %cst_21 : f32 to vector<8x1xf32>
    %88 = arith.addf %86, %87 : vector<8x1xf32>
    %89 = math.rsqrt %88 : vector<8x1xf32>
    %90 = vector.broadcast %89 : vector<8x1xf32> to vector<8x32xf32>
    %91 = arith.mulf %83, %90 : vector<8x32xf32>
    %c0_22 = arith.constant 0 : index
    %c0_23 = arith.constant 0 : index
    %92 = vector.load %arg4[%c0_22, %c0_23] : memref<1x32xf32, #tpu.memory_space<vmem>>, vector<1x32xf32>
    %93 = vector.shape_cast %92 : vector<1x32xf32> to vector<32xf32>
    %94 = vector.shape_cast %93 : vector<32xf32> to vector<1x32xf32>
    %95 = vector.broadcast %94 : vector<1x32xf32> to vector<8x32xf32>
    %96 = arith.mulf %91, %95 : vector<8x32xf32>
    %97 = arith.truncf %96 : vector<8x32xf32> to vector<8x32xbf16>
    %c0_24 = arith.constant 0 : index
    %c0_25 = arith.constant 0 : index
    %98 = vector.load %arg7[%c0_24, %c0_25] : memref<32x128xbf16, #tpu.memory_space<vmem>>, vector<32x128xbf16>
    %cst_26 = arith.constant dense<0.000000e+00> : vector<8x128xf32>
    %99 = tpu.matmul %97, %98, %cst_26 {dimension_numbers = #tpu.dot_dimension_numbers<[1], [0], [0], [1], [0, 0, 1, 1], [], []>} : vector<8x32xbf16>, vector<32x128xbf16>, vector<8x128xf32> -> vector<8x128xf32>
    %c0_27 = arith.constant 0 : index
    %c0_28 = arith.constant 0 : index
    %100 = vector.load %arg9[%c0_27, %c0_28] : memref<1x128xf32, #tpu.memory_space<vmem>>, vector<1x128xf32>
    %101 = vector.shape_cast %100 : vector<1x128xf32> to vector<128xf32>
    %102 = vector.shape_cast %101 : vector<128xf32> to vector<1x128xf32>
    %103 = vector.broadcast %102 : vector<1x128xf32> to vector<8x128xf32>
    %104 = arith.addf %99, %103 : vector<8x128xf32>
    %c0_29 = arith.constant 0 : index
    %c0_30 = arith.constant 0 : index
    %105 = vector.load %arg8[%c0_29, %c0_30] : memref<32x128xbf16, #tpu.memory_space<vmem>>, vector<32x128xbf16>
    %cst_31 = arith.constant dense<0.000000e+00> : vector<8x128xf32>
    %106 = tpu.matmul %97, %105, %cst_31 {dimension_numbers = #tpu.dot_dimension_numbers<[1], [0], [0], [1], [0, 0, 1, 1], [], []>} : vector<8x32xbf16>, vector<32x128xbf16>, vector<8x128xf32> -> vector<8x128xf32>
    %c0_32 = arith.constant 0 : index
    %c0_33 = arith.constant 0 : index
    %107 = vector.load %arg10[%c0_32, %c0_33] : memref<1x128xf32, #tpu.memory_space<vmem>>, vector<1x128xf32>
    %108 = vector.shape_cast %107 : vector<1x128xf32> to vector<128xf32>
    %109 = vector.shape_cast %108 : vector<128xf32> to vector<1x128xf32>
    %110 = vector.broadcast %109 : vector<1x128xf32> to vector<8x128xf32>
    %111 = arith.addf %106, %110 : vector<8x128xf32>
    %cst_34 = arith.constant 0.000000e+00 : f32
    %112 = vector.broadcast %cst_34 : f32 to vector<8x128xf32>
    %113 = arith.maximumf %111, %112 : vector<8x128xf32>
    %114 = arith.mulf %104, %113 : vector<8x128xf32>
    %115 = arith.truncf %114 : vector<8x128xf32> to vector<8x128xbf16>
    %c0_35 = arith.constant 0 : index
    %c0_36 = arith.constant 0 : index
    %116 = vector.load %arg11[%c0_35, %c0_36] : memref<128x32xbf16, #tpu.memory_space<vmem>>, vector<128x32xbf16>
    %cst_37 = arith.constant dense<0.000000e+00> : vector<8x32xf32>
    %117 = tpu.matmul %115, %116, %cst_37 {dimension_numbers = #tpu.dot_dimension_numbers<[1], [0], [0], [1], [0, 0, 1, 1], [], []>} : vector<8x128xbf16>, vector<128x32xbf16>, vector<8x32xf32> -> vector<8x32xf32>
    %c0_38 = arith.constant 0 : index
    %c0_39 = arith.constant 0 : index
    %118 = vector.load %arg12[%c0_38, %c0_39] : memref<1x32xf32, #tpu.memory_space<vmem>>, vector<1x32xf32>
    %119 = vector.shape_cast %118 : vector<1x32xf32> to vector<32xf32>
    %120 = vector.shape_cast %119 : vector<32xf32> to vector<1x32xf32>
    %121 = vector.broadcast %120 : vector<1x32xf32> to vector<8x32xf32>
    %122 = arith.addf %117, %121 : vector<8x32xf32>
    %123 = arith.addf %83, %122 : vector<8x32xf32>
    %124 = vector.extract_strided_slice %123 {offsets = [0, 0], sizes = [1, 32], strides = [1, 1]} : vector<8x32xf32> to vector<1x32xf32>
    %125 = vector.extract_strided_slice %123 {offsets = [1, 0], sizes = [1, 32], strides = [1, 1]} : vector<8x32xf32> to vector<1x32xf32>
    %126 = vector.extract_strided_slice %123 {offsets = [2, 0], sizes = [1, 32], strides = [1, 1]} : vector<8x32xf32> to vector<1x32xf32>
    %127 = vector.extract_strided_slice %123 {offsets = [3, 0], sizes = [1, 32], strides = [1, 1]} : vector<8x32xf32> to vector<1x32xf32>
    %128 = tpu.concatenate %124, %125, %126, %127 in 1 : vector<1x32xf32>, vector<1x32xf32>, vector<1x32xf32>, vector<1x32xf32> -> vector<1x128xf32>
    %129 = vector.extract_strided_slice %123 {offsets = [4, 0], sizes = [1, 32], strides = [1, 1]} : vector<8x32xf32> to vector<1x32xf32>
    %130 = vector.extract_strided_slice %123 {offsets = [5, 0], sizes = [1, 32], strides = [1, 1]} : vector<8x32xf32> to vector<1x32xf32>
    %131 = vector.extract_strided_slice %123 {offsets = [6, 0], sizes = [1, 32], strides = [1, 1]} : vector<8x32xf32> to vector<1x32xf32>
    %132 = vector.extract_strided_slice %123 {offsets = [7, 0], sizes = [1, 32], strides = [1, 1]} : vector<8x32xf32> to vector<1x32xf32>
    %133 = tpu.concatenate %129, %130, %131, %132 in 1 : vector<1x32xf32>, vector<1x32xf32>, vector<1x32xf32>, vector<1x32xf32> -> vector<1x128xf32>
    %134 = tpu.concatenate %128, %133 in 0 : vector<1x128xf32>, vector<1x128xf32> -> vector<2x128xf32>
    %c0_40 = arith.constant 0 : index
    %c0_41 = arith.constant 0 : index
    %c0_42 = arith.constant 0 : index
    %135 = vector.load %arg13[%c0_40, %c0_41, %c0_42] : memref<1x2x128xf32, #tpu.memory_space<vmem>>, vector<1x2x128xf32>
    %136 = vector.shape_cast %135 : vector<1x2x128xf32> to vector<2x128xf32>
    %137 = vector.shape_cast %134 : vector<2x128xf32> to vector<1x2x128xf32>
    tpu.vector_store %arg13[%c0_40, %c0_41, %c0_42], %137 {strides = array<i32>} : memref<1x2x128xf32, #tpu.memory_space<vmem>>, vector<1x2x128xf32>,
    return
  }
  func.func @transform_0(%arg0: i32) -> (i32, i32, i32) {
    %c0_i32 = arith.constant 0 : i32
    %c0_i32_0 = arith.constant 0 : i32
    %c0_i32_1 = arith.constant 0 : i32
    return %arg0, %c0_i32, %c0_i32_0 : i32, i32, i32
  }
  func.func @transform_1(%arg0: i32) -> (i32, i32) {
    %c0_i32 = arith.constant 0 : i32
    %c0_i32_0 = arith.constant 0 : i32
    %c0_i32_1 = arith.constant 0 : i32
    return %c0_i32, %c0_i32_0 : i32, i32
  }
  func.func @transform_2(%arg0: i32) -> (i32, i32) {
    %c0_i32 = arith.constant 0 : i32
    %c0_i32_0 = arith.constant 0 : i32
    %c0_i32_1 = arith.constant 0 : i32
    return %c0_i32, %c0_i32_0 : i32, i32
  }
  func.func @transform_3(%arg0: i32) -> (i32, i32) {
    %c0_i32 = arith.constant 0 : i32
    %c0_i32_0 = arith.constant 0 : i32
    %c0_i32_1 = arith.constant 0 : i32
    return %c0_i32, %c0_i32_0 : i32, i32
  }
  func.func @transform_4(%arg0: i32) -> (i32, i32) {
    %c0_i32 = arith.constant 0 : i32
    %c0_i32_0 = arith.constant 0 : i32
    %c0_i32_1 = arith.constant 0 : i32
    return %c0_i32, %c0_i32_0 : i32, i32
  }
  func.func @transform_5(%arg0: i32) -> (i32, i32, i32) {
    %c0_i32 = arith.constant 0 : i32
    %c0_i32_0 = arith.constant 0 : i32
    %c0_i32_1 = arith.constant 0 : i32
    %c0_i32_2 = arith.constant 0 : i32
    return %c0_i32, %c0_i32_0, %c0_i32_1 : i32, i32, i32
  }
  func.func @transform_6(%arg0: i32) -> (i32, i32) {
    %c0_i32 = arith.constant 0 : i32
    %c0_i32_0 = arith.constant 0 : i32
    %c0_i32_1 = arith.constant 0 : i32
    return %c0_i32, %c0_i32_0 : i32, i32
  }
  func.func @transform_7(%arg0: i32) -> (i32, i32) {
    %c0_i32 = arith.constant 0 : i32
    %c0_i32_0 = arith.constant 0 : i32
    %c0_i32_1 = arith.constant 0 : i32
    return %c0_i32, %c0_i32_0 : i32, i32
  }
  func.func @transform_8(%arg0: i32) -> (i32, i32) {
    %c0_i32 = arith.constant 0 : i32
    %c0_i32_0 = arith.constant 0 : i32
    %c0_i32_1 = arith.constant 0 : i32
    return %c0_i32, %c0_i32_0 : i32, i32
  }
  func.func @transform_9(%arg0: i32) -> (i32, i32) {
    %c0_i32 = arith.constant 0 : i32
    %c0_i32_0 = arith.constant 0 : i32
    %c0_i32_1 = arith.constant 0 : i32
    return %c0_i32, %c0_i32_0 : i32, i32
  }
  func.func @transform_10(%arg0: i32) -> (i32, i32) {
    %c0_i32 = arith.constant 0 : i32
    %c0_i32_0 = arith.constant 0 : i32
    %c0_i32_1 = arith.constant 0 : i32
    return %c0_i32, %c0_i32_0 : i32, i32
  }
  func.func @transform_11(%arg0: i32) -> (i32, i32) {
    %c0_i32 = arith.constant 0 : i32
    %c0_i32_0 = arith.constant 0 : i32
    %c0_i32_1 = arith.constant 0 : i32
    return %c0_i32, %c0_i32_0 : i32, i32
  }
  func.func @transform_12(%arg0: i32) -> (i32, i32, i32) {
    %c0_i32 = arith.constant 0 : i32
    %c0_i32_0 = arith.constant 0 : i32
    %c0_i32_1 = arith.constant 0 : i32
    return %arg0, %c0_i32, %c0_i32_0 : i32, i32, i32
  }
}

module attributes {stable_mosaic.version = 11 : i64} {
  func.func @_transformer_block_kernel(%arg0: i32, %arg1: memref<1x2x128xf32, #tpu.memory_space<vmem>>, %arg2: memref<8x8xf32, #tpu.memory_space<vmem>>, %arg3: memref<1x32xf32, #tpu.memory_space<vmem>>, %arg4: memref<1x32xf32, #tpu.memory_space<vmem>>, %arg5: memref<32x96xbf16, #tpu.memory_space<vmem>>, %arg6: memref<4x8x32xbf16, #tpu.memory_space<vmem>>, %arg7: memref<32x128xbf16, #tpu.memory_space<vmem>>, %arg8: memref<32x128xbf16, #tpu.memory_space<vmem>>, %arg9: memref<1x128xf32, #tpu.memory_space<vmem>>, %arg10: memref<1x128xf32, #tpu.memory_space<vmem>>, %arg11: memref<128x32xbf16, #tpu.memory_space<vmem>>, %arg12: memref<1x32xf32, #tpu.memory_space<vmem>>, %arg13: memref<1x2x128xf32, #tpu.memory_space<vmem>>) attributes {dimension_semantics = [#tpu.dimension_semantics<parallel>], iteration_bounds = array<i64: 2>, scalar_prefetch = 0 : i64, scratch_operands = 0 : i64, tpu.core_type = #tpu.core_type<tc>, window_params = [{transform_indices = @transform_0, window_bounds = array<i64: 1, 2, 128>}, {pipeline_mode = #tpu.pipeline_mode<synchronous>, transform_indices = @transform_1, window_bounds = array<i64: 8, 8>}, {pipeline_mode = #tpu.pipeline_mode<synchronous>, transform_indices = @transform_2, window_bounds = array<i64: 1, 32>}, {pipeline_mode = #tpu.pipeline_mode<synchronous>, transform_indices = @transform_3, window_bounds = array<i64: 1, 32>}, {pipeline_mode = #tpu.pipeline_mode<synchronous>, transform_indices = @transform_4, window_bounds = array<i64: 32, 96>}, {pipeline_mode = #tpu.pipeline_mode<synchronous>, transform_indices = @transform_5, window_bounds = array<i64: 4, 8, 32>}, {pipeline_mode = #tpu.pipeline_mode<synchronous>, transform_indices = @transform_6, window_bounds = array<i64: 32, 128>}, {pipeline_mode = #tpu.pipeline_mode<synchronous>, transform_indices = @transform_7, window_bounds = array<i64: 32, 128>}, {pipeline_mode = #tpu.pipeline_mode<synchronous>, transform_indices = @transform_8, window_bounds = array<i64: 1, 128>}, {pipeline_mode = #tpu.pipeline_mode<synchronous>, transform_indices = @transform_9, window_bounds = array<i64: 1, 128>}, {pipeline_mode = #tpu.pipeline_mode<synchronous>, transform_indices = @transform_10, window_bounds = array<i64: 128, 32>}, {pipeline_mode = #tpu.pipeline_mode<synchronous>, transform_indices = @transform_11, window_bounds = array<i64: 1, 32>}, {transform_indices = @transform_12, window_bounds = array<i64: 1, 2, 128>}]} {
    %c0 = arith.constant 0 : index
    %c0_0 = arith.constant 0 : index
    %c0_1 = arith.constant 0 : index
    %0 = vector.load %arg1[%c0, %c0_0, %c0_1] : memref<1x2x128xf32, #tpu.memory_space<vmem>>, vector<1x2x128xf32>
    %1 = vector.shape_cast %0 : vector<1x2x128xf32> to vector<2x128xf32>
    %2 = vector.extract_strided_slice %1 {offsets = [0, 0], sizes = [1, 32], strides = [1, 1]} : vector<2x128xf32> to vector<1x32xf32>
    %3 = vector.extract_strided_slice %1 {offsets = [0, 32], sizes = [1, 32], strides = [1, 1]} : vector<2x128xf32> to vector<1x32xf32>
    %4 = vector.extract_strided_slice %1 {offsets = [0, 64], sizes = [1, 32], strides = [1, 1]} : vector<2x128xf32> to vector<1x32xf32>
    %5 = vector.extract_strided_slice %1 {offsets = [0, 96], sizes = [1, 32], strides = [1, 1]} : vector<2x128xf32> to vector<1x32xf32>
    %6 = vector.extract_strided_slice %1 {offsets = [1, 0], sizes = [1, 32], strides = [1, 1]} : vector<2x128xf32> to vector<1x32xf32>
    %7 = vector.extract_strided_slice %1 {offsets = [1, 32], sizes = [1, 32], strides = [1, 1]} : vector<2x128xf32> to vector<1x32xf32>
    %8 = vector.extract_strided_slice %1 {offsets = [1, 64], sizes = [1, 32], strides = [1, 1]} : vector<2x128xf32> to vector<1x32xf32>
    %9 = vector.extract_strided_slice %1 {offsets = [1, 96], sizes = [1, 32], strides = [1, 1]} : vector<2x128xf32> to vector<1x32xf32>
    %10 = tpu.concatenate %2, %3, %4, %5, %6, %7, %8, %9 in 0 : vector<1x32xf32>, vector<1x32xf32>, vector<1x32xf32>, vector<1x32xf32>, vector<1x32xf32>, vector<1x32xf32>, vector<1x32xf32>, vector<1x32xf32> -> vector<8x32xf32>
    %11 = arith.mulf %10, %10 : vector<8x32xf32>
    %cst = arith.constant dense<0.000000e+00> : vector<8xf32>
    %12 = vector.multi_reduction <add>, %11, %cst [1] : vector<8x32xf32> to vector<8xf32>
    %13 = vector.shape_cast %12 : vector<8xf32> to vector<8x1xf32>
    %cst_2 = arith.constant 9.99999974E-6 : f32
    %14 = vector.broadcast %cst_2 : f32 to vector<8x1xf32>
    %15 = arith.addf %13, %14 : vector<8x1xf32>
    %16 = math.rsqrt %15 : vector<8x1xf32>
    %17 = vector.broadcast %16 : vector<8x1xf32> to vector<8x32xf32>
    %18 = arith.mulf %10, %17 : vector<8x32xf32>
    %c0_3 = arith.constant 0 : index
    %c0_4 = arith.constant 0 : index
    %19 = vector.load %arg3[%c0_3, %c0_4] : memref<1x32xf32, #tpu.memory_space<vmem>>, vector<1x32xf32>
    %20 = vector.shape_cast %19 : vector<1x32xf32> to vector<32xf32>
    %21 = vector.shape_cast %20 : vector<32xf32> to vector<1x32xf32>
    %22 = vector.broadcast %21 : vector<1x32xf32> to vector<8x32xf32>
    %23 = arith.mulf %18, %22 : vector<8x32xf32>
    %24 = arith.truncf %23 : vector<8x32xf32> to vector<8x32xbf16>
    %c0_5 = arith.constant 0 : index
    %c0_6 = arith.constant 0 : index
    %25 = vector.load %arg5[%c0_5, %c0_6] : memref<32x96xbf16, #tpu.memory_space<vmem>>, vector<32x96xbf16>
    %cst_7 = arith.constant dense<0.000000e+00> : vector<8x96xf32>
    %26 = tpu.matmul %24, %25, %cst_7 {dimension_numbers = #tpu.dot_dimension_numbers<[1], [0], [0], [1], [0, 0, 1, 1], [], []>} : vector<8x32xbf16>, vector<32x96xbf16>, vector<8x96xf32> -> vector<8x96xf32>
    %27 = vector.extract_strided_slice %26 {offsets = [0, 0], sizes = [8, 32], strides = [1, 1]} : vector<8x96xf32> to vector<8x32xf32>
    %cst_8 = arith.constant 0.353553385 : f32
    %28 = vector.broadcast %cst_8 : f32 to vector<8x32xf32>
    %29 = arith.mulf %27, %28 : vector<8x32xf32>
    %30 = vector.extract_strided_slice %26 {offsets = [0, 32], sizes = [8, 32], strides = [1, 1]} : vector<8x96xf32> to vector<8x32xf32>
    %31 = vector.extract_strided_slice %26 {offsets = [0, 64], sizes = [8, 32], strides = [1, 1]} : vector<8x96xf32> to vector<8x32xf32>
    %32 = vector.extract_strided_slice %29 {offsets = [0, 0], sizes = [8, 8], strides = [1, 1]} : vector<8x32xf32> to vector<8x8xf32>
    %33 = vector.extract_strided_slice %29 {offsets = [0, 8], sizes = [8, 8], strides = [1, 1]} : vector<8x32xf32> to vector<8x8xf32>
    %34 = vector.extract_strided_slice %29 {offsets = [0, 16], sizes = [8, 8], strides = [1, 1]} : vector<8x32xf32> to vector<8x8xf32>
    %35 = vector.extract_strided_slice %29 {offsets = [0, 24], sizes = [8, 8], strides = [1, 1]} : vector<8x32xf32> to vector<8x8xf32>
    %36 = vector.shape_cast %32 : vector<8x8xf32> to vector<1x8x8xf32>
    %37 = vector.shape_cast %33 : vector<8x8xf32> to vector<1x8x8xf32>
    %38 = vector.shape_cast %34 : vector<8x8xf32> to vector<1x8x8xf32>
    %39 = vector.shape_cast %35 : vector<8x8xf32> to vector<1x8x8xf32>
    %40 = tpu.concatenate %36, %37, %38, %39 in 0 : vector<1x8x8xf32>, vector<1x8x8xf32>, vector<1x8x8xf32>, vector<1x8x8xf32> -> vector<4x8x8xf32>
    %41 = arith.truncf %40 : vector<4x8x8xf32> to vector<4x8x8xbf16>
    %42 = vector.extract_strided_slice %30 {offsets = [0, 0], sizes = [8, 8], strides = [1, 1]} : vector<8x32xf32> to vector<8x8xf32>
    %43 = vector.extract_strided_slice %30 {offsets = [0, 8], sizes = [8, 8], strides = [1, 1]} : vector<8x32xf32> to vector<8x8xf32>
    %44 = vector.extract_strided_slice %30 {offsets = [0, 16], sizes = [8, 8], strides = [1, 1]} : vector<8x32xf32> to vector<8x8xf32>
    %45 = vector.extract_strided_slice %30 {offsets = [0, 24], sizes = [8, 8], strides = [1, 1]} : vector<8x32xf32> to vector<8x8xf32>
    %46 = vector.shape_cast %42 : vector<8x8xf32> to vector<1x8x8xf32>
    %47 = vector.shape_cast %43 : vector<8x8xf32> to vector<1x8x8xf32>
    %48 = vector.shape_cast %44 : vector<8x8xf32> to vector<1x8x8xf32>
    %49 = vector.shape_cast %45 : vector<8x8xf32> to vector<1x8x8xf32>
    %50 = tpu.concatenate %46, %47, %48, %49 in 0 : vector<1x8x8xf32>, vector<1x8x8xf32>, vector<1x8x8xf32>, vector<1x8x8xf32> -> vector<4x8x8xf32>
    %51 = arith.truncf %50 : vector<4x8x8xf32> to vector<4x8x8xbf16>
    %52 = vector.extract_strided_slice %31 {offsets = [0, 0], sizes = [8, 8], strides = [1, 1]} : vector<8x32xf32> to vector<8x8xf32>
    %53 = vector.extract_strided_slice %31 {offsets = [0, 8], sizes = [8, 8], strides = [1, 1]} : vector<8x32xf32> to vector<8x8xf32>
    %54 = vector.extract_strided_slice %31 {offsets = [0, 16], sizes = [8, 8], strides = [1, 1]} : vector<8x32xf32> to vector<8x8xf32>
    %55 = vector.extract_strided_slice %31 {offsets = [0, 24], sizes = [8, 8], strides = [1, 1]} : vector<8x32xf32> to vector<8x8xf32>
    %56 = vector.shape_cast %52 : vector<8x8xf32> to vector<1x8x8xf32>
    %57 = vector.shape_cast %53 : vector<8x8xf32> to vector<1x8x8xf32>
    %58 = vector.shape_cast %54 : vector<8x8xf32> to vector<1x8x8xf32>
    %59 = vector.shape_cast %55 : vector<8x8xf32> to vector<1x8x8xf32>
    %60 = tpu.concatenate %56, %57, %58, %59 in 0 : vector<1x8x8xf32>, vector<1x8x8xf32>, vector<1x8x8xf32>, vector<1x8x8xf32> -> vector<4x8x8xf32>
    %61 = arith.truncf %60 : vector<4x8x8xf32> to vector<4x8x8xbf16>
    "tpu.trace_start"() <{level = 10 : i32, message = "hqd,hkd->hqk"}> : () -> ()
    %cst_9 = arith.constant dense<0.000000e+00> : vector<4x8x8xf32>
    %62 = tpu.matmul %41, %51, %cst_9 {dimension_numbers = #tpu.dot_dimension_numbers<[2], [2], [1], [1], [0, 0, 0, 1, 1, 1], [0], [0]>} : vector<4x8x8xbf16>, vector<4x8x8xbf16>, vector<4x8x8xf32> -> vector<4x8x8xf32>
    "tpu.trace_stop"() : () -> ()
    %c0_10 = arith.constant 0 : index
    %c0_11 = arith.constant 0 : index
    %63 = vector.load %arg2[%c0_10, %c0_11] : memref<8x8xf32, #tpu.memory_space<vmem>>, vector<8x8xf32>
    %64 = vector.shape_cast %63 : vector<8x8xf32> to vector<1x8x8xf32>
    %65 = vector.broadcast %64 : vector<1x8x8xf32> to vector<4x8x8xf32>
    %66 = arith.addf %62, %65 : vector<4x8x8xf32>
    %cst_12 = arith.constant dense<0xFF800000> : vector<4x8xf32>
    %67 = vector.multi_reduction <maximumf>, %66, %cst_12 [2] : vector<4x8x8xf32> to vector<4x8xf32>
    %68 = vector.shape_cast %67 : vector<4x8xf32> to vector<4x8x1xf32>
    %69 = vector.broadcast %68 : vector<4x8x1xf32> to vector<4x8x8xf32>
    %70 = arith.subf %66, %69 : vector<4x8x8xf32>
    %71 = math.exp %70 : vector<4x8x8xf32>
    %cst_13 = arith.constant dense<0.000000e+00> : vector<4x8xf32>
    %72 = vector.multi_reduction <add>, %71, %cst_13 [2] : vector<4x8x8xf32> to vector<4x8xf32>
    %73 = vector.shape_cast %72 : vector<4x8xf32> to vector<4x8x1xf32>
    %74 = tpu.reciprocal %73 {approx = true} : vector<4x8x1xf32> -> vector<4x8x1xf32>
    %75 = vector.broadcast %74 : vector<4x8x1xf32> to vector<4x8x8xf32>
    %76 = arith.mulf %71, %75 : vector<4x8x8xf32>
    %77 = arith.truncf %76 : vector<4x8x8xf32> to vector<4x8x8xbf16>
    "tpu.trace_start"() <{level = 10 : i32, message = "hqk,hkd->hqd"}> : () -> ()
    %cst_14 = arith.constant dense<0.000000e+00> : vector<4x8x8xf32>
    %78 = tpu.matmul %77, %61, %cst_14 {dimension_numbers = #tpu.dot_dimension_numbers<[2], [1], [1], [2], [0, 0, 0, 1, 1, 2], [0], [0]>} : vector<4x8x8xbf16>, vector<4x8x8xbf16>, vector<4x8x8xf32> -> vector<4x8x8xf32>
    "tpu.trace_stop"() : () -> ()
    %79 = arith.truncf %78 : vector<4x8x8xf32> to vector<4x8x8xbf16>
    %c0_15 = arith.constant 0 : index
    %c0_16 = arith.constant 0 : index
    %c0_17 = arith.constant 0 : index
    %80 = vector.load %arg6[%c0_15, %c0_16, %c0_17] : memref<4x8x32xbf16, #tpu.memory_space<vmem>>, vector<4x8x32xbf16>
    "tpu.trace_start"() <{level = 10 : i32, message = "hsd,hde->hse"}> : () -> ()
    %cst_18 = arith.constant dense<0.000000e+00> : vector<4x8x32xf32>
    %81 = tpu.matmul %79, %80, %cst_18 {dimension_numbers = #tpu.dot_dimension_numbers<[2], [1], [1], [2], [0, 0, 0, 1, 1, 2], [0], [0]>} : vector<4x8x8xbf16>, vector<4x8x32xbf16>, vector<4x8x32xf32> -> vector<4x8x32xf32>
    "tpu.trace_stop"() : () -> ()
    %cst_19 = arith.constant dense<0.000000e+00> : vector<8x32xf32>
    %82 = vector.multi_reduction <add>, %81, %cst_19 [0] : vector<4x8x32xf32> to vector<8x32xf32>
    %83 = arith.addf %10, %82 : vector<8x32xf32>
    %84 = arith.mulf %83, %83 : vector<8x32xf32>
    %cst_20 = arith.constant dense<0.000000e+00> : vector<8xf32>
    %85 = vector.multi_reduction <add>, %84, %cst_20 [1] : vector<8x32xf32> to vector<8xf32>
    %86 = vector.shape_cast %85 : vector<8xf32> to vector<8x1xf32>
    %cst_21 = arith.constant 9.99999974E-6 : f32
    %87 = vector.broadcast %cst_21 : f32 to vector<8x1xf32>
    %88 = arith.addf %86, %87 : vector<8x1xf32>
    %89 = math.rsqrt %88 : vector<8x1xf32>
    %90 = vector.broadcast %89 : vector<8x1xf32> to vector<8x32xf32>
    %91 = arith.mulf %83, %90 : vector<8x32xf32>
    %c0_22 = arith.constant 0 : index
    %c0_23 = arith.constant 0 : index
    %92 = vector.load %arg4[%c0_22, %c0_23] : memref<1x32xf32, #tpu.memory_space<vmem>>, vector<1x32xf32>
    %93 = vector.shape_cast %92 : vector<1x32xf32> to vector<32xf32>
    %94 = vector.shape_cast %93 : vector<32xf32> to vector<1x32xf32>
    %95 = vector.broadcast %94 : vector<1x32xf32> to vector<8x32xf32>
    %96 = arith.mulf %91, %95 : vector<8x32xf32>
    %97 = arith.truncf %96 : vector<8x32xf32> to vector<8x32xbf16>
    %c0_24 = arith.constant 0 : index
    %c0_25 = arith.constant 0 : index
    %98 = vector.load %arg7[%c0_24, %c0_25] : memref<32x128xbf16, #tpu.memory_space<vmem>>, vector<32x128xbf16>
    %cst_26 = arith.constant dense<0.000000e+00> : vector<8x128xf32>
    %99 = tpu.matmul %97, %98, %cst_26 {dimension_numbers = #tpu.dot_dimension_numbers<[1], [0], [0], [1], [0, 0, 1, 1], [], []>} : vector<8x32xbf16>, vector<32x128xbf16>, vector<8x128xf32> -> vector<8x128xf32>
    %c0_27 = arith.constant 0 : index
    %c0_28 = arith.constant 0 : index
    %100 = vector.load %arg9[%c0_27, %c0_28] : memref<1x128xf32, #tpu.memory_space<vmem>>, vector<1x128xf32>
    %101 = vector.shape_cast %100 : vector<1x128xf32> to vector<128xf32>
    %102 = vector.shape_cast %101 : vector<128xf32> to vector<1x128xf32>
    %103 = vector.broadcast %102 : vector<1x128xf32> to vector<8x128xf32>
    %104 = arith.addf %99, %103 : vector<8x128xf32>
    %c0_29 = arith.constant 0 : index
    %c0_30 = arith.constant 0 : index
    %105 = vector.load %arg8[%c0_29, %c0_30] : memref<32x128xbf16, #tpu.memory_space<vmem>>, vector<32x128xbf16>
    %cst_31 = arith.constant dense<0.000000e+00> : vector<8x128xf32>
    %106 = tpu.matmul %97, %105, %cst_31 {dimension_numbers = #tpu.dot_dimension_numbers<[1], [0], [0], [1], [0, 0, 1, 1], [], []>} : vector<8x32xbf16>, vector<32x128xbf16>, vector<8x128xf32> -> vector<8x128xf32>
    %c0_32 = arith.constant 0 : index
    %c0_33 = arith.constant 0 : index
    %107 = vector.load %arg10[%c0_32, %c0_33] : memref<1x128xf32, #tpu.memory_space<vmem>>, vector<1x128xf32>
    %108 = vector.shape_cast %107 : vector<1x128xf32> to vector<128xf32>
    %109 = vector.shape_cast %108 : vector<128xf32> to vector<1x128xf32>
    %110 = vector.broadcast %109 : vector<1x128xf32> to vector<8x128xf32>
    %111 = arith.addf %106, %110 : vector<8x128xf32>
    %cst_34 = arith.constant 0.000000e+00 : f32
    %112 = vector.broadcast %cst_34 : f32 to vector<8x128xf32>
    %113 = arith.maximumf %111, %112 : vector<8x128xf32>
    %114 = arith.mulf %104, %113 : vector<8x128xf32>
    %115 = arith.truncf %114 : vector<8x128xf32> to vector<8x128xbf16>
    %c0_35 = arith.constant 0 : index
    %c0_36 = arith.constant 0 : index
    %116 = vector.load %arg11[%c0_35, %c0_36] : memref<128x32xbf16, #tpu.memory_space<vmem>>, vector<128x32xbf16>
    %cst_37 = arith.constant dense<0.000000e+00> : vector<8x32xf32>
    %117 = tpu.matmul %115, %116, %cst_37 {dimension_numbers = #tpu.dot_dimension_numbers<[1], [0], [0], [1], [0, 0, 1, 1], [], []>} : vector<8x128xbf16>, vector<128x32xbf16>, vector<8x32xf32> -> vector<8x32xf32>
    %c0_38 = arith.constant 0 : index
    %c0_39 = arith.constant 0 : index
    %118 = vector.load %arg12[%c0_38, %c0_39] : memref<1x32xf32, #tpu.memory_space<vmem>>, vector<1x32xf32>
    %119 = vector.shape_cast %118 : vector<1x32xf32> to vector<32xf32>
    %120 = vector.shape_cast %119 : vector<32xf32> to vector<1x32xf32>
    %121 = vector.broadcast %120 : vector<1x32xf32> to vector<8x32xf32>
    %122 = arith.addf %117, %121 : vector<8x32xf32>
    %123 = arith.addf %83, %122 : vector<8x32xf32>
    %124 = vector.extract_strided_slice %123 {offsets = [0, 0], sizes = [1, 32], strides = [1, 1]} : vector<8x32xf32> to vector<1x32xf32>
    %125 = vector.extract_strided_slice %123 {offsets = [1, 0], sizes = [1, 32], strides = [1, 1]} : vector<8x32xf32> to vector<1x32xf32>
    %126 = vector.extract_strided_slice %123 {offsets = [2, 0], sizes = [1, 32], strides = [1, 1]} : vector<8x32xf32> to vector<1x32xf32>
    %127 = vector.extract_strided_slice %123 {offsets = [3, 0], sizes = [1, 32], strides = [1, 1]} : vector<8x32xf32> to vector<1x32xf32>
    %128 = tpu.concatenate %124, %125, %126, %127 in 1 : vector<1x32xf32>, vector<1x32xf32>, vector<1x32xf32>, vector<1x32xf32> -> vector<1x128xf32>
    %129 = vector.extract_strided_slice %123 {offsets = [4, 0], sizes = [1, 32], strides = [1, 1]} : vector<8x32xf32> to vector<1x32xf32>
    %130 = vector.extract_strided_slice %123 {offsets = [5, 0], sizes = [1, 32], strides = [1, 1]} : vector<8x32xf32> to vector<1x32xf32>
    %131 = vector.extract_strided_slice %123 {offsets = [6, 0], sizes = [1, 32], strides = [1, 1]} : vector<8x32xf32> to vector<1x32xf32>
    %132 = vector.extract_strided_slice %123 {offsets = [7, 0], sizes = [1, 32], strides = [1, 1]} : vector<8x32xf32> to vector<1x32xf32>
    %133 = tpu.concatenate %129, %130, %131, %132 in 1 : vector<1x32xf32>, vector<1x32xf32>, vector<1x32xf32>, vector<1x32xf32> -> vector<1x128xf32>
    %134 = tpu.concatenate %128, %133 in 0 : vector<1x128xf32>, vector<1x128xf32> -> vector<2x128xf32>
    %c0_40 = arith.constant 0 : index
    %c0_41 = arith.constant 0 : index
    %c0_42 = arith.constant 0 : index
    %135 = vector.load %arg13[%c0_40, %c0_41, %c0_42] : memref<1x2x128xf32, #tpu.memory_space<vmem>>, vector<1x2x128xf32>
    %136 = vector.shape_cast %135 : vector<1x2x128xf32> to vector<2x128xf32>
    %137 = vector.shape_cast %134 : vector<2x128xf32> to vector<1x2x128xf32>
    tpu.vector_store %arg13[%c0_40, %c0_41, %c0_42], %137 {strides = array<i32>} : memref<1x2x128xf32, #tpu.memory_space<vmem>>, vector<1x2x128xf32>,
    return
  }
  func.func @transform_0(%arg0: i32) -> (i32, i32, i32) {
    %c0_i32 = arith.constant 0 : i32
    %c0_i32_0 = arith.constant 0 : i32
    %c0_i32_1 = arith.constant 0 : i32
    return %arg0, %c0_i32, %c0_i32_0 : i32, i32, i32
  }
  func.func @transform_1(%arg0: i32) -> (i32, i32) {
    %c0_i32 = arith.constant 0 : i32
    %c0_i32_0 = arith.constant 0 : i32
    %c0_i32_1 = arith.constant 0 : i32
    return %c0_i32, %c0_i32_0 : i32, i32
  }
  func.func @transform_2(%arg0: i32) -> (i32, i32) {
    %c0_i32 = arith.constant 0 : i32
    %c0_i32_0 = arith.constant 0 : i32
    %c0_i32_1 = arith.constant 0 : i32
    return %c0_i32, %c0_i32_0 : i32, i32
  }
  func.func @transform_3(%arg0: i32) -> (i32, i32) {
    %c0_i32 = arith.constant 0 : i32
    %c0_i32_0 = arith.constant 0 : i32
    %c0_i32_1 = arith.constant 0 : i32
    return %c0_i32, %c0_i32_0 : i32, i32
  }
  func.func @transform_4(%arg0: i32) -> (i32, i32) {
    %c0_i32 = arith.constant 0 : i32
    %c0_i32_0 = arith.constant 0 : i32
    %c0_i32_1 = arith.constant 0 : i32
    return %c0_i32, %c0_i32_0 : i32, i32
  }
  func.func @transform_5(%arg0: i32) -> (i32, i32, i32) {
    %c0_i32 = arith.constant 0 : i32
    %c0_i32_0 = arith.constant 0 : i32
    %c0_i32_1 = arith.constant 0 : i32
    %c0_i32_2 = arith.constant 0 : i32
    return %c0_i32, %c0_i32_0, %c0_i32_1 : i32, i32, i32
  }
  func.func @transform_6(%arg0: i32) -> (i32, i32) {
    %c0_i32 = arith.constant 0 : i32
    %c0_i32_0 = arith.constant 0 : i32
    %c0_i32_1 = arith.constant 0 : i32
    return %c0_i32, %c0_i32_0 : i32, i32
  }
  func.func @transform_7(%arg0: i32) -> (i32, i32) {
    %c0_i32 = arith.constant 0 : i32
    %c0_i32_0 = arith.constant 0 : i32
    %c0_i32_1 = arith.constant 0 : i32
    return %c0_i32, %c0_i32_0 : i32, i32
  }
  func.func @transform_8(%arg0: i32) -> (i32, i32) {
    %c0_i32 = arith.constant 0 : i32
    %c0_i32_0 = arith.constant 0 : i32
    %c0_i32_1 = arith.constant 0 : i32
    return %c0_i32, %c0_i32_0 : i32, i32
  }
  func.func @transform_9(%arg0: i32) -> (i32, i32) {
    %c0_i32 = arith.constant 0 : i32
    %c0_i32_0 = arith.constant 0 : i32
    %c0_i32_1 = arith.constant 0 : i32
    return %c0_i32, %c0_i32_0 : i32, i32
  }
  func.func @transform_10(%arg0: i32) -> (i32, i32) {
    %c0_i32 = arith.constant 0 : i32
    %c0_i32_0 = arith.constant 0 : i32
    %c0_i32_1 = arith.constant 0 : i32
    return %c0_i32, %c0_i32_0 : i32, i32
  }
  func.func @transform_11(%arg0: i32) -> (i32, i32) {
    %c0_i32 = arith.constant 0 : i32
    %c0_i32_0 = arith.constant 0 : i32
    %c0_i32_1 = arith.constant 0 : i32
    return %c0_i32, %c0_i32_0 : i32, i32
  }
  func.func @transform_12(%arg0: i32) -> (i32, i32, i32) {
    %c0_i32 = arith.constant 0 : i32
    %c0_i32_0 = arith.constant 0 : i32
    %c0_i32_1 = arith.constant 0 : i32
    return %arg0, %c0_i32, %c0_i32_0 : i32, i32, i32
  }
}

</mosaic_0001>

<llo_original>
// kernel: tpu_custom_call.1
$region0: #{tpu_custom_call.1}
  #allocation0 [shape = 'u32[]', space=smem, size = 0x4, offset = 0x4, fixed_abs, tag = 'smem constant byte address 0x4 - core index']
  #allocation1 [shape = 'u32[144,128]{1,0:T(1,128)}', space=vmem, size = 0x12000, scoped, tag = 'internal scratch']
  %s0 = inlined_call_operand.vmem [shape: f32[2,2,128], index: 0, kind: input, shape index: {}]
  %s1 = inlined_call_operand.vmem [shape: f32[8,8], index: 1, kind: input, shape index: {}]
  %s2 = inlined_call_operand.vmem [shape: f32[1,32], index: 2, kind: input, shape index: {}]
  %s3 = inlined_call_operand.vmem [shape: f32[1,32], index: 3, kind: input, shape index: {}]
  %s4 = inlined_call_operand.vmem [shape: bf16[32,96], index: 4, kind: input, shape index: {}]
  %s5 = inlined_call_operand.vmem [shape: bf16[4,8,32], index: 5, kind: input, shape index: {}]
  %s6 = inlined_call_operand.vmem [shape: bf16[32,128], index: 6, kind: input, shape index: {}]
  %s7 = inlined_call_operand.vmem [shape: bf16[32,128], index: 7, kind: input, shape index: {}]
  %s8 = inlined_call_operand.vmem [shape: f32[1,128], index: 8, kind: input, shape index: {}]
  %s9 = inlined_call_operand.vmem [shape: f32[1,128], index: 9, kind: input, shape index: {}]
  %s10 = inlined_call_operand.vmem [shape: bf16[128,32], index: 10, kind: input, shape index: {}]
  %s11 = inlined_call_operand.vmem [shape: f32[1,32], index: 11, kind: input, shape index: {}]
  %s12 = inlined_call_operand.hbm [shape: f32[2,2,128], index: 12, kind: output, shape index: {}]
  %s13 = sld [smem:[#allocation0]]
  $region81: #{tpu_custom_call.1} parent=0
    _
  %s15 = ssub.s32 1, %s13
  %s16 = scalar_select 0, %s15, %s13
  $region1: #{tpu_custom_call.1} parent=0
    #allocation2 [shape = 'u8[2048]{0}', space=vmem, size = 0x800, scoped, tag = 'output window, operand 0']
    #allocation3 [shape = 's32[2]{0}', space=sflag, size = 0x8, scoped, tag = 'scoped memory for tpu_custom_call.1']
    %17 = vsyncpa [#allocation3], 0
    %s18 = scalar_lea.sflag [#allocation3], 1
    %19 = vsyncpa %s18, 0
    loop: start=0, step=1, limit=4
    $region2: #{tpu_custom_call.1} parent=1 // loop_pre_header
      _
    $region3: #{tpu_custom_call.1} parent=1 // loop_header
      %s21 = sphi 0, %s25
      %p22 = scmp.ge.s32.totalorder %s21, 4
      %s31 = sphi 0, %s33
      %s34 = sphi 0, %s31
      %s35 = sphi 0, %s34
      %s51 = sphi 0, %s35
      %s55 = sphi 0, %s55
      %s57 = sphi 0, %s55
      %s58 = sphi 0, %s57
      %s72 = sphi 0, %s58
      %s76 = sphi 0, %s76
      %s78 = sphi 0, %s76
      %s79 = sphi 0, %s78
      %s93 = sphi 0, %s79
      %s97 = sphi 0, %s97
      %s99 = sphi 0, %s97
      %s100 = sphi 0, %s99
      %s114 = sphi 0, %s100
      %s118 = sphi 0, %s118
      %s120 = sphi 0, %s118
      %s121 = sphi 0, %s120
      %s135 = sphi 0, %s121
      %s139 = sphi 0, %s139
      %s141 = sphi 0, %s139
      %s142 = sphi 0, %s141
      %s156 = sphi 0, %s142
      %s160 = sphi 0, %s160
      %s162 = sphi 0, %s160
      %s163 = sphi 0, %s162
      %s177 = sphi 0, %s163
      %s181 = sphi 0, %s181
      %s183 = sphi 0, %s181
      %s184 = sphi 0, %s183
      %s198 = sphi 0, %s184
      %s202 = sphi 0, %s202
      %s204 = sphi 0, %s202
      %s205 = sphi 0, %s204
      %s219 = sphi 0, %s205
      %s223 = sphi 0, %s223
      %s225 = sphi 0, %s223
      %s226 = sphi 0, %s225
      %s240 = sphi 0, %s226
      %s244 = sphi 0, %s244
      %s246 = sphi 0, %s244
      %s247 = sphi 0, %s246
      %s261 = sphi 0, %s247
      %s265 = sphi 0, %s265
      %s267 = sphi 0, %s265
      %s268 = sphi 0, %s267
      %s282 = sphi 0, %s268
      %s288 = sphi 0, %s290
      %s291 = sphi 0, %s288
      %s292 = sphi 0, %s291
      %s308 = sphi 0, %s292
    $region4: #{tpu_custom_call.1} parent=1 // loop_header_branch
      %24 = sbr.rel (%p22) target = $region8
    $region5: #{tpu_custom_call.1} parent=1 // loop_body
      %s26 = ssub.s32 %s21, 1
      %s27 = ssub.s32 %s21, 2
      %s28 = sadd.s32 %s21, 1
      %s29 = ssub.s32 %s21, %s28
      %p30 = scmp.eq.s32.totalorder %s29, 0
      %s32 = sadd.s32 %s31, 1
      %s33 = scalar_select %p30, %s31, %s32
      %p36 = pneg %p30
      %p37 = scmp.eq.s32.totalorder %s21, 1
      %p38 = por %p36, %p37
      %p39 = scmp.ne.s32.totalorder %s31, %s34
      %p40 = scmp.eq.s32.totalorder %s21, 0
      %p41 = por %p39, %p40
      %p42 = scmp.ne.s32.totalorder %s31, %s34
      %p43 = scmp.eq.s32.totalorder %s26, 1
      %p44 = por %p42, %p43
      %p45 = scmp.ne.s32.totalorder %s34, %s35
      %p46 = scmp.eq.s32.totalorder %s26, 0
      %p47 = por %p45, %p46
      %p48 = scmp.ne.s32.totalorder %s34, %s35
      %p49 = scmp.eq.s32.totalorder %s27, 1
      %p50 = por %p48, %p49
      %p52 = scmp.ne.s32.totalorder %s35, %s51
      %p53 = scmp.eq.s32.totalorder %s27, 0
      %p54 = por %p52, %p53
      %s56 = sadd.s32 %s55, 1
      %p59 = scmp.eq.s32.totalorder %s21, 1
      %p60 = scmp.ne.s32.totalorder %s55, %s57
      %p61 = scmp.eq.s32.totalorder %s21, 0
      %p62 = por %p60, %p61
      %p63 = scmp.ne.s32.totalorder %s55, %s57
      %p64 = scmp.eq.s32.totalorder %s26, 1
      %p65 = por %p63, %p64
      %p66 = scmp.ne.s32.totalorder %s57, %s58
      %p67 = scmp.eq.s32.totalorder %s26, 0
      %p68 = por %p66, %p67
      %p69 = scmp.ne.s32.totalorder %s57, %s58
      %p70 = scmp.eq.s32.totalorder %s27, 1
      %p71 = por %p69, %p70
      %p73 = scmp.ne.s32.totalorder %s58, %s72
      %p74 = scmp.eq.s32.totalorder %s27, 0
      %p75 = por %p73, %p74
      %s77 = sadd.s32 %s76, 1
      %p80 = scmp.eq.s32.totalorder %s21, 1
      %p81 = scmp.ne.s32.totalorder %s76, %s78
      %p82 = scmp.eq.s32.totalorder %s21, 0
      %p83 = por %p81, %p82
      %p84 = scmp.ne.s32.totalorder %s76, %s78
      %p85 = scmp.eq.s32.totalorder %s26, 1
      %p86 = por %p84, %p85
      %p87 = scmp.ne.s32.totalorder %s78, %s79
      %p88 = scmp.eq.s32.totalorder %s26, 0
      %p89 = por %p87, %p88
      %p90 = scmp.ne.s32.totalorder %s78, %s79
      %p91 = scmp.eq.s32.totalorder %s27, 1
      %p92 = por %p90, %p91
      %p94 = scmp.ne.s32.totalorder %s79, %s93
      %p95 = scmp.eq.s32.totalorder %s27, 0
      %p96 = por %p94, %p95
      %s98 = sadd.s32 %s97, 1
      %p101 = scmp.eq.s32.totalorder %s21, 1
      %p102 = scmp.ne.s32.totalorder %s97, %s99
      %p103 = scmp.eq.s32.totalorder %s21, 0
      %p104 = por %p102, %p103
      %p105 = scmp.ne.s32.totalorder %s97, %s99
      %p106 = scmp.eq.s32.totalorder %s26, 1
      %p107 = por %p105, %p106
      %p108 = scmp.ne.s32.totalorder %s99, %s100
      %p109 = scmp.eq.s32.totalorder %s26, 0
      %p110 = por %p108, %p109
      %p111 = scmp.ne.s32.totalorder %s99, %s100
      %p112 = scmp.eq.s32.totalorder %s27, 1
      %p113 = por %p111, %p112
      %p115 = scmp.ne.s32.totalorder %s100, %s114
      %p116 = scmp.eq.s32.totalorder %s27, 0
      %p117 = por %p115, %p116
      %s119 = sadd.s32 %s118, 1
      %p122 = scmp.eq.s32.totalorder %s21, 1
      %p123 = scmp.ne.s32.totalorder %s118, %s120
      %p124 = scmp.eq.s32.totalorder %s21, 0
      %p125 = por %p123, %p124
      %p126 = scmp.ne.s32.totalorder %s118, %s120
      %p127 = scmp.eq.s32.totalorder %s26, 1
      %p128 = por %p126, %p127
      %p129 = scmp.ne.s32.totalorder %s120, %s121
      %p130 = scmp.eq.s32.totalorder %s26, 0
      %p131 = por %p129, %p130
      %p132 = scmp.ne.s32.totalorder %s120, %s121
      %p133 = scmp.eq.s32.totalorder %s27, 1
      %p134 = por %p132, %p133
      %p136 = scmp.ne.s32.totalorder %s121, %s135
      %p137 = scmp.eq.s32.totalorder %s27, 0
      %p138 = por %p136, %p137
      %s140 = sadd.s32 %s139, 1
      %p143 = scmp.eq.s32.totalorder %s21, 1
      %p144 = scmp.ne.s32.totalorder %s139, %s141
      %p145 = scmp.eq.s32.totalorder %s21, 0
      %p146 = por %p144, %p145
      %p147 = scmp.ne.s32.totalorder %s139, %s141
      %p148 = scmp.eq.s32.totalorder %s26, 1
      %p149 = por %p147, %p148
      %p150 = scmp.ne.s32.totalorder %s141, %s142
      %p151 = scmp.eq.s32.totalorder %s26, 0
      %p152 = por %p150, %p151
      %p153 = scmp.ne.s32.totalorder %s141, %s142
      %p154 = scmp.eq.s32.totalorder %s27, 1
      %p155 = por %p153, %p154
      %p157 = scmp.ne.s32.totalorder %s142, %s156
      %p158 = scmp.eq.s32.totalorder %s27, 0
      %p159 = por %p157, %p158
      %s161 = sadd.s32 %s160, 1
      %p164 = scmp.eq.s32.totalorder %s21, 1
      %p165 = scmp.ne.s32.totalorder %s160, %s162
      %p166 = scmp.eq.s32.totalorder %s21, 0
      %p167 = por %p165, %p166
      %p168 = scmp.ne.s32.totalorder %s160, %s162
      %p169 = scmp.eq.s32.totalorder %s26, 1
      %p170 = por %p168, %p169
      %p171 = scmp.ne.s32.totalorder %s162, %s163
      %p172 = scmp.eq.s32.totalorder %s26, 0
      %p173 = por %p171, %p172
      %p174 = scmp.ne.s32.totalorder %s162, %s163
      %p175 = scmp.eq.s32.totalorder %s27, 1
      %p176 = por %p174, %p175
      %p178 = scmp.ne.s32.totalorder %s163, %s177
      %p179 = scmp.eq.s32.totalorder %s27, 0
      %p180 = por %p178, %p179
      %s182 = sadd.s32 %s181, 1
      %p185 = scmp.eq.s32.totalorder %s21, 1
      %p186 = scmp.ne.s32.totalorder %s181, %s183
      %p187 = scmp.eq.s32.totalorder %s21, 0
      %p188 = por %p186, %p187
      %p189 = scmp.ne.s32.totalorder %s181, %s183
      %p190 = scmp.eq.s32.totalorder %s26, 1
      %p191 = por %p189, %p190
      %p192 = scmp.ne.s32.totalorder %s183, %s184
      %p193 = scmp.eq.s32.totalorder %s26, 0
      %p194 = por %p192, %p193
      %p195 = scmp.ne.s32.totalorder %s183, %s184
      %p196 = scmp.eq.s32.totalorder %s27, 1
      %p197 = por %p195, %p196
      %p199 = scmp.ne.s32.totalorder %s184, %s198
      %p200 = scmp.eq.s32.totalorder %s27, 0
      %p201 = por %p199, %p200
      %s203 = sadd.s32 %s202, 1
      %p206 = scmp.eq.s32.totalorder %s21, 1
      %p207 = scmp.ne.s32.totalorder %s202, %s204
      %p208 = scmp.eq.s32.totalorder %s21, 0
      %p209 = por %p207, %p208
      %p210 = scmp.ne.s32.totalorder %s202, %s204
      %p211 = scmp.eq.s32.totalorder %s26, 1
      %p212 = por %p210, %p211
      %p213 = scmp.ne.s32.totalorder %s204, %s205
      %p214 = scmp.eq.s32.totalorder %s26, 0
      %p215 = por %p213, %p214
      %p216 = scmp.ne.s32.totalorder %s204, %s205
      %p217 = scmp.eq.s32.totalorder %s27, 1
      %p218 = por %p216, %p217
      %p220 = scmp.ne.s32.totalorder %s205, %s219
      %p221 = scmp.eq.s32.totalorder %s27, 0
      %p222 = por %p220, %p221
      %s224 = sadd.s32 %s223, 1
      %p227 = scmp.eq.s32.totalorder %s21, 1
      %p228 = scmp.ne.s32.totalorder %s223, %s225
      %p229 = scmp.eq.s32.totalorder %s21, 0
      %p230 = por %p228, %p229
      %p231 = scmp.ne.s32.totalorder %s223, %s225
      %p232 = scmp.eq.s32.totalorder %s26, 1
      %p233 = por %p231, %p232
      %p234 = scmp.ne.s32.totalorder %s225, %s226
      %p235 = scmp.eq.s32.totalorder %s26, 0
      %p236 = por %p234, %p235
      %p237 = scmp.ne.s32.totalorder %s225, %s226
      %p238 = scmp.eq.s32.totalorder %s27, 1
      %p239 = por %p237, %p238
      %p241 = scmp.ne.s32.totalorder %s226, %s240
      %p242 = scmp.eq.s32.totalorder %s27, 0
      %p243 = por %p241, %p242
      %s245 = sadd.s32 %s244, 1
      %p248 = scmp.eq.s32.totalorder %s21, 1
      %p249 = scmp.ne.s32.totalorder %s244, %s246
      %p250 = scmp.eq.s32.totalorder %s21, 0
      %p251 = por %p249, %p250
      %p252 = scmp.ne.s32.totalorder %s244, %s246
      %p253 = scmp.eq.s32.totalorder %s26, 1
      %p254 = por %p252, %p253
      %p255 = scmp.ne.s32.totalorder %s246, %s247
      %p256 = scmp.eq.s32.totalorder %s26, 0
      %p257 = por %p255, %p256
      %p258 = scmp.ne.s32.totalorder %s246, %s247
      %p259 = scmp.eq.s32.totalorder %s27, 1
      %p260 = por %p258, %p259
      %p262 = scmp.ne.s32.totalorder %s247, %s261
      %p263 = scmp.eq.s32.totalorder %s27, 0
      %p264 = por %p262, %p263
      %s266 = sadd.s32 %s265, 1
      %p269 = scmp.eq.s32.totalorder %s21, 1
      %p270 = scmp.ne.s32.totalorder %s265, %s267
      %p271 = scmp.eq.s32.totalorder %s21, 0
      %p272 = por %p270, %p271
      %p273 = scmp.ne.s32.totalorder %s265, %s267
      %p274 = scmp.eq.s32.totalorder %s26, 1
      %p275 = por %p273, %p274
      %p276 = scmp.ne.s32.totalorder %s267, %s268
      %p277 = scmp.eq.s32.totalorder %s26, 0
      %p278 = por %p276, %p277
      %p279 = scmp.ne.s32.totalorder %s267, %s268
      %p280 = scmp.eq.s32.totalorder %s27, 1
      %p281 = por %p279, %p280
      %p283 = scmp.ne.s32.totalorder %s268, %s282
      %p284 = scmp.eq.s32.totalorder %s27, 0
      %p285 = por %p283, %p284
      %s286 = ssub.s32 %s21, %s28
      %p287 = scmp.eq.s32.totalorder %s286, 0
      %s289 = sadd.s32 %s288, 1
      %s290 = scalar_select %p287, %s288, %s289
      %p293 = pneg %p287
      %p294 = scmp.eq.s32.totalorder %s21, 1
      %p295 = por %p293, %p294
      %p296 = scmp.ne.s32.totalorder %s288, %s291
      %p297 = scmp.eq.s32.totalorder %s21, 0
      %p298 = por %p296, %p297
      %p299 = scmp.ne.s32.totalorder %s288, %s291
      %p300 = scmp.eq.s32.totalorder %s26, 1
      %p301 = por %p299, %p300
      %p302 = scmp.ne.s32.totalorder %s291, %s292
      %p303 = scmp.eq.s32.totalorder %s26, 0
      %p304 = por %p302, %p303
      %p305 = scmp.ne.s32.totalorder %s291, %s292
      %p306 = scmp.eq.s32.totalorder %s27, 1
      %p307 = por %p305, %p306
      %p309 = scmp.ne.s32.totalorder %s292, %s308
      %p310 = scmp.eq.s32.totalorder %s27, 0
      %p311 = por %p309, %p310
      %p312 = scmp.le.s32.totalorder 1, %s21
      %p313 = scmp.lt.s32.totalorder %s21, 3
      %p314 = pnand %p312, %p313
      %p315 = pneg %p314
      // Predicated region
      $region9: #{tpu_custom_call.1} parent=5 // pred_check
        _
      $region10: #{tpu_custom_call.1} parent=5 // pred_check_branch
        %317 = sbr.rel (%p314) target = $region12
      $region11: #{tpu_custom_call.1} parent=5 // pred_region
        %s318 = ssub.s32 %s21, 1
        // Predicated region
        $region13: #{tpu_custom_call.1} parent=11 // pred_check
          %p319 = pneg %p68
        $region14: #{tpu_custom_call.1} parent=11 // pred_check_branch
          %321 = sbr.rel (%p319) target = $region16
        $region15: #{tpu_custom_call.1} parent=11 // pred_region
          _
        $region16: #{tpu_custom_call.1} parent=11 // pred_fallthru
          _
        // Predicated region
        $region17: #{tpu_custom_call.1} parent=11 // pred_check
          %p322 = pneg %p89
        $region18: #{tpu_custom_call.1} parent=11 // pred_check_branch
          %324 = sbr.rel (%p322) target = $region20
        $region19: #{tpu_custom_call.1} parent=11 // pred_region
          _
        $region20: #{tpu_custom_call.1} parent=11 // pred_fallthru
          _
        // Predicated region
        $region21: #{tpu_custom_call.1} parent=11 // pred_check
          %p325 = pneg %p110
        $region22: #{tpu_custom_call.1} parent=11 // pred_check_branch
          %327 = sbr.rel (%p325) target = $region24
        $region23: #{tpu_custom_call.1} parent=11 // pred_region
          _
        $region24: #{tpu_custom_call.1} parent=11 // pred_fallthru
          _
        // Predicated region
        $region25: #{tpu_custom_call.1} parent=11 // pred_check
          %p328 = pneg %p131
        $region26: #{tpu_custom_call.1} parent=11 // pred_check_branch
          %330 = sbr.rel (%p328) target = $region28
        $region27: #{tpu_custom_call.1} parent=11 // pred_region
          _
        $region28: #{tpu_custom_call.1} parent=11 // pred_fallthru
          _
        // Predicated region
        $region29: #{tpu_custom_call.1} parent=11 // pred_check
          %p331 = pneg %p152
        $region30: #{tpu_custom_call.1} parent=11 // pred_check_branch
          %333 = sbr.rel (%p331) target = $region32
        $region31: #{tpu_custom_call.1} parent=11 // pred_region
          _
        $region32: #{tpu_custom_call.1} parent=11 // pred_fallthru
          _
        // Predicated region
        $region33: #{tpu_custom_call.1} parent=11 // pred_check
          %p334 = pneg %p173
        $region34: #{tpu_custom_call.1} parent=11 // pred_check_branch
          %336 = sbr.rel (%p334) target = $region36
        $region35: #{tpu_custom_call.1} parent=11 // pred_region
          _
        $region36: #{tpu_custom_call.1} parent=11 // pred_fallthru
          _
        // Predicated region
        $region37: #{tpu_custom_call.1} parent=11 // pred_check
          %p337 = pneg %p194
        $region38: #{tpu_custom_call.1} parent=11 // pred_check_branch
          %339 = sbr.rel (%p337) target = $region40
        $region39: #{tpu_custom_call.1} parent=11 // pred_region
          _
        $region40: #{tpu_custom_call.1} parent=11 // pred_fallthru
          _
        // Predicated region
        $region41: #{tpu_custom_call.1} parent=11 // pred_check
          %p340 = pneg %p215
        $region42: #{tpu_custom_call.1} parent=11 // pred_check_branch
          %342 = sbr.rel (%p340) target = $region44
        $region43: #{tpu_custom_call.1} parent=11 // pred_region
          _
        $region44: #{tpu_custom_call.1} parent=11 // pred_fallthru
          _
        // Predicated region
        $region45: #{tpu_custom_call.1} parent=11 // pred_check
          %p343 = pneg %p236
        $region46: #{tpu_custom_call.1} parent=11 // pred_check_branch
          %345 = sbr.rel (%p343) target = $region48
        $region47: #{tpu_custom_call.1} parent=11 // pred_region
          _
        $region48: #{tpu_custom_call.1} parent=11 // pred_fallthru
          _
        // Predicated region
        $region49: #{tpu_custom_call.1} parent=11 // pred_check
          %p346 = pneg %p257
        $region50: #{tpu_custom_call.1} parent=11 // pred_check_branch
          %348 = sbr.rel (%p346) target = $region52
        $region51: #{tpu_custom_call.1} parent=11 // pred_region
          _
        $region52: #{tpu_custom_call.1} parent=11 // pred_fallthru
          _
        // Predicated region
        $region53: #{tpu_custom_call.1} parent=11 // pred_check
          %p349 = pneg %p278
        $region54: #{tpu_custom_call.1} parent=11 // pred_check_branch
          %351 = sbr.rel (%p349) target = $region56
        $region55: #{tpu_custom_call.1} parent=11 // pred_region
          _
        $region56: #{tpu_custom_call.1} parent=11 // pred_fallthru
          _
      $region12: #{tpu_custom_call.1} parent=5 // pred_fallthru
        _
      %p352 = scmp.lt.s32.totalorder %s21, 2
      // Predicated region
      $region57: #{tpu_custom_call.1} parent=5 // pred_check
        %p353 = pneg %p352
      $region58: #{tpu_custom_call.1} parent=5 // pred_check_branch
        %355 = sbr.rel (%p353) target = $region60
      $region59: #{tpu_custom_call.1} parent=5 // pred_region
        // Predicated region
        $region61: #{tpu_custom_call.1} parent=59 // pred_check
          %p356 = pneg %p41
        $region62: #{tpu_custom_call.1} parent=59 // pred_check_branch
          %358 = sbr.rel (%p356) target = $region64
        $region63: #{tpu_custom_call.1} parent=59 // pred_region
          %p359 = scmp.lt.s32.totalorder %s21, 1
          %s360 = scalar_select %p359, %s21, 1
          %s361 = smul.addr %s360, 2
          %s362 = scalar_lea.vmem %s0, %s361
        $region64: #{tpu_custom_call.1} parent=59 // pred_fallthru
          _
      $region60: #{tpu_custom_call.1} parent=5 // pred_fallthru
        _
      %p363 = scmp.le.s32.totalorder 1, %s21
      %p364 = scmp.lt.s32.totalorder %s21, 3
      %p365 = pnand %p363, %p364
      %p366 = pneg %p365
      // Predicated region
      $region65: #{tpu_custom_call.1} parent=5 // pred_check
        _
      $region66: #{tpu_custom_call.1} parent=5 // pred_check_branch
        %368 = sbr.rel (%p365) target = $region68
      $region67: #{tpu_custom_call.1} parent=5 // pred_region
        %s369 = ssub.s32 %s21, 1
        %p370 = scmp.lt.s32.totalorder %s26, 1
        %s371 = scalar_select %p370, %s26, 1
        %s372 = smul.addr %s371, 2
        %s373 = scalar_lea.vmem %s0, %s372
        %p374 = pneg %p47
        %p375 = pneg %p44
        %p376 = pneg %p68
        %p377 = pneg %p65
        %p378 = pneg %p89
        %p379 = pneg %p86
        %p380 = pneg %p110
        %p381 = pneg %p107
        %p382 = pneg %p131
        %p383 = pneg %p128
        %p384 = pneg %p152
        %p385 = pneg %p149
        %p386 = pneg %p173
        %p387 = pneg %p170
        %p388 = pneg %p194
        %p389 = pneg %p191
        %p390 = pneg %p215
        %p391 = pneg %p212
        %p392 = pneg %p236
        %p393 = pneg %p233
        %p394 = pneg %p257
        %p395 = pneg %p254
        %p396 = pneg %p278
        %p397 = pneg %p275
        %p398 = pneg %p304
        %p399 = pneg %p301
        %s400 = sand.u32 %s291, 1
        %s401 = scalar_lea.sflag [#allocation3], %s400
        %s402 = sand.u32 %s291, 1
        %s403 = smul.addr %s402, 2
        %s404 = scalar_lea.vmem [#allocation2], %s403
        %p405 = scmp.lt.s32.totalorder %s26, 1
        %s406 = scalar_select %p405, %s26, 1
        %s407 = smul.addr %s406, 2
        %s408 = scalar_lea.vmem %s0, %s407
        %v410 = vld [vmem:[%s408] sm:$0x3]
        %v412 = vrot.slane %v410, 7
        %413 = vrot.lane.b32.xlu0 %v412, 96
        %v414 = vpop.permute.xlu0 %413
        %v416 = vrot.slane %v410, 6
        %417 = vrot.lane.b32.xlu0 %v416, 64
        %v418 = vpop.permute.xlu0 %417
        %v420 = vrot.slane %v410, 5
        %421 = vrot.lane.b32.xlu0 %v420, 32
        %v422 = vpop.permute.xlu0 %421
        %v425 = vrot.slane %v410, 4
        %426 = vrot.lane.b32.xlu0 %v425, 96
        %v427 = vpop.permute.xlu0 %426
        %v429 = vrot.slane %v410, 3
        %430 = vrot.lane.b32.xlu0 %v429, 64
        %v431 = vpop.permute.xlu0 %430
        %v433 = vrot.slane %v410, 2
        %434 = vrot.lane.b32.xlu0 %v433, 32
        %v435 = vpop.permute.xlu0 %434
        %vm437 = vcmask 1040384
        %v438 = vsel %vm437, %v410, %v414
        %vm439 = vcmask 1041408
        %v440 = vsel %vm439, %v438, %v418
        %vm441 = vcmask 1042432
        %v442 = vsel %vm441, %v440, %v422
        %vm443 = vcmask 1043456
        %v444 = vsel %vm443, %v442, %v420
        %vm445 = vcmask 1044480
        %v446 = vsel %vm445, %v444, %v427
        %vm447 = vcmask 1045504
        %v448 = vsel %vm447, %v446, %v431
        %vm449 = vcmask 1046528
        %v450 = vsel %vm449, %v448, %v435
        %v451 = vmul.f32 %v450, %v450
        %vm452 = vcmask 261120
        %v453 = vsel %vm452, %v451, 0.0
        %454 = vadd.xlane.f32.xlu0 %v453
        %v455 = vpop.xlane.xlu0 %454
        %v456 = vadd.f32 %v455, 1e-05
        %v457 = vrsqrt.pop %v456
        %v458 = vmul.f32 %v450, %v457
        %v459 = vld [vmem:[%s2] sm:$0x1]
        %v461 = vlaneseq
        %v462 = vshrl.u32 %v461, 7
        %v463 = vsub.s32 0, %v462
        %v464 = vrot.slane %v459, %v463
        %v466 = vmul.f32 %v458, %v464
        %v467 = vpack.c.bf16 %v466, %v466
        %v468 = vld [vmem:[%s4] sm:$0xf]
        %v469 = vld [vmem:[%s4 + $0x4] sm:$0xf]
        %v470 = vld [vmem:[%s4 + $0x8] sm:$0xf]
        %v471 = vld [vmem:[%s4 + $0xc] sm:$0xf]
        %v476 = vunpack.c.l.b16 %v468
        %v477 = vunpack.c.l.b16 %v469
        %v478 = vunpack.c.l.b16 %v470
        %v479 = vunpack.c.l.b16 %v471
        %v480 = vpack.c.b16 %v477, %v476
        %v481 = vpack.c.b16 %v479, %v478
        %v485 = vsel %vm452, %v467, 0
        %487 = vmatprep.subr.bf16.mxu0 0
        %488 = vmatpush1.bf16.msra.mxu0 %v480
        %489 = vmatprep.subr.bf16.mxu0 0
        %490 = vmatpush1.bf16.msra.mxu0 %v481
        %491 = vmatprep.subr.bf16.mxu0 0
        %492 = vmatpush1.bf16.msra.mxu0 0
        %493 = vmatprep.subr.bf16.mxu0 0
        %494 = vmatpush1.bf16.msra.mxu0 0
        %495 = vmatprep.subr.bf16.mxu0 0
        %496 = vmatpush1.bf16.msra.mxu0 0
        %497 = vmatprep.subr.bf16.mxu0 0
        %498 = vmatpush1.bf16.msra.mxu0 0
        %499 = vmatprep.subr.bf16.mxu0 0
        %500 = vmatpush1.bf16.msra.mxu0 0
        %501 = vmatprep.subr.bf16.mxu0 0
        %502 = vmatpush1.bf16.msra.mxu0 0
        %503 = vmatprep.subr.bf16.mxu0 0
        %504 = vmatpush1.bf16.msra.mxu0 0
        %505 = vmatprep.subr.bf16.mxu0 0
        %506 = vmatpush1.bf16.msra.mxu0 0
        %507 = vmatprep.subr.bf16.mxu0 0
        %508 = vmatpush1.bf16.msra.mxu0 0
        %509 = vmatprep.subr.bf16.mxu0 0
        %510 = vmatpush1.bf16.msra.mxu0 0
        %511 = vmatprep.subr.bf16.mxu0 0
        %512 = vmatpush1.bf16.msra.mxu0 0
        %513 = vmatprep.subr.bf16.mxu0 0
        %514 = vmatpush1.bf16.msra.mxu0 0
        %515 = vmatprep.subr.bf16.mxu0 0
        %516 = vmatpush1.bf16.msra.mxu0 0
        %517 = vmatprep.subr.bf16.mxu0 0
        %518 = vmatpush1.bf16.msra.mxu0 0
        %519 = vmatprep.mubr.bf16.mxu0 0
        %520 = vmatmul.mubr.bf16.gmra.mrb[0].mxu0 %v485
        %v521 = vpop.f32.mrb[0].mxu0
        %v522 = vadd.f32 0.0, %v521
        %v523 = vpop.f32.mrb[0].mxu0
        %v524 = vpop.f32.mrb[0].mxu0
        %v525 = vpop.f32.mrb[0].mxu0
        %526 = vdwg.mxu0
        %v527 = vmul.f32 %v522, 0.35355338
        %529 = vrot.lane.b32.xlu0 %v527, 120
        %v530 = vpop.permute.xlu0 %529
        %532 = vrot.lane.b32.xlu0 %v527, 112
        %v533 = vpop.permute.xlu0 %532
        %535 = vrot.lane.b32.xlu0 %v527, 104
        %v536 = vpop.permute.xlu0 %535
        %v538 = vpack.c.bf16 %v527, %v527
        %v539 = vpack.c.bf16 %v530, %v530
        %v540 = vpack.c.bf16 %v533, %v533
        %v541 = vpack.c.bf16 %v536, %v536
        %543 = vrot.lane.b32.xlu0 %v522, 120
        %v544 = vpop.permute.xlu0 %543
        %546 = vrot.lane.b32.xlu0 %v522, 112
        %v547 = vpop.permute.xlu0 %546
        %549 = vrot.lane.b32.xlu0 %v522, 104
        %v550 = vpop.permute.xlu0 %549
        %v552 = vpack.c.bf16 %v522, %v522
        %v553 = vpack.c.bf16 %v544, %v544
        %v554 = vpack.c.bf16 %v547, %v547
        %v555 = vpack.c.bf16 %v550, %v550
        %v556 = vld [vmem:[%s1] sm:$0xff]
        %558 = vrot.lane.b32.xlu0 %v552, 96
        %v559 = vpop.permute.xlu0 %558
        %vm560 = vcmask 64512
        %v562 = vsel %vm560, %v538, 0
        %v565 = vsel %vm560, %v559, 0
        %567 = vmatprep.subr.bf16.mxu0 0
        %568 = vmatpush1.bf16.xpose.msra.mxu0 %v565
        %569 = vmatprep.subr.bf16.mxu0 0
        %570 = vmatpush1.bf16.xpose.msra.mxu0 0
        %571 = vmatprep.subr.bf16.mxu0 0
        %572 = vmatpush1.bf16.xpose.msra.mxu0 0
        %573 = vmatprep.subr.bf16.mxu0 0
        %574 = vmatpush1.bf16.xpose.msra.mxu0 0
        %575 = vmatprep.subr.bf16.mxu0 0
        %576 = vmatpush1.bf16.xpose.msra.mxu0 0
        %577 = vmatprep.subr.bf16.mxu0 0
        %578 = vmatpush1.bf16.xpose.msra.mxu0 0
        %579 = vmatprep.subr.bf16.mxu0 0
        %580 = vmatpush1.bf16.xpose.msra.mxu0 0
        %581 = vmatprep.subr.bf16.mxu0 0
        %582 = vmatpush1.bf16.xpose.msra.mxu0 0
        %583 = vmatprep.subr.bf16.mxu0 0
        %584 = vmatpush1.bf16.xpose.msra.mxu0 0
        %585 = vmatprep.subr.bf16.mxu0 0
        %586 = vmatpush1.bf16.xpose.msra.mxu0 0
        %587 = vmatprep.subr.bf16.mxu0 0
        %588 = vmatpush1.bf16.xpose.msra.mxu0 0
        %589 = vmatprep.subr.bf16.mxu0 0
        %590 = vmatpush1.bf16.xpose.msra.mxu0 0
        %591 = vmatprep.subr.bf16.mxu0 0
        %592 = vmatpush1.bf16.xpose.msra.mxu0 0
        %593 = vmatprep.subr.bf16.mxu0 0
        %594 = vmatpush1.bf16.xpose.msra.mxu0 0
        %595 = vmatprep.subr.bf16.mxu0 0
        %596 = vmatpush1.bf16.xpose.msra.mxu0 0
        %597 = vmatprep.subr.bf16.mxu0 0
        %598 = vmatpush1.bf16.xpose.msra.mxu0 0
        %599 = vmatprep.mubr.bf16.mxu0 0
        %600 = vmatmul.mubr.bf16.gmra.mrb[0].mxu0 %v562
        %v601 = vpop.f32.mrb[0].mxu0
        %v602 = vadd.f32 %v556, %v601
        %v603 = vpop.f32.mrb[0].mxu0
        %v604 = vpop.f32.mrb[0].mxu0
        %v605 = vpop.f32.mrb[0].mxu0
        %606 = vdwg.mxu0
        %608 = vrot.lane.b32.xlu0 %v553, 96
        %v609 = vpop.permute.xlu0 %608
        %v611 = vsel %vm560, %v539, 0
        %v614 = vsel %vm560, %v609, 0
        %616 = vmatprep.subr.bf16.mxu0 0
        %617 = vmatpush1.bf16.xpose.msra.mxu0 %v614
        %618 = vmatprep.subr.bf16.mxu0 0
        %619 = vmatpush1.bf16.xpose.msra.mxu0 0
        %620 = vmatprep.subr.bf16.mxu0 0
        %621 = vmatpush1.bf16.xpose.msra.mxu0 0
        %622 = vmatprep.subr.bf16.mxu0 0
        %623 = vmatpush1.bf16.xpose.msra.mxu0 0
        %624 = vmatprep.subr.bf16.mxu0 0
        %625 = vmatpush1.bf16.xpose.msra.mxu0 0
        %626 = vmatprep.subr.bf16.mxu0 0
        %627 = vmatpush1.bf16.xpose.msra.mxu0 0
        %628 = vmatprep.subr.bf16.mxu0 0
        %629 = vmatpush1.bf16.xpose.msra.mxu0 0
        %630 = vmatprep.subr.bf16.mxu0 0
        %631 = vmatpush1.bf16.xpose.msra.mxu0 0
        %632 = vmatprep.subr.bf16.mxu0 0
        %633 = vmatpush1.bf16.xpose.msra.mxu0 0
        %634 = vmatprep.subr.bf16.mxu0 0
        %635 = vmatpush1.bf16.xpose.msra.mxu0 0
        %636 = vmatprep.subr.bf16.mxu0 0
        %637 = vmatpush1.bf16.xpose.msra.mxu0 0
        %638 = vmatprep.subr.bf16.mxu0 0
        %639 = vmatpush1.bf16.xpose.msra.mxu0 0
        %640 = vmatprep.subr.bf16.mxu0 0
        %641 = vmatpush1.bf16.xpose.msra.mxu0 0
        %642 = vmatprep.subr.bf16.mxu0 0
        %643 = vmatpush1.bf16.xpose.msra.mxu0 0
        %644 = vmatprep.subr.bf16.mxu0 0
        %645 = vmatpush1.bf16.xpose.msra.mxu0 0
        %646 = vmatprep.subr.bf16.mxu0 0
        %647 = vmatpush1.bf16.xpose.msra.mxu0 0
        %648 = vmatprep.mubr.bf16.mxu0 0
        %649 = vmatmul.mubr.bf16.gmra.mrb[0].mxu0 %v611
        %v650 = vpop.f32.mrb[0].mxu0
        %v651 = vadd.f32 %v556, %v650
        %v652 = vpop.f32.mrb[0].mxu0
        %v653 = vpop.f32.mrb[0].mxu0
        %v654 = vpop.f32.mrb[0].mxu0
        %655 = vdwg.mxu0
        %657 = vrot.lane.b32.xlu0 %v554, 96
        %v658 = vpop.permute.xlu0 %657
        %v660 = vsel %vm560, %v540, 0
        %v663 = vsel %vm560, %v658, 0
        %665 = vmatprep.subr.bf16.mxu0 0
        %666 = vmatpush1.bf16.xpose.msra.mxu0 %v663
        %667 = vmatprep.subr.bf16.mxu0 0
        %668 = vmatpush1.bf16.xpose.msra.mxu0 0
        %669 = vmatprep.subr.bf16.mxu0 0
        %670 = vmatpush1.bf16.xpose.msra.mxu0 0
        %671 = vmatprep.subr.bf16.mxu0 0
        %672 = vmatpush1.bf16.xpose.msra.mxu0 0
        %673 = vmatprep.subr.bf16.mxu0 0
        %674 = vmatpush1.bf16.xpose.msra.mxu0 0
        %675 = vmatprep.subr.bf16.mxu0 0
        %676 = vmatpush1.bf16.xpose.msra.mxu0 0
        %677 = vmatprep.subr.bf16.mxu0 0
        %678 = vmatpush1.bf16.xpose.msra.mxu0 0
        %679 = vmatprep.subr.bf16.mxu0 0
        %680 = vmatpush1.bf16.xpose.msra.mxu0 0
        %681 = vmatprep.subr.bf16.mxu0 0
        %682 = vmatpush1.bf16.xpose.msra.mxu0 0
        %683 = vmatprep.subr.bf16.mxu0 0
        %684 = vmatpush1.bf16.xpose.msra.mxu0 0
        %685 = vmatprep.subr.bf16.mxu0 0
        %686 = vmatpush1.bf16.xpose.msra.mxu0 0
        %687 = vmatprep.subr.bf16.mxu0 0
        %688 = vmatpush1.bf16.xpose.msra.mxu0 0
        %689 = vmatprep.subr.bf16.mxu0 0
        %690 = vmatpush1.bf16.xpose.msra.mxu0 0
        %691 = vmatprep.subr.bf16.mxu0 0
        %692 = vmatpush1.bf16.xpose.msra.mxu0 0
        %693 = vmatprep.subr.bf16.mxu0 0
        %694 = vmatpush1.bf16.xpose.msra.mxu0 0
        %695 = vmatprep.subr.bf16.mxu0 0
        %696 = vmatpush1.bf16.xpose.msra.mxu0 0
        %697 = vmatprep.mubr.bf16.mxu0 0
        %698 = vmatmul.mubr.bf16.gmra.mrb[0].mxu0 %v660
        %v699 = vpop.f32.mrb[0].mxu0
        %v700 = vadd.f32 %v556, %v699
        %v701 = vpop.f32.mrb[0].mxu0
        %v702 = vpop.f32.mrb[0].mxu0
        %v703 = vpop.f32.mrb[0].mxu0
        %704 = vdwg.mxu0
        %706 = vrot.lane.b32.xlu0 %v555, 96
        %v707 = vpop.permute.xlu0 %706
        %v709 = vsel %vm560, %v541, 0
        %v712 = vsel %vm560, %v707, 0
        %714 = vmatprep.subr.bf16.mxu0 0
        %715 = vmatpush1.bf16.xpose.msra.mxu0 %v712
        %716 = vmatprep.subr.bf16.mxu0 0
        %717 = vmatpush1.bf16.xpose.msra.mxu0 0
        %718 = vmatprep.subr.bf16.mxu0 0
        %719 = vmatpush1.bf16.xpose.msra.mxu0 0
        %720 = vmatprep.subr.bf16.mxu0 0
        %721 = vmatpush1.bf16.xpose.msra.mxu0 0
        %722 = vmatprep.subr.bf16.mxu0 0
        %723 = vmatpush1.bf16.xpose.msra.mxu0 0
        %724 = vmatprep.subr.bf16.mxu0 0
        %725 = vmatpush1.bf16.xpose.msra.mxu0 0
        %726 = vmatprep.subr.bf16.mxu0 0
        %727 = vmatpush1.bf16.xpose.msra.mxu0 0
        %728 = vmatprep.subr.bf16.mxu0 0
        %729 = vmatpush1.bf16.xpose.msra.mxu0 0
        %730 = vmatprep.subr.bf16.mxu0 0
        %731 = vmatpush1.bf16.xpose.msra.mxu0 0
        %732 = vmatprep.subr.bf16.mxu0 0
        %733 = vmatpush1.bf16.xpose.msra.mxu0 0
        %734 = vmatprep.subr.bf16.mxu0 0
        %735 = vmatpush1.bf16.xpose.msra.mxu0 0
        %736 = vmatprep.subr.bf16.mxu0 0
        %737 = vmatpush1.bf16.xpose.msra.mxu0 0
        %738 = vmatprep.subr.bf16.mxu0 0
        %739 = vmatpush1.bf16.xpose.msra.mxu0 0
        %740 = vmatprep.subr.bf16.mxu0 0
        %741 = vmatpush1.bf16.xpose.msra.mxu0 0
        %742 = vmatprep.subr.bf16.mxu0 0
        %743 = vmatpush1.bf16.xpose.msra.mxu0 0
        %744 = vmatprep.subr.bf16.mxu0 0
        %745 = vmatpush1.bf16.xpose.msra.mxu0 0
        %746 = vmatprep.mubr.bf16.mxu0 0
        %747 = vmatmul.mubr.bf16.gmra.mrb[0].mxu0 %v709
        %v748 = vpop.f32.mrb[0].mxu0
        %v749 = vadd.f32 %v556, %v748
        %v750 = vpop.f32.mrb[0].mxu0
        %v751 = vpop.f32.mrb[0].mxu0
        %v752 = vpop.f32.mrb[0].mxu0
        %753 = vdwg.mxu0
        %v754 = vsel %vm560, %v602, -inf
        %755 = vmax.xlane.f32.xlu0 %v754
        %v756 = vpop.xlane.xlu0 %755
        %v757 = vsel %vm560, %v651, -inf
        %758 = vmax.xlane.f32.xlu0 %v757
        %v759 = vpop.xlane.xlu0 %758
        %v760 = vsel %vm560, %v700, -inf
        %761 = vmax.xlane.f32.xlu0 %v760
        %v762 = vpop.xlane.xlu0 %761
        %v763 = vsel %vm560, %v749, -inf
        %764 = vmax.xlane.f32.xlu0 %v763
        %v765 = vpop.xlane.xlu0 %764
        %v766 = vsub.f32 %v602, %v756
        %v767 = vsub.f32 %v651, %v759
        %v768 = vsub.f32 %v700, %v762
        %v769 = vsub.f32 %v749, %v765
        %v770 = vmul.f32 %v766, 1.442695
        %v771 = vpow.pop %v770
        %v772 = vmul.f32 %v767, 1.442695
        %v773 = vpow.pop %v772
        %v774 = vmul.f32 %v768, 1.442695
        %v775 = vpow.pop %v774
        %v776 = vmul.f32 %v769, 1.442695
        %v777 = vpow.pop %v776
        %v778 = vsel %vm560, %v771, 0.0
        %779 = vadd.xlane.f32.xlu0 %v778
        %v780 = vpop.xlane.xlu0 %779
        %v781 = vsel %vm560, %v773, 0.0
        %782 = vadd.xlane.f32.xlu0 %v781
        %v783 = vpop.xlane.xlu0 %782
        %v784 = vsel %vm560, %v775, 0.0
        %785 = vadd.xlane.f32.xlu0 %v784
        %v786 = vpop.xlane.xlu0 %785
        %v787 = vsel %vm560, %v777, 0.0
        %788 = vadd.xlane.f32.xlu0 %v787
        %v789 = vpop.xlane.xlu0 %788
        %v790 = vrcp.pop %v780
        %v791 = vrcp.pop %v783
        %v792 = vrcp.pop %v786
        %v793 = vrcp.pop %v789
        %v794 = vmul.f32 %v771, %v790
        %v795 = vmul.f32 %v773, %v791
        %v796 = vmul.f32 %v775, %v792
        %v797 = vmul.f32 %v777, %v793
        %v798 = vpack.c.bf16 %v794, %v794
        %v799 = vpack.c.bf16 %v795, %v795
        %v800 = vpack.c.bf16 %v796, %v796
        %v801 = vpack.c.bf16 %v797, %v797
        %802 = vrot.lane.b32.xlu0 %v552, 64
        %v803 = vpop.permute.xlu0 %802
        %v805 = vsel %vm560, %v798, 0
        %v808 = vsel %vm443, %v803, 0
        %810 = vmatprep.subr.bf16.mxu0 0
        %811 = vmatpush1.bf16.msra.mxu0 %v808
        %812 = vmatprep.subr.bf16.mxu0 0
        %813 = vmatpush1.bf16.msra.mxu0 0
        %814 = vmatprep.subr.bf16.mxu0 0
        %815 = vmatpush1.bf16.msra.mxu0 0
        %816 = vmatprep.subr.bf16.mxu0 0
        %817 = vmatpush1.bf16.msra.mxu0 0
        %818 = vmatprep.subr.bf16.mxu0 0
        %819 = vmatpush1.bf16.msra.mxu0 0
        %820 = vmatprep.subr.bf16.mxu0 0
        %821 = vmatpush1.bf16.msra.mxu0 0
        %822 = vmatprep.subr.bf16.mxu0 0
        %823 = vmatpush1.bf16.msra.mxu0 0
        %824 = vmatprep.subr.bf16.mxu0 0
        %825 = vmatpush1.bf16.msra.mxu0 0
        %826 = vmatprep.subr.bf16.mxu0 0
        %827 = vmatpush1.bf16.msra.mxu0 0
        %828 = vmatprep.subr.bf16.mxu0 0
        %829 = vmatpush1.bf16.msra.mxu0 0
        %830 = vmatprep.subr.bf16.mxu0 0
        %831 = vmatpush1.bf16.msra.mxu0 0
        %832 = vmatprep.subr.bf16.mxu0 0
        %833 = vmatpush1.bf16.msra.mxu0 0
        %834 = vmatprep.subr.bf16.mxu0 0
        %835 = vmatpush1.bf16.msra.mxu0 0
        %836 = vmatprep.subr.bf16.mxu0 0
        %837 = vmatpush1.bf16.msra.mxu0 0
        %838 = vmatprep.subr.bf16.mxu0 0
        %839 = vmatpush1.bf16.msra.mxu0 0
        %840 = vmatprep.subr.bf16.mxu0 0
        %841 = vmatpush1.bf16.msra.mxu0 0
        %842 = vmatprep.mubr.bf16.mxu0 0
        %843 = vmatmul.mubr.bf16.gmra.mrb[0].mxu0 %v805
        %v844 = vpop.f32.mrb[0].mxu0
        %v845 = vadd.f32 0.0, %v844
        %v846 = vpop.f32.mrb[0].mxu0
        %v847 = vpop.f32.mrb[0].mxu0
        %v848 = vpop.f32.mrb[0].mxu0
        %849 = vdwg.mxu0
        %850 = vrot.lane.b32.xlu0 %v553, 64
        %v851 = vpop.permute.xlu0 %850
        %v853 = vsel %vm560, %v799, 0
        %v856 = vsel %vm443, %v851, 0
        %858 = vmatprep.subr.bf16.mxu0 0
        %859 = vmatpush1.bf16.msra.mxu0 %v856
        %860 = vmatprep.subr.bf16.mxu0 0
        %861 = vmatpush1.bf16.msra.mxu0 0
        %862 = vmatprep.subr.bf16.mxu0 0
        %863 = vmatpush1.bf16.msra.mxu0 0
        %864 = vmatprep.subr.bf16.mxu0 0
        %865 = vmatpush1.bf16.msra.mxu0 0
        %866 = vmatprep.subr.bf16.mxu0 0
        %867 = vmatpush1.bf16.msra.mxu0 0
        %868 = vmatprep.subr.bf16.mxu0 0
        %869 = vmatpush1.bf16.msra.mxu0 0
        %870 = vmatprep.subr.bf16.mxu0 0
        %871 = vmatpush1.bf16.msra.mxu0 0
        %872 = vmatprep.subr.bf16.mxu0 0
        %873 = vmatpush1.bf16.msra.mxu0 0
        %874 = vmatprep.subr.bf16.mxu0 0
        %875 = vmatpush1.bf16.msra.mxu0 0
        %876 = vmatprep.subr.bf16.mxu0 0
        %877 = vmatpush1.bf16.msra.mxu0 0
        %878 = vmatprep.subr.bf16.mxu0 0
        %879 = vmatpush1.bf16.msra.mxu0 0
        %880 = vmatprep.subr.bf16.mxu0 0
        %881 = vmatpush1.bf16.msra.mxu0 0
        %882 = vmatprep.subr.bf16.mxu0 0
        %883 = vmatpush1.bf16.msra.mxu0 0
        %884 = vmatprep.subr.bf16.mxu0 0
        %885 = vmatpush1.bf16.msra.mxu0 0
        %886 = vmatprep.subr.bf16.mxu0 0
        %887 = vmatpush1.bf16.msra.mxu0 0
        %888 = vmatprep.subr.bf16.mxu0 0
        %889 = vmatpush1.bf16.msra.mxu0 0
        %890 = vmatprep.mubr.bf16.mxu0 0
        %891 = vmatmul.mubr.bf16.gmra.mrb[0].mxu0 %v853
        %v892 = vpop.f32.mrb[0].mxu0
        %v893 = vadd.f32 0.0, %v892
        %v894 = vpop.f32.mrb[0].mxu0
        %v895 = vpop.f32.mrb[0].mxu0
        %v896 = vpop.f32.mrb[0].mxu0
        %897 = vdwg.mxu0
        %898 = vrot.lane.b32.xlu0 %v554, 64
        %v899 = vpop.permute.xlu0 %898
        %v901 = vsel %vm560, %v800, 0
        %v904 = vsel %vm443, %v899, 0
        %906 = vmatprep.subr.bf16.mxu0 0
        %907 = vmatpush1.bf16.msra.mxu0 %v904
        %908 = vmatprep.subr.bf16.mxu0 0
        %909 = vmatpush1.bf16.msra.mxu0 0
        %910 = vmatprep.subr.bf16.mxu0 0
        %911 = vmatpush1.bf16.msra.mxu0 0
        %912 = vmatprep.subr.bf16.mxu0 0
        %913 = vmatpush1.bf16.msra.mxu0 0
        %914 = vmatprep.subr.bf16.mxu0 0
        %915 = vmatpush1.bf16.msra.mxu0 0
        %916 = vmatprep.subr.bf16.mxu0 0
        %917 = vmatpush1.bf16.msra.mxu0 0
        %918 = vmatprep.subr.bf16.mxu0 0
        %919 = vmatpush1.bf16.msra.mxu0 0
        %920 = vmatprep.subr.bf16.mxu0 0
        %921 = vmatpush1.bf16.msra.mxu0 0
        %922 = vmatprep.subr.bf16.mxu0 0
        %923 = vmatpush1.bf16.msra.mxu0 0
        %924 = vmatprep.subr.bf16.mxu0 0
        %925 = vmatpush1.bf16.msra.mxu0 0
        %926 = vmatprep.subr.bf16.mxu0 0
        %927 = vmatpush1.bf16.msra.mxu0 0
        %928 = vmatprep.subr.bf16.mxu0 0
        %929 = vmatpush1.bf16.msra.mxu0 0
        %930 = vmatprep.subr.bf16.mxu0 0
        %931 = vmatpush1.bf16.msra.mxu0 0
        %932 = vmatprep.subr.bf16.mxu0 0
        %933 = vmatpush1.bf16.msra.mxu0 0
        %934 = vmatprep.subr.bf16.mxu0 0
        %935 = vmatpush1.bf16.msra.mxu0 0
        %936 = vmatprep.subr.bf16.mxu0 0
        %937 = vmatpush1.bf16.msra.mxu0 0
        %938 = vmatprep.mubr.bf16.mxu0 0
        %939 = vmatmul.mubr.bf16.gmra.mrb[0].mxu0 %v901
        %v940 = vpop.f32.mrb[0].mxu0
        %v941 = vadd.f32 0.0, %v940
        %v942 = vpop.f32.mrb[0].mxu0
        %v943 = vpop.f32.mrb[0].mxu0
        %v944 = vpop.f32.mrb[0].mxu0
        %945 = vdwg.mxu0
        %946 = vrot.lane.b32.xlu0 %v555, 64
        %v947 = vpop.permute.xlu0 %946
        %v949 = vsel %vm560, %v801, 0
        %v952 = vsel %vm443, %v947, 0
        %954 = vmatprep.subr.bf16.mxu0 0
        %955 = vmatpush1.bf16.msra.mxu0 %v952
        %956 = vmatprep.subr.bf16.mxu0 0
        %957 = vmatpush1.bf16.msra.mxu0 0
        %958 = vmatprep.subr.bf16.mxu0 0
        %959 = vmatpush1.bf16.msra.mxu0 0
        %960 = vmatprep.subr.bf16.mxu0 0
        %961 = vmatpush1.bf16.msra.mxu0 0
        %962 = vmatprep.subr.bf16.mxu0 0
        %963 = vmatpush1.bf16.msra.mxu0 0
        %964 = vmatprep.subr.bf16.mxu0 0
        %965 = vmatpush1.bf16.msra.mxu0 0
        %966 = vmatprep.subr.bf16.mxu0 0
        %967 = vmatpush1.bf16.msra.mxu0 0
        %968 = vmatprep.subr.bf16.mxu0 0
        %969 = vmatpush1.bf16.msra.mxu0 0
        %970 = vmatprep.subr.bf16.mxu0 0
        %971 = vmatpush1.bf16.msra.mxu0 0
        %972 = vmatprep.subr.bf16.mxu0 0
        %973 = vmatpush1.bf16.msra.mxu0 0
        %974 = vmatprep.subr.bf16.mxu0 0
        %975 = vmatpush1.bf16.msra.mxu0 0
        %976 = vmatprep.subr.bf16.mxu0 0
        %977 = vmatpush1.bf16.msra.mxu0 0
        %978 = vmatprep.subr.bf16.mxu0 0
        %979 = vmatpush1.bf16.msra.mxu0 0
        %980 = vmatprep.subr.bf16.mxu0 0
        %981 = vmatpush1.bf16.msra.mxu0 0
        %982 = vmatprep.subr.bf16.mxu0 0
        %983 = vmatpush1.bf16.msra.mxu0 0
        %984 = vmatprep.subr.bf16.mxu0 0
        %985 = vmatpush1.bf16.msra.mxu0 0
        %986 = vmatprep.mubr.bf16.mxu0 0
        %987 = vmatmul.mubr.bf16.gmra.mrb[0].mxu0 %v949
        %v988 = vpop.f32.mrb[0].mxu0
        %v989 = vadd.f32 0.0, %v988
        %v990 = vpop.f32.mrb[0].mxu0
        %v991 = vpop.f32.mrb[0].mxu0
        %v992 = vpop.f32.mrb[0].mxu0
        %993 = vdwg.mxu0
        %v994 = vpack.c.bf16 %v845, %v845
        %v995 = vpack.c.bf16 %v893, %v893
        %v996 = vpack.c.bf16 %v941, %v941
        %v997 = vpack.c.bf16 %v989, %v989
        %v998 = vld [vmem:[%s5] sm:$0xf]
        %v999 = vld [vmem:[%s5 + $0x4] sm:$0xf]
        %v1000 = vld [vmem:[%s5 + $0x8] sm:$0xf]
        %v1001 = vld [vmem:[%s5 + $0xc] sm:$0xf]
        %v1003 = vsel %vm560, %v994, 0
        %v1006 = vsel %vm443, %v998, 0
        %1008 = vmatprep.subr.bf16.mxu0 0
        %1009 = vmatpush1.bf16.msra.mxu0 %v1006
        %1010 = vmatprep.subr.bf16.mxu0 0
        %1011 = vmatpush1.bf16.msra.mxu0 0
        %1012 = vmatprep.subr.bf16.mxu0 0
        %1013 = vmatpush1.bf16.msra.mxu0 0
        %1014 = vmatprep.subr.bf16.mxu0 0
        %1015 = vmatpush1.bf16.msra.mxu0 0
        %1016 = vmatprep.subr.bf16.mxu0 0
        %1017 = vmatpush1.bf16.msra.mxu0 0
        %1018 = vmatprep.subr.bf16.mxu0 0
        %1019 = vmatpush1.bf16.msra.mxu0 0
        %1020 = vmatprep.subr.bf16.mxu0 0
        %1021 = vmatpush1.bf16.msra.mxu0 0
        %1022 = vmatprep.subr.bf16.mxu0 0
        %1023 = vmatpush1.bf16.msra.mxu0 0
        %1024 = vmatprep.subr.bf16.mxu0 0
        %1025 = vmatpush1.bf16.msra.mxu0 0
        %1026 = vmatprep.subr.bf16.mxu0 0
        %1027 = vmatpush1.bf16.msra.mxu0 0
        %1028 = vmatprep.subr.bf16.mxu0 0
        %1029 = vmatpush1.bf16.msra.mxu0 0
        %1030 = vmatprep.subr.bf16.mxu0 0
        %1031 = vmatpush1.bf16.msra.mxu0 0
        %1032 = vmatprep.subr.bf16.mxu0 0
        %1033 = vmatpush1.bf16.msra.mxu0 0
        %1034 = vmatprep.subr.bf16.mxu0 0
        %1035 = vmatpush1.bf16.msra.mxu0 0
        %1036 = vmatprep.subr.bf16.mxu0 0
        %1037 = vmatpush1.bf16.msra.mxu0 0
        %1038 = vmatprep.subr.bf16.mxu0 0
        %1039 = vmatpush1.bf16.msra.mxu0 0
        %1040 = vmatprep.mubr.bf16.mxu0 0
        %1041 = vmatmul.mubr.bf16.gmra.mrb[0].mxu0 %v1003
        %v1042 = vpop.f32.mrb[0].mxu0
        %v1043 = vadd.f32 0.0, %v1042
        %v1044 = vpop.f32.mrb[0].mxu0
        %v1045 = vpop.f32.mrb[0].mxu0
        %v1046 = vpop.f32.mrb[0].mxu0
        %1047 = vdwg.mxu0
        %v1049 = vsel %vm560, %v995, 0
        %v1052 = vsel %vm443, %v999, 0
        %1054 = vmatprep.subr.bf16.mxu0 0
        %1055 = vmatpush1.bf16.msra.mxu0 %v1052
        %1056 = vmatprep.subr.bf16.mxu0 0
        %1057 = vmatpush1.bf16.msra.mxu0 0
        %1058 = vmatprep.subr.bf16.mxu0 0
        %1059 = vmatpush1.bf16.msra.mxu0 0
        %1060 = vmatprep.subr.bf16.mxu0 0
        %1061 = vmatpush1.bf16.msra.mxu0 0
        %1062 = vmatprep.subr.bf16.mxu0 0
        %1063 = vmatpush1.bf16.msra.mxu0 0
        %1064 = vmatprep.subr.bf16.mxu0 0
        %1065 = vmatpush1.bf16.msra.mxu0 0
        %1066 = vmatprep.subr.bf16.mxu0 0
        %1067 = vmatpush1.bf16.msra.mxu0 0
        %1068 = vmatprep.subr.bf16.mxu0 0
        %1069 = vmatpush1.bf16.msra.mxu0 0
        %1070 = vmatprep.subr.bf16.mxu0 0
        %1071 = vmatpush1.bf16.msra.mxu0 0
        %1072 = vmatprep.subr.bf16.mxu0 0
        %1073 = vmatpush1.bf16.msra.mxu0 0
        %1074 = vmatprep.subr.bf16.mxu0 0
        %1075 = vmatpush1.bf16.msra.mxu0 0
        %1076 = vmatprep.subr.bf16.mxu0 0
        %1077 = vmatpush1.bf16.msra.mxu0 0
        %1078 = vmatprep.subr.bf16.mxu0 0
        %1079 = vmatpush1.bf16.msra.mxu0 0
        %1080 = vmatprep.subr.bf16.mxu0 0
        %1081 = vmatpush1.bf16.msra.mxu0 0
        %1082 = vmatprep.subr.bf16.mxu0 0
        %1083 = vmatpush1.bf16.msra.mxu0 0
        %1084 = vmatprep.subr.bf16.mxu0 0
        %1085 = vmatpush1.bf16.msra.mxu0 0
        %1086 = vmatprep.mubr.bf16.mxu0 0
        %1087 = vmatmul.mubr.bf16.gmra.mrb[0].mxu0 %v1049
        %v1088 = vpop.f32.mrb[0].mxu0
        %v1089 = vadd.f32 0.0, %v1088
        %v1090 = vpop.f32.mrb[0].mxu0
        %v1091 = vpop.f32.mrb[0].mxu0
        %v1092 = vpop.f32.mrb[0].mxu0
        %1093 = vdwg.mxu0
        %v1095 = vsel %vm560, %v996, 0
        %v1098 = vsel %vm443, %v1000, 0
        %1100 = vmatprep.subr.bf16.mxu0 0
        %1101 = vmatpush1.bf16.msra.mxu0 %v1098
        %1102 = vmatprep.subr.bf16.mxu0 0
        %1103 = vmatpush1.bf16.msra.mxu0 0
        %1104 = vmatprep.subr.bf16.mxu0 0
        %1105 = vmatpush1.bf16.msra.mxu0 0
        %1106 = vmatprep.subr.bf16.mxu0 0
        %1107 = vmatpush1.bf16.msra.mxu0 0
        %1108 = vmatprep.subr.bf16.mxu0 0
        %1109 = vmatpush1.bf16.msra.mxu0 0
        %1110 = vmatprep.subr.bf16.mxu0 0
        %1111 = vmatpush1.bf16.msra.mxu0 0
        %1112 = vmatprep.subr.bf16.mxu0 0
        %1113 = vmatpush1.bf16.msra.mxu0 0
        %1114 = vmatprep.subr.bf16.mxu0 0
        %1115 = vmatpush1.bf16.msra.mxu0 0
        %1116 = vmatprep.subr.bf16.mxu0 0
        %1117 = vmatpush1.bf16.msra.mxu0 0
        %1118 = vmatprep.subr.bf16.mxu0 0
        %1119 = vmatpush1.bf16.msra.mxu0 0
        %1120 = vmatprep.subr.bf16.mxu0 0
        %1121 = vmatpush1.bf16.msra.mxu0 0
        %1122 = vmatprep.subr.bf16.mxu0 0
        %1123 = vmatpush1.bf16.msra.mxu0 0
        %1124 = vmatprep.subr.bf16.mxu0 0
        %1125 = vmatpush1.bf16.msra.mxu0 0
        %1126 = vmatprep.subr.bf16.mxu0 0
        %1127 = vmatpush1.bf16.msra.mxu0 0
        %1128 = vmatprep.subr.bf16.mxu0 0
        %1129 = vmatpush1.bf16.msra.mxu0 0
        %1130 = vmatprep.subr.bf16.mxu0 0
        %1131 = vmatpush1.bf16.msra.mxu0 0
        %1132 = vmatprep.mubr.bf16.mxu0 0
        %1133 = vmatmul.mubr.bf16.gmra.mrb[0].mxu0 %v1095
        %v1134 = vpop.f32.mrb[0].mxu0
        %v1135 = vadd.f32 0.0, %v1134
        %v1136 = vpop.f32.mrb[0].mxu0
        %v1137 = vpop.f32.mrb[0].mxu0
        %v1138 = vpop.f32.mrb[0].mxu0
        %1139 = vdwg.mxu0
        %v1141 = vsel %vm560, %v997, 0
        %v1144 = vsel %vm443, %v1001, 0
        %1146 = vmatprep.subr.bf16.mxu0 0
        %1147 = vmatpush1.bf16.msra.mxu0 %v1144
        %1148 = vmatprep.subr.bf16.mxu0 0
        %1149 = vmatpush1.bf16.msra.mxu0 0
        %1150 = vmatprep.subr.bf16.mxu0 0
        %1151 = vmatpush1.bf16.msra.mxu0 0
        %1152 = vmatprep.subr.bf16.mxu0 0
        %1153 = vmatpush1.bf16.msra.mxu0 0
        %1154 = vmatprep.subr.bf16.mxu0 0
        %1155 = vmatpush1.bf16.msra.mxu0 0
        %1156 = vmatprep.subr.bf16.mxu0 0
        %1157 = vmatpush1.bf16.msra.mxu0 0
        %1158 = vmatprep.subr.bf16.mxu0 0
        %1159 = vmatpush1.bf16.msra.mxu0 0
        %1160 = vmatprep.subr.bf16.mxu0 0
        %1161 = vmatpush1.bf16.msra.mxu0 0
        %1162 = vmatprep.subr.bf16.mxu0 0
        %1163 = vmatpush1.bf16.msra.mxu0 0
        %1164 = vmatprep.subr.bf16.mxu0 0
        %1165 = vmatpush1.bf16.msra.mxu0 0
        %1166 = vmatprep.subr.bf16.mxu0 0
        %1167 = vmatpush1.bf16.msra.mxu0 0
        %1168 = vmatprep.subr.bf16.mxu0 0
        %1169 = vmatpush1.bf16.msra.mxu0 0
        %1170 = vmatprep.subr.bf16.mxu0 0
        %1171 = vmatpush1.bf16.msra.mxu0 0
        %1172 = vmatprep.subr.bf16.mxu0 0
        %1173 = vmatpush1.bf16.msra.mxu0 0
        %1174 = vmatprep.subr.bf16.mxu0 0
        %1175 = vmatpush1.bf16.msra.mxu0 0
        %1176 = vmatprep.subr.bf16.mxu0 0
        %1177 = vmatpush1.bf16.msra.mxu0 0
        %1178 = vmatprep.mubr.bf16.mxu0 0
        %1179 = vmatmul.mubr.bf16.gmra.mrb[0].mxu0 %v1141
        %v1180 = vpop.f32.mrb[0].mxu0
        %v1181 = vadd.f32 0.0, %v1180
        %v1182 = vpop.f32.mrb[0].mxu0
        %v1183 = vpop.f32.mrb[0].mxu0
        %v1184 = vpop.f32.mrb[0].mxu0
        %1185 = vdwg.mxu0
        %v1186 = vsel %vm452, %v1043, 0.0
        %v1187 = vsel %vm452, %v1089, 0.0
        %v1188 = vadd.f32 %v1186, %v1187
        %v1189 = vsel %vm452, %v1135, 0.0
        %v1190 = vadd.f32 %v1188, %v1189
        %v1191 = vsel %vm452, %v1181, 0.0
        %v1192 = vadd.f32 %v1190, %v1191
        %v1193 = vadd.f32 %v450, %v1192
        %v1194 = vmul.f32 %v1193, %v1193
        %v1195 = vsel %vm452, %v1194, 0.0
        %1196 = vadd.xlane.f32.xlu0 %v1195
        %v1197 = vpop.xlane.xlu0 %1196
        %v1198 = vadd.f32 %v1197, 1e-05
        %v1199 = vrsqrt.pop %v1198
        %v1200 = vmul.f32 %v1193, %v1199
        %v1201 = vld [vmem:[%s3] sm:$0x1]
        %v1203 = vlaneseq
        %v1204 = vshrl.u32 %v1203, 7
        %v1205 = vsub.s32 0, %v1204
        %v1206 = vrot.slane %v1201, %v1205
        %v1208 = vmul.f32 %v1200, %v1206
        %v1209 = vpack.c.bf16 %v1208, %v1208
        %v1210 = vld [vmem:[%s6] sm:$0xf]
        %v1211 = vld [vmem:[%s6 + $0x4] sm:$0xf]
        %v1212 = vld [vmem:[%s6 + $0x8] sm:$0xf]
        %v1213 = vld [vmem:[%s6 + $0xc] sm:$0xf]
        %v1214 = vld [vmem:[%s8] sm:$0x1]
        %v1216 = vlaneseq
        %v1217 = vshrl.u32 %v1216, 7
        %v1218 = vsub.s32 0, %v1217
        %v1219 = vrot.slane %v1214, %v1218
        %v1225 = vunpack.c.l.b16 %v1210
        %v1226 = vunpack.c.l.b16 %v1211
        %v1227 = vunpack.c.l.b16 %v1212
        %v1228 = vunpack.c.l.b16 %v1213
        %v1229 = vpack.c.b16 %v1226, %v1225
        %v1230 = vpack.c.b16 %v1228, %v1227
        %v1234 = vsel %vm452, %v1209, 0
        %1236 = vmatprep.subr.bf16.mxu0 0
        %1237 = vmatpush1.bf16.msra.mxu0 %v1229
        %1238 = vmatprep.subr.bf16.mxu0 0
        %1239 = vmatpush1.bf16.msra.mxu0 %v1230
        %1240 = vmatprep.subr.bf16.mxu0 0
        %1241 = vmatpush1.bf16.msra.mxu0 0
        %1242 = vmatprep.subr.bf16.mxu0 0
        %1243 = vmatpush1.bf16.msra.mxu0 0
        %1244 = vmatprep.subr.bf16.mxu0 0
        %1245 = vmatpush1.bf16.msra.mxu0 0
        %1246 = vmatprep.subr.bf16.mxu0 0
        %1247 = vmatpush1.bf16.msra.mxu0 0
        %1248 = vmatprep.subr.bf16.mxu0 0
        %1249 = vmatpush1.bf16.msra.mxu0 0
        %1250 = vmatprep.subr.bf16.mxu0 0
        %1251 = vmatpush1.bf16.msra.mxu0 0
        %1252 = vmatprep.subr.bf16.mxu0 0
        %1253 = vmatpush1.bf16.msra.mxu0 0
        %1254 = vmatprep.subr.bf16.mxu0 0
        %1255 = vmatpush1.bf16.msra.mxu0 0
        %1256 = vmatprep.subr.bf16.mxu0 0
        %1257 = vmatpush1.bf16.msra.mxu0 0
        %1258 = vmatprep.subr.bf16.mxu0 0
        %1259 = vmatpush1.bf16.msra.mxu0 0
        %1260 = vmatprep.subr.bf16.mxu0 0
        %1261 = vmatpush1.bf16.msra.mxu0 0
        %1262 = vmatprep.subr.bf16.mxu0 0
        %1263 = vmatpush1.bf16.msra.mxu0 0
        %1264 = vmatprep.subr.bf16.mxu0 0
        %1265 = vmatpush1.bf16.msra.mxu0 0
        %1266 = vmatprep.subr.bf16.mxu0 0
        %1267 = vmatpush1.bf16.msra.mxu0 0
        %1268 = vmatprep.mubr.bf16.mxu0 0
        %1269 = vmatmul.mubr.bf16.gmra.mrb[0].mxu0 %v1234
        %v1270 = vpop.f32.mrb[0].mxu0
        %v1271 = vadd.f32 %v1219, %v1270
        %v1272 = vpop.f32.mrb[0].mxu0
        %v1273 = vpop.f32.mrb[0].mxu0
        %v1274 = vpop.f32.mrb[0].mxu0
        %1275 = vdwg.mxu0
        %v1276 = vld [vmem:[%s7] sm:$0xf]
        %v1277 = vld [vmem:[%s7 + $0x4] sm:$0xf]
        %v1278 = vld [vmem:[%s7 + $0x8] sm:$0xf]
        %v1279 = vld [vmem:[%s7 + $0xc] sm:$0xf]
        %v1280 = vld [vmem:[%s9] sm:$0x1]
        %v1282 = vlaneseq
        %v1283 = vshrl.u32 %v1282, 7
        %v1284 = vsub.s32 0, %v1283
        %v1285 = vrot.slane %v1280, %v1284
        %v1291 = vunpack.c.l.b16 %v1276
        %v1292 = vunpack.c.l.b16 %v1277
        %v1293 = vunpack.c.l.b16 %v1278
        %v1294 = vunpack.c.l.b16 %v1279
        %v1295 = vpack.c.b16 %v1292, %v1291
        %v1296 = vpack.c.b16 %v1294, %v1293
        %1299 = vmatprep.subr.bf16.mxu0 0
        %1300 = vmatpush1.bf16.msra.mxu0 %v1295
        %1301 = vmatprep.subr.bf16.mxu0 0
        %1302 = vmatpush1.bf16.msra.mxu0 %v1296
        %1303 = vmatprep.subr.bf16.mxu0 0
        %1304 = vmatpush1.bf16.msra.mxu0 0
        %1305 = vmatprep.subr.bf16.mxu0 0
        %1306 = vmatpush1.bf16.msra.mxu0 0
        %1307 = vmatprep.subr.bf16.mxu0 0
        %1308 = vmatpush1.bf16.msra.mxu0 0
        %1309 = vmatprep.subr.bf16.mxu0 0
        %1310 = vmatpush1.bf16.msra.mxu0 0
        %1311 = vmatprep.subr.bf16.mxu0 0
        %1312 = vmatpush1.bf16.msra.mxu0 0
        %1313 = vmatprep.subr.bf16.mxu0 0
        %1314 = vmatpush1.bf16.msra.mxu0 0
        %1315 = vmatprep.subr.bf16.mxu0 0
        %1316 = vmatpush1.bf16.msra.mxu0 0
        %1317 = vmatprep.subr.bf16.mxu0 0
        %1318 = vmatpush1.bf16.msra.mxu0 0
        %1319 = vmatprep.subr.bf16.mxu0 0
        %1320 = vmatpush1.bf16.msra.mxu0 0
        %1321 = vmatprep.subr.bf16.mxu0 0
        %1322 = vmatpush1.bf16.msra.mxu0 0
        %1323 = vmatprep.subr.bf16.mxu0 0
        %1324 = vmatpush1.bf16.msra.mxu0 0
        %1325 = vmatprep.subr.bf16.mxu0 0
        %1326 = vmatpush1.bf16.msra.mxu0 0
        %1327 = vmatprep.subr.bf16.mxu0 0
        %1328 = vmatpush1.bf16.msra.mxu0 0
        %1329 = vmatprep.subr.bf16.mxu0 0
        %1330 = vmatpush1.bf16.msra.mxu0 0
        %1331 = vmatprep.mubr.bf16.mxu0 0
        %1332 = vmatmul.mubr.bf16.gmra.mrb[0].mxu0 %v1234
        %v1333 = vpop.f32.mrb[0].mxu0
        %v1334 = vadd.f32 %v1285, %v1333
        %v1335 = vpop.f32.mrb[0].mxu0
        %v1336 = vpop.f32.mrb[0].mxu0
        %v1337 = vpop.f32.mrb[0].mxu0
        %1338 = vdwg.mxu0
        %v1339 = vmax.f32 %v1334, 0.0
        %v1340 = vmul.f32 %v1271, %v1339
        %v1341 = vpack.c.bf16 %v1340, %v1340
        %v1342 = vld [vmem:[%s10] sm:$0xf]
        %v1343 = vld [vmem:[%s10 + $0x4] sm:$0xf]
        %v1344 = vld [vmem:[%s10 + $0x8] sm:$0xf]
        %v1345 = vld [vmem:[%s10 + $0xc] sm:$0xf]
        %v1346 = vld [vmem:[%s10 + $0x10] sm:$0xf]
        %v1347 = vld [vmem:[%s10 + $0x14] sm:$0xf]
        %v1348 = vld [vmem:[%s10 + $0x18] sm:$0xf]
        %v1349 = vld [vmem:[%s10 + $0x1c] sm:$0xf]
        %v1350 = vld [vmem:[%s10 + $0x20] sm:$0xf]
        %v1351 = vld [vmem:[%s10 + $0x24] sm:$0xf]
        %v1352 = vld [vmem:[%s10 + $0x28] sm:$0xf]
        %v1353 = vld [vmem:[%s10 + $0x2c] sm:$0xf]
        %v1354 = vld [vmem:[%s10 + $0x30] sm:$0xf]
        %v1355 = vld [vmem:[%s10 + $0x34] sm:$0xf]
        %v1356 = vld [vmem:[%s10 + $0x38] sm:$0xf]
        %v1357 = vld [vmem:[%s10 + $0x3c] sm:$0xf]
        %v1358 = vld [vmem:[%s11] sm:$0x1]
        %v1360 = vlaneseq
        %v1361 = vshrl.u32 %v1360, 7
        %v1362 = vsub.s32 0, %v1361
        %v1363 = vrot.slane %v1358, %v1362
        %v1381 = vunpack.c.l.b16 %v1342
        %v1382 = vunpack.c.l.b16 %v1343
        %v1383 = vunpack.c.l.b16 %v1344
        %v1384 = vunpack.c.l.b16 %v1345
        %v1385 = vunpack.c.l.b16 %v1346
        %v1386 = vunpack.c.l.b16 %v1347
        %v1387 = vunpack.c.l.b16 %v1348
        %v1388 = vunpack.c.l.b16 %v1349
        %v1389 = vunpack.c.l.b16 %v1350
        %v1390 = vunpack.c.l.b16 %v1351
        %v1391 = vunpack.c.l.b16 %v1352
        %v1392 = vunpack.c.l.b16 %v1353
        %v1393 = vunpack.c.l.b16 %v1354
        %v1394 = vunpack.c.l.b16 %v1355
        %v1395 = vunpack.c.l.b16 %v1356
        %v1396 = vunpack.c.l.b16 %v1357
        %v1397 = vpack.c.b16 %v1382, %v1381
        %v1398 = vpack.c.b16 %v1384, %v1383
        %v1399 = vpack.c.b16 %v1386, %v1385
        %v1400 = vpack.c.b16 %v1388, %v1387
        %v1401 = vpack.c.b16 %v1390, %v1389
        %v1402 = vpack.c.b16 %v1392, %v1391
        %v1403 = vpack.c.b16 %v1394, %v1393
        %v1404 = vpack.c.b16 %v1396, %v1395
        %1413 = vmatprep.subr.bf16.mxu0 0
        %1414 = vmatpush1.bf16.msra.mxu0 %v1397
        %1415 = vmatprep.subr.bf16.mxu0 0
        %1416 = vmatpush1.bf16.msra.mxu0 %v1398
        %1417 = vmatprep.subr.bf16.mxu0 0
        %1418 = vmatpush1.bf16.msra.mxu0 %v1399
        %1419 = vmatprep.subr.bf16.mxu0 0
        %1420 = vmatpush1.bf16.msra.mxu0 %v1400
        %1421 = vmatprep.subr.bf16.mxu0 0
        %1422 = vmatpush1.bf16.msra.mxu0 %v1401
        %1423 = vmatprep.subr.bf16.mxu0 0
        %1424 = vmatpush1.bf16.msra.mxu0 %v1402
        %1425 = vmatprep.subr.bf16.mxu0 0
        %1426 = vmatpush1.bf16.msra.mxu0 %v1403
        %1427 = vmatprep.subr.bf16.mxu0 0
        %1428 = vmatpush1.bf16.msra.mxu0 %v1404
        %1429 = vmatprep.subr.bf16.mxu0 0
        %1430 = vmatpush1.bf16.msra.mxu0 0
        %1431 = vmatprep.subr.bf16.mxu0 0
        %1432 = vmatpush1.bf16.msra.mxu0 0
        %1433 = vmatprep.subr.bf16.mxu0 0
        %1434 = vmatpush1.bf16.msra.mxu0 0
        %1435 = vmatprep.subr.bf16.mxu0 0
        %1436 = vmatpush1.bf16.msra.mxu0 0
        %1437 = vmatprep.subr.bf16.mxu0 0
        %1438 = vmatpush1.bf16.msra.mxu0 0
        %1439 = vmatprep.subr.bf16.mxu0 0
        %1440 = vmatpush1.bf16.msra.mxu0 0
        %1441 = vmatprep.subr.bf16.mxu0 0
        %1442 = vmatpush1.bf16.msra.mxu0 0
        %1443 = vmatprep.subr.bf16.mxu0 0
        %1444 = vmatpush1.bf16.msra.mxu0 0
        %1445 = vmatprep.mubr.bf16.mxu0 0
        %1446 = vmatmul.mubr.bf16.gmra.mrb[0].mxu0 %v1341
        %v1447 = vpop.f32.mrb[0].mxu0
        %v1448 = vadd.f32 %v1363, %v1447
        %v1449 = vpop.f32.mrb[0].mxu0
        %v1450 = vpop.f32.mrb[0].mxu0
        %v1451 = vpop.f32.mrb[0].mxu0
        %1452 = vdwg.mxu0
        %v1453 = vadd.f32 %v1193, %v1448
        %v1455 = vrot.slane %v1453, 1
        %1456 = vrot.lane.b32.xlu0 %v1455, 32
        %v1457 = vpop.permute.xlu0 %1456
        %v1459 = vrot.slane %v1453, 2
        %1460 = vrot.lane.b32.xlu0 %v1459, 64
        %v1461 = vpop.permute.xlu0 %1460
        %v1463 = vrot.slane %v1453, 3
        %1464 = vrot.lane.b32.xlu0 %v1463, 96
        %v1465 = vpop.permute.xlu0 %1464
        %v1467 = vsel %vm452, %v1453, %v1457
        %vm1468 = vcmask 523264
        %v1469 = vsel %vm1468, %v1467, %v1461
        %vm1470 = vcmask 785408
        %v1471 = vsel %vm1470, %v1469, %v1465
        %v1473 = vrot.slane %v1471, 3
        %v1475 = vsel %vm437, %v1471, %v1473
        %1476 = vst [vmem:[%s404] sm:$0x3] %v1475
        %s1477 = sand.u32 %s291, 1
        %s1478 = scalar_lea.sflag [#allocation3], %s1477
        %s1479 = sand.u32 %s291, 1
        %s1480 = smul.addr %s1479, 2
        %s1481 = scalar_lea.vmem [#allocation2], %s1480
        // Predicated region
        $region69: #{tpu_custom_call.1} parent=67 // pred_check
          %p1482 = pneg %p301
        $region70: #{tpu_custom_call.1} parent=67 // pred_check_branch
          %1484 = sbr.rel (%p1482) target = $region72
        $region71: #{tpu_custom_call.1} parent=67 // pred_region
          %s1486 = ssub.s32 32, 32
          %1487 = vsyncadd %s1478, %s1486
          %s1488 = smul.addr %s26, 32
          %s1489 = scalar_lea.hbm %s12, %s1488
          %s1491 = sshll.u32 %s1481, 4
          %s1492 = int_to_ptr.vmem [resolvable:$true] %s1491
          %1494 = dma.vmem_to_hbm [thread:$0]  %s1492, 32, %s1489, %s1478
        $region72: #{tpu_custom_call.1} parent=67 // pred_fallthru
          _
      $region68: #{tpu_custom_call.1} parent=5 // pred_fallthru
        _
      %p1495 = scmp.le.s32.totalorder 2, %s21
      // Predicated region
      $region73: #{tpu_custom_call.1} parent=5 // pred_check
        %p1496 = pneg %p1495
      $region74: #{tpu_custom_call.1} parent=5 // pred_check_branch
        %1498 = sbr.rel (%p1496) target = $region76
      $region75: #{tpu_custom_call.1} parent=5 // pred_region
        %s1499 = ssub.s32 %s21, 2
        // Predicated region
        $region77: #{tpu_custom_call.1} parent=75 // pred_check
          %p1500 = pneg %p307
        $region78: #{tpu_custom_call.1} parent=75 // pred_check_branch
          %1502 = sbr.rel (%p1500) target = $region80
        $region79: #{tpu_custom_call.1} parent=75 // pred_region
          %s1503 = sand.u32 %s292, 1
          %s1504 = scalar_lea.sflag [#allocation3], %s1503
          %s1505 = sand.u32 %s292, 1
          %s1506 = smul.addr %s1505, 2
          %s1507 = scalar_lea.vmem [#allocation2], %s1506
          %1508 = dma.done %s1504, 32
        $region80: #{tpu_custom_call.1} parent=75 // pred_fallthru
          _
      $region76: #{tpu_custom_call.1} parent=5 // pred_fallthru
        _
    $region6: #{tpu_custom_call.1} parent=1 // loop_footer
      %s25 = sadd.s32 1, %s21
    $region7: #{tpu_custom_call.1} parent=1 // loop_footer_branch
      %20 = sbr.rel target = $region3
    $region8: #{tpu_custom_call.1} parent=1 // loop_exit
      _
    %1509 = vsyncpa [#allocation3], 1
    %s1510 = scalar_lea.sflag [#allocation3], 1
    %1511 = vsyncpa %s1510, 1

// kernel: tpu_custom_call.1
$region0: #{tpu_custom_call.1}
  #allocation0 [shape = 'u32[]', space=smem, size = 0x4, offset = 0x4, fixed_abs, tag = 'smem constant byte address 0x4 - core index']
  #allocation1 [shape = 'u32[144,128]{1,0:T(1,128)}', space=vmem, size = 0x12000, scoped, tag = 'internal scratch']
  %s0 = inlined_call_operand.vmem [shape: f32[2,2,128], index: 0, kind: input, shape index: {}]
  %s1 = inlined_call_operand.vmem [shape: f32[8,8], index: 1, kind: input, shape index: {}]
  %s2 = inlined_call_operand.vmem [shape: f32[1,32], index: 2, kind: input, shape index: {}]
  %s3 = inlined_call_operand.vmem [shape: f32[1,32], index: 3, kind: input, shape index: {}]
  %s4 = inlined_call_operand.vmem [shape: bf16[32,96], index: 4, kind: input, shape index: {}]
  %s5 = inlined_call_operand.vmem [shape: bf16[4,8,32], index: 5, kind: input, shape index: {}]
  %s6 = inlined_call_operand.vmem [shape: bf16[32,128], index: 6, kind: input, shape index: {}]
  %s7 = inlined_call_operand.vmem [shape: bf16[32,128], index: 7, kind: input, shape index: {}]
  %s8 = inlined_call_operand.vmem [shape: f32[1,128], index: 8, kind: input, shape index: {}]
  %s9 = inlined_call_operand.vmem [shape: f32[1,128], index: 9, kind: input, shape index: {}]
  %s10 = inlined_call_operand.vmem [shape: bf16[128,32], index: 10, kind: input, shape index: {}]
  %s11 = inlined_call_operand.vmem [shape: f32[1,32], index: 11, kind: input, shape index: {}]
  %s12 = inlined_call_operand.hbm [shape: f32[2,2,128], index: 12, kind: output, shape index: {}]
  %s13 = sld [smem:[#allocation0]]
  $region81: #{tpu_custom_call.1} parent=0
    _
  %s15 = ssub.s32 1, %s13
  %s16 = scalar_select 0, %s15, %s13
  $region1: #{tpu_custom_call.1} parent=0
    #allocation2 [shape = 'u8[2048]{0}', space=vmem, size = 0x800, scoped, tag = 'output window, operand 0']
    #allocation3 [shape = 's32[2]{0}', space=sflag, size = 0x8, scoped, tag = 'scoped memory for tpu_custom_call.1']
    %17 = vsyncpa [#allocation3], 0
    %s18 = scalar_lea.sflag [#allocation3], 1
    %19 = vsyncpa %s18, 0
    loop: start=0, step=1, limit=4
    $region2: #{tpu_custom_call.1} parent=1 // loop_pre_header
      _
    $region3: #{tpu_custom_call.1} parent=1 // loop_header
      %s21 = sphi 0, %s25
      %p22 = scmp.ge.s32.totalorder %s21, 4
      %s31 = sphi 0, %s33
      %s34 = sphi 0, %s31
      %s35 = sphi 0, %s34
      %s51 = sphi 0, %s35
      %s55 = sphi 0, %s55
      %s57 = sphi 0, %s55
      %s58 = sphi 0, %s57
      %s72 = sphi 0, %s58
      %s76 = sphi 0, %s76
      %s78 = sphi 0, %s76
      %s79 = sphi 0, %s78
      %s93 = sphi 0, %s79
      %s97 = sphi 0, %s97
      %s99 = sphi 0, %s97
      %s100 = sphi 0, %s99
      %s114 = sphi 0, %s100
      %s118 = sphi 0, %s118
      %s120 = sphi 0, %s118
      %s121 = sphi 0, %s120
      %s135 = sphi 0, %s121
      %s139 = sphi 0, %s139
      %s141 = sphi 0, %s139
      %s142 = sphi 0, %s141
      %s156 = sphi 0, %s142
      %s160 = sphi 0, %s160
      %s162 = sphi 0, %s160
      %s163 = sphi 0, %s162
      %s177 = sphi 0, %s163
      %s181 = sphi 0, %s181
      %s183 = sphi 0, %s181
      %s184 = sphi 0, %s183
      %s198 = sphi 0, %s184
      %s202 = sphi 0, %s202
      %s204 = sphi 0, %s202
      %s205 = sphi 0, %s204
      %s219 = sphi 0, %s205
      %s223 = sphi 0, %s223
      %s225 = sphi 0, %s223
      %s226 = sphi 0, %s225
      %s240 = sphi 0, %s226
      %s244 = sphi 0, %s244
      %s246 = sphi 0, %s244
      %s247 = sphi 0, %s246
      %s261 = sphi 0, %s247
      %s265 = sphi 0, %s265
      %s267 = sphi 0, %s265
      %s268 = sphi 0, %s267
      %s282 = sphi 0, %s268
      %s288 = sphi 0, %s290
      %s291 = sphi 0, %s288
      %s292 = sphi 0, %s291
      %s308 = sphi 0, %s292
    $region4: #{tpu_custom_call.1} parent=1 // loop_header_branch
      %24 = sbr.rel (%p22) target = $region8
    $region5: #{tpu_custom_call.1} parent=1 // loop_body
      %s26 = ssub.s32 %s21, 1
      %s27 = ssub.s32 %s21, 2
      %s28 = sadd.s32 %s21, 1
      %s29 = ssub.s32 %s21, %s28
      %p30 = scmp.eq.s32.totalorder %s29, 0
      %s32 = sadd.s32 %s31, 1
      %s33 = scalar_select %p30, %s31, %s32
      %p36 = pneg %p30
      %p37 = scmp.eq.s32.totalorder %s21, 1
      %p38 = por %p36, %p37
      %p39 = scmp.ne.s32.totalorder %s31, %s34
      %p40 = scmp.eq.s32.totalorder %s21, 0
      %p41 = por %p39, %p40
      %p42 = scmp.ne.s32.totalorder %s31, %s34
      %p43 = scmp.eq.s32.totalorder %s26, 1
      %p44 = por %p42, %p43
      %p45 = scmp.ne.s32.totalorder %s34, %s35
      %p46 = scmp.eq.s32.totalorder %s26, 0
      %p47 = por %p45, %p46
      %p48 = scmp.ne.s32.totalorder %s34, %s35
      %p49 = scmp.eq.s32.totalorder %s27, 1
      %p50 = por %p48, %p49
      %p52 = scmp.ne.s32.totalorder %s35, %s51
      %p53 = scmp.eq.s32.totalorder %s27, 0
      %p54 = por %p52, %p53
      %s56 = sadd.s32 %s55, 1
      %p59 = scmp.eq.s32.totalorder %s21, 1
      %p60 = scmp.ne.s32.totalorder %s55, %s57
      %p61 = scmp.eq.s32.totalorder %s21, 0
      %p62 = por %p60, %p61
      %p63 = scmp.ne.s32.totalorder %s55, %s57
      %p64 = scmp.eq.s32.totalorder %s26, 1
      %p65 = por %p63, %p64
      %p66 = scmp.ne.s32.totalorder %s57, %s58
      %p67 = scmp.eq.s32.totalorder %s26, 0
      %p68 = por %p66, %p67
      %p69 = scmp.ne.s32.totalorder %s57, %s58
      %p70 = scmp.eq.s32.totalorder %s27, 1
      %p71 = por %p69, %p70
      %p73 = scmp.ne.s32.totalorder %s58, %s72
      %p74 = scmp.eq.s32.totalorder %s27, 0
      %p75 = por %p73, %p74
      %s77 = sadd.s32 %s76, 1
      %p80 = scmp.eq.s32.totalorder %s21, 1
      %p81 = scmp.ne.s32.totalorder %s76, %s78
      %p82 = scmp.eq.s32.totalorder %s21, 0
      %p83 = por %p81, %p82
      %p84 = scmp.ne.s32.totalorder %s76, %s78
      %p85 = scmp.eq.s32.totalorder %s26, 1
      %p86 = por %p84, %p85
      %p87 = scmp.ne.s32.totalorder %s78, %s79
      %p88 = scmp.eq.s32.totalorder %s26, 0
      %p89 = por %p87, %p88
      %p90 = scmp.ne.s32.totalorder %s78, %s79
      %p91 = scmp.eq.s32.totalorder %s27, 1
      %p92 = por %p90, %p91
      %p94 = scmp.ne.s32.totalorder %s79, %s93
      %p95 = scmp.eq.s32.totalorder %s27, 0
      %p96 = por %p94, %p95
      %s98 = sadd.s32 %s97, 1
      %p101 = scmp.eq.s32.totalorder %s21, 1
      %p102 = scmp.ne.s32.totalorder %s97, %s99
      %p103 = scmp.eq.s32.totalorder %s21, 0
      %p104 = por %p102, %p103
      %p105 = scmp.ne.s32.totalorder %s97, %s99
      %p106 = scmp.eq.s32.totalorder %s26, 1
      %p107 = por %p105, %p106
      %p108 = scmp.ne.s32.totalorder %s99, %s100
      %p109 = scmp.eq.s32.totalorder %s26, 0
      %p110 = por %p108, %p109
      %p111 = scmp.ne.s32.totalorder %s99, %s100
      %p112 = scmp.eq.s32.totalorder %s27, 1
      %p113 = por %p111, %p112
      %p115 = scmp.ne.s32.totalorder %s100, %s114
      %p116 = scmp.eq.s32.totalorder %s27, 0
      %p117 = por %p115, %p116
      %s119 = sadd.s32 %s118, 1
      %p122 = scmp.eq.s32.totalorder %s21, 1
      %p123 = scmp.ne.s32.totalorder %s118, %s120
      %p124 = scmp.eq.s32.totalorder %s21, 0
      %p125 = por %p123, %p124
      %p126 = scmp.ne.s32.totalorder %s118, %s120
      %p127 = scmp.eq.s32.totalorder %s26, 1
      %p128 = por %p126, %p127
      %p129 = scmp.ne.s32.totalorder %s120, %s121
      %p130 = scmp.eq.s32.totalorder %s26, 0
      %p131 = por %p129, %p130
      %p132 = scmp.ne.s32.totalorder %s120, %s121
      %p133 = scmp.eq.s32.totalorder %s27, 1
      %p134 = por %p132, %p133
      %p136 = scmp.ne.s32.totalorder %s121, %s135
      %p137 = scmp.eq.s32.totalorder %s27, 0
      %p138 = por %p136, %p137
      %s140 = sadd.s32 %s139, 1
      %p143 = scmp.eq.s32.totalorder %s21, 1
      %p144 = scmp.ne.s32.totalorder %s139, %s141
      %p145 = scmp.eq.s32.totalorder %s21, 0
      %p146 = por %p144, %p145
      %p147 = scmp.ne.s32.totalorder %s139, %s141
      %p148 = scmp.eq.s32.totalorder %s26, 1
      %p149 = por %p147, %p148
      %p150 = scmp.ne.s32.totalorder %s141, %s142
      %p151 = scmp.eq.s32.totalorder %s26, 0
      %p152 = por %p150, %p151
      %p153 = scmp.ne.s32.totalorder %s141, %s142
      %p154 = scmp.eq.s32.totalorder %s27, 1
      %p155 = por %p153, %p154
      %p157 = scmp.ne.s32.totalorder %s142, %s156
      %p158 = scmp.eq.s32.totalorder %s27, 0
      %p159 = por %p157, %p158
      %s161 = sadd.s32 %s160, 1
      %p164 = scmp.eq.s32.totalorder %s21, 1
      %p165 = scmp.ne.s32.totalorder %s160, %s162
      %p166 = scmp.eq.s32.totalorder %s21, 0
      %p167 = por %p165, %p166
      %p168 = scmp.ne.s32.totalorder %s160, %s162
      %p169 = scmp.eq.s32.totalorder %s26, 1
      %p170 = por %p168, %p169
      %p171 = scmp.ne.s32.totalorder %s162, %s163
      %p172 = scmp.eq.s32.totalorder %s26, 0
      %p173 = por %p171, %p172
      %p174 = scmp.ne.s32.totalorder %s162, %s163
      %p175 = scmp.eq.s32.totalorder %s27, 1
      %p176 = por %p174, %p175
      %p178 = scmp.ne.s32.totalorder %s163, %s177
      %p179 = scmp.eq.s32.totalorder %s27, 0
      %p180 = por %p178, %p179
      %s182 = sadd.s32 %s181, 1
      %p185 = scmp.eq.s32.totalorder %s21, 1
      %p186 = scmp.ne.s32.totalorder %s181, %s183
      %p187 = scmp.eq.s32.totalorder %s21, 0
      %p188 = por %p186, %p187
      %p189 = scmp.ne.s32.totalorder %s181, %s183
      %p190 = scmp.eq.s32.totalorder %s26, 1
      %p191 = por %p189, %p190
      %p192 = scmp.ne.s32.totalorder %s183, %s184
      %p193 = scmp.eq.s32.totalorder %s26, 0
      %p194 = por %p192, %p193
      %p195 = scmp.ne.s32.totalorder %s183, %s184
      %p196 = scmp.eq.s32.totalorder %s27, 1
      %p197 = por %p195, %p196
      %p199 = scmp.ne.s32.totalorder %s184, %s198
      %p200 = scmp.eq.s32.totalorder %s27, 0
      %p201 = por %p199, %p200
      %s203 = sadd.s32 %s202, 1
      %p206 = scmp.eq.s32.totalorder %s21, 1
      %p207 = scmp.ne.s32.totalorder %s202, %s204
      %p208 = scmp.eq.s32.totalorder %s21, 0
      %p209 = por %p207, %p208
      %p210 = scmp.ne.s32.totalorder %s202, %s204
      %p211 = scmp.eq.s32.totalorder %s26, 1
      %p212 = por %p210, %p211
      %p213 = scmp.ne.s32.totalorder %s204, %s205
      %p214 = scmp.eq.s32.totalorder %s26, 0
      %p215 = por %p213, %p214
      %p216 = scmp.ne.s32.totalorder %s204, %s205
      %p217 = scmp.eq.s32.totalorder %s27, 1
      %p218 = por %p216, %p217
      %p220 = scmp.ne.s32.totalorder %s205, %s219
      %p221 = scmp.eq.s32.totalorder %s27, 0
      %p222 = por %p220, %p221
      %s224 = sadd.s32 %s223, 1
      %p227 = scmp.eq.s32.totalorder %s21, 1
      %p228 = scmp.ne.s32.totalorder %s223, %s225
      %p229 = scmp.eq.s32.totalorder %s21, 0
      %p230 = por %p228, %p229
      %p231 = scmp.ne.s32.totalorder %s223, %s225
      %p232 = scmp.eq.s32.totalorder %s26, 1
      %p233 = por %p231, %p232
      %p234 = scmp.ne.s32.totalorder %s225, %s226
      %p235 = scmp.eq.s32.totalorder %s26, 0
      %p236 = por %p234, %p235
      %p237 = scmp.ne.s32.totalorder %s225, %s226
      %p238 = scmp.eq.s32.totalorder %s27, 1
      %p239 = por %p237, %p238
      %p241 = scmp.ne.s32.totalorder %s226, %s240
      %p242 = scmp.eq.s32.totalorder %s27, 0
      %p243 = por %p241, %p242
      %s245 = sadd.s32 %s244, 1
      %p248 = scmp.eq.s32.totalorder %s21, 1
      %p249 = scmp.ne.s32.totalorder %s244, %s246
      %p250 = scmp.eq.s32.totalorder %s21, 0
      %p251 = por %p249, %p250
      %p252 = scmp.ne.s32.totalorder %s244, %s246
      %p253 = scmp.eq.s32.totalorder %s26, 1
      %p254 = por %p252, %p253
      %p255 = scmp.ne.s32.totalorder %s246, %s247
      %p256 = scmp.eq.s32.totalorder %s26, 0
      %p257 = por %p255, %p256
      %p258 = scmp.ne.s32.totalorder %s246, %s247
      %p259 = scmp.eq.s32.totalorder %s27, 1
      %p260 = por %p258, %p259
      %p262 = scmp.ne.s32.totalorder %s247, %s261
      %p263 = scmp.eq.s32.totalorder %s27, 0
      %p264 = por %p262, %p263
      %s266 = sadd.s32 %s265, 1
      %p269 = scmp.eq.s32.totalorder %s21, 1
      %p270 = scmp.ne.s32.totalorder %s265, %s267
      %p271 = scmp.eq.s32.totalorder %s21, 0
      %p272 = por %p270, %p271
      %p273 = scmp.ne.s32.totalorder %s265, %s267
      %p274 = scmp.eq.s32.totalorder %s26, 1
      %p275 = por %p273, %p274
      %p276 = scmp.ne.s32.totalorder %s267, %s268
      %p277 = scmp.eq.s32.totalorder %s26, 0
      %p278 = por %p276, %p277
      %p279 = scmp.ne.s32.totalorder %s267, %s268
      %p280 = scmp.eq.s32.totalorder %s27, 1
      %p281 = por %p279, %p280
      %p283 = scmp.ne.s32.totalorder %s268, %s282
      %p284 = scmp.eq.s32.totalorder %s27, 0
      %p285 = por %p283, %p284
      %s286 = ssub.s32 %s21, %s28
      %p287 = scmp.eq.s32.totalorder %s286, 0
      %s289 = sadd.s32 %s288, 1
      %s290 = scalar_select %p287, %s288, %s289
      %p293 = pneg %p287
      %p294 = scmp.eq.s32.totalorder %s21, 1
      %p295 = por %p293, %p294
      %p296 = scmp.ne.s32.totalorder %s288, %s291
      %p297 = scmp.eq.s32.totalorder %s21, 0
      %p298 = por %p296, %p297
      %p299 = scmp.ne.s32.totalorder %s288, %s291
      %p300 = scmp.eq.s32.totalorder %s26, 1
      %p301 = por %p299, %p300
      %p302 = scmp.ne.s32.totalorder %s291, %s292
      %p303 = scmp.eq.s32.totalorder %s26, 0
      %p304 = por %p302, %p303
      %p305 = scmp.ne.s32.totalorder %s291, %s292
      %p306 = scmp.eq.s32.totalorder %s27, 1
      %p307 = por %p305, %p306
      %p309 = scmp.ne.s32.totalorder %s292, %s308
      %p310 = scmp.eq.s32.totalorder %s27, 0
      %p311 = por %p309, %p310
      %p312 = scmp.le.s32.totalorder 1, %s21
      %p313 = scmp.lt.s32.totalorder %s21, 3
      %p314 = pnand %p312, %p313
      %p315 = pneg %p314
      // Predicated region
      $region9: #{tpu_custom_call.1} parent=5 // pred_check
        _
      $region10: #{tpu_custom_call.1} parent=5 // pred_check_branch
        %317 = sbr.rel (%p314) target = $region12
      $region11: #{tpu_custom_call.1} parent=5 // pred_region
        %s318 = ssub.s32 %s21, 1
        // Predicated region
        $region13: #{tpu_custom_call.1} parent=11 // pred_check
          %p319 = pneg %p68
        $region14: #{tpu_custom_call.1} parent=11 // pred_check_branch
          %321 = sbr.rel (%p319) target = $region16
        $region15: #{tpu_custom_call.1} parent=11 // pred_region
          _
        $region16: #{tpu_custom_call.1} parent=11 // pred_fallthru
          _
        // Predicated region
        $region17: #{tpu_custom_call.1} parent=11 // pred_check
          %p322 = pneg %p89
        $region18: #{tpu_custom_call.1} parent=11 // pred_check_branch
          %324 = sbr.rel (%p322) target = $region20
        $region19: #{tpu_custom_call.1} parent=11 // pred_region
          _
        $region20: #{tpu_custom_call.1} parent=11 // pred_fallthru
          _
        // Predicated region
        $region21: #{tpu_custom_call.1} parent=11 // pred_check
          %p325 = pneg %p110
        $region22: #{tpu_custom_call.1} parent=11 // pred_check_branch
          %327 = sbr.rel (%p325) target = $region24
        $region23: #{tpu_custom_call.1} parent=11 // pred_region
          _
        $region24: #{tpu_custom_call.1} parent=11 // pred_fallthru
          _
        // Predicated region
        $region25: #{tpu_custom_call.1} parent=11 // pred_check
          %p328 = pneg %p131
        $region26: #{tpu_custom_call.1} parent=11 // pred_check_branch
          %330 = sbr.rel (%p328) target = $region28
        $region27: #{tpu_custom_call.1} parent=11 // pred_region
          _
        $region28: #{tpu_custom_call.1} parent=11 // pred_fallthru
          _
        // Predicated region
        $region29: #{tpu_custom_call.1} parent=11 // pred_check
          %p331 = pneg %p152
        $region30: #{tpu_custom_call.1} parent=11 // pred_check_branch
          %333 = sbr.rel (%p331) target = $region32
        $region31: #{tpu_custom_call.1} parent=11 // pred_region
          _
        $region32: #{tpu_custom_call.1} parent=11 // pred_fallthru
          _
        // Predicated region
        $region33: #{tpu_custom_call.1} parent=11 // pred_check
          %p334 = pneg %p173
        $region34: #{tpu_custom_call.1} parent=11 // pred_check_branch
          %336 = sbr.rel (%p334) target = $region36
        $region35: #{tpu_custom_call.1} parent=11 // pred_region
          _
        $region36: #{tpu_custom_call.1} parent=11 // pred_fallthru
          _
        // Predicated region
        $region37: #{tpu_custom_call.1} parent=11 // pred_check
          %p337 = pneg %p194
        $region38: #{tpu_custom_call.1} parent=11 // pred_check_branch
          %339 = sbr.rel (%p337) target = $region40
        $region39: #{tpu_custom_call.1} parent=11 // pred_region
          _
        $region40: #{tpu_custom_call.1} parent=11 // pred_fallthru
          _
        // Predicated region
        $region41: #{tpu_custom_call.1} parent=11 // pred_check
          %p340 = pneg %p215
        $region42: #{tpu_custom_call.1} parent=11 // pred_check_branch
          %342 = sbr.rel (%p340) target = $region44
        $region43: #{tpu_custom_call.1} parent=11 // pred_region
          _
        $region44: #{tpu_custom_call.1} parent=11 // pred_fallthru
          _
        // Predicated region
        $region45: #{tpu_custom_call.1} parent=11 // pred_check
          %p343 = pneg %p236
        $region46: #{tpu_custom_call.1} parent=11 // pred_check_branch
          %345 = sbr.rel (%p343) target = $region48
        $region47: #{tpu_custom_call.1} parent=11 // pred_region
          _
        $region48: #{tpu_custom_call.1} parent=11 // pred_fallthru
          _
        // Predicated region
        $region49: #{tpu_custom_call.1} parent=11 // pred_check
          %p346 = pneg %p257
        $region50: #{tpu_custom_call.1} parent=11 // pred_check_branch
          %348 = sbr.rel (%p346) target = $region52
        $region51: #{tpu_custom_call.1} parent=11 // pred_region
          _
        $region52: #{tpu_custom_call.1} parent=11 // pred_fallthru
          _
        // Predicated region
        $region53: #{tpu_custom_call.1} parent=11 // pred_check
          %p349 = pneg %p278
        $region54: #{tpu_custom_call.1} parent=11 // pred_check_branch
          %351 = sbr.rel (%p349) target = $region56
        $region55: #{tpu_custom_call.1} parent=11 // pred_region
          _
        $region56: #{tpu_custom_call.1} parent=11 // pred_fallthru
          _
      $region12: #{tpu_custom_call.1} parent=5 // pred_fallthru
        _
      %p352 = scmp.lt.s32.totalorder %s21, 2
      // Predicated region
      $region57: #{tpu_custom_call.1} parent=5 // pred_check
        %p353 = pneg %p352
      $region58: #{tpu_custom_call.1} parent=5 // pred_check_branch
        %355 = sbr.rel (%p353) target = $region60
      $region59: #{tpu_custom_call.1} parent=5 // pred_region
        // Predicated region
        $region61: #{tpu_custom_call.1} parent=59 // pred_check
          %p356 = pneg %p41
        $region62: #{tpu_custom_call.1} parent=59 // pred_check_branch
          %358 = sbr.rel (%p356) target = $region64
        $region63: #{tpu_custom_call.1} parent=59 // pred_region
          %p359 = scmp.lt.s32.totalorder %s21, 1
          %s360 = scalar_select %p359, %s21, 1
          %s361 = smul.addr %s360, 2
          %s362 = scalar_lea.vmem %s0, %s361
        $region64: #{tpu_custom_call.1} parent=59 // pred_fallthru
          _
      $region60: #{tpu_custom_call.1} parent=5 // pred_fallthru
        _
      %p363 = scmp.le.s32.totalorder 1, %s21
      %p364 = scmp.lt.s32.totalorder %s21, 3
      %p365 = pnand %p363, %p364
      %p366 = pneg %p365
      // Predicated region
      $region65: #{tpu_custom_call.1} parent=5 // pred_check
        _
      $region66: #{tpu_custom_call.1} parent=5 // pred_check_branch
        %368 = sbr.rel (%p365) target = $region68
      $region67: #{tpu_custom_call.1} parent=5 // pred_region
        %s369 = ssub.s32 %s21, 1
        %p370 = scmp.lt.s32.totalorder %s26, 1
        %s371 = scalar_select %p370, %s26, 1
        %s372 = smul.addr %s371, 2
        %s373 = scalar_lea.vmem %s0, %s372
        %p374 = pneg %p47
        %p375 = pneg %p44
        %p376 = pneg %p68
        %p377 = pneg %p65
        %p378 = pneg %p89
        %p379 = pneg %p86
        %p380 = pneg %p110
        %p381 = pneg %p107
        %p382 = pneg %p131
        %p383 = pneg %p128
        %p384 = pneg %p152
        %p385 = pneg %p149
        %p386 = pneg %p173
        %p387 = pneg %p170
        %p388 = pneg %p194
        %p389 = pneg %p191
        %p390 = pneg %p215
        %p391 = pneg %p212
        %p392 = pneg %p236
        %p393 = pneg %p233
        %p394 = pneg %p257
        %p395 = pneg %p254
        %p396 = pneg %p278
        %p397 = pneg %p275
        %p398 = pneg %p304
        %p399 = pneg %p301
        %s400 = sand.u32 %s291, 1
        %s401 = scalar_lea.sflag [#allocation3], %s400
        %s402 = sand.u32 %s291, 1
        %s403 = smul.addr %s402, 2
        %s404 = scalar_lea.vmem [#allocation2], %s403
        %p405 = scmp.lt.s32.totalorder %s26, 1
        %s406 = scalar_select %p405, %s26, 1
        %s407 = smul.addr %s406, 2
        %s408 = scalar_lea.vmem %s0, %s407
        %v410 = vld [vmem:[%s408] sm:$0x3]
        %v412 = vrot.slane %v410, 7
        %413 = vrot.lane.b32.xlu0 %v412, 96
        %v414 = vpop.permute.xlu0 %413
        %v416 = vrot.slane %v410, 6
        %417 = vrot.lane.b32.xlu0 %v416, 64
        %v418 = vpop.permute.xlu0 %417
        %v420 = vrot.slane %v410, 5
        %421 = vrot.lane.b32.xlu0 %v420, 32
        %v422 = vpop.permute.xlu0 %421
        %v425 = vrot.slane %v410, 4
        %426 = vrot.lane.b32.xlu0 %v425, 96
        %v427 = vpop.permute.xlu0 %426
        %v429 = vrot.slane %v410, 3
        %430 = vrot.lane.b32.xlu0 %v429, 64
        %v431 = vpop.permute.xlu0 %430
        %v433 = vrot.slane %v410, 2
        %434 = vrot.lane.b32.xlu0 %v433, 32
        %v435 = vpop.permute.xlu0 %434
        %vm437 = vcmask 1040384
        %v438 = vsel %vm437, %v410, %v414
        %vm439 = vcmask 1041408
        %v440 = vsel %vm439, %v438, %v418
        %vm441 = vcmask 1042432
        %v442 = vsel %vm441, %v440, %v422
        %vm443 = vcmask 1043456
        %v444 = vsel %vm443, %v442, %v420
        %vm445 = vcmask 1044480
        %v446 = vsel %vm445, %v444, %v427
        %vm447 = vcmask 1045504
        %v448 = vsel %vm447, %v446, %v431
        %vm449 = vcmask 1046528
        %v450 = vsel %vm449, %v448, %v435
        %v451 = vmul.f32 %v450, %v450
        %vm452 = vcmask 261120
        %v453 = vsel %vm452, %v451, 0.0
        %454 = vadd.xlane.f32.xlu0 %v453
        %v455 = vpop.xlane.xlu0 %454
        %v456 = vadd.f32 %v455, 1e-05
        %v457 = vrsqrt.pop %v456
        %v458 = vmul.f32 %v450, %v457
        %v459 = vld [vmem:[%s2] sm:$0x1]
        %v461 = vlaneseq
        %v462 = vshrl.u32 %v461, 7
        %v463 = vsub.s32 0, %v462
        %v464 = vrot.slane %v459, %v463
        %v466 = vmul.f32 %v458, %v464
        %v467 = vpack.c.bf16 %v466, %v466
        %v468 = vld [vmem:[%s4] sm:$0xf]
        %v469 = vld [vmem:[%s4 + $0x4] sm:$0xf]
        %v470 = vld [vmem:[%s4 + $0x8] sm:$0xf]
        %v471 = vld [vmem:[%s4 + $0xc] sm:$0xf]
        %v476 = vunpack.c.l.b16 %v468
        %v477 = vunpack.c.l.b16 %v469
        %v478 = vunpack.c.l.b16 %v470
        %v479 = vunpack.c.l.b16 %v471
        %v480 = vpack.c.b16 %v477, %v476
        %v481 = vpack.c.b16 %v479, %v478
        %v485 = vsel %vm452, %v467, 0
        %487 = vmatprep.subr.bf16.mxu0 0
        %488 = vmatpush1.bf16.msra.mxu0 %v480
        %489 = vmatprep.subr.bf16.mxu0 0
        %490 = vmatpush1.bf16.msra.mxu0 %v481
        %491 = vmatprep.subr.bf16.mxu0 0
        %492 = vmatpush1.bf16.msra.mxu0 0
        %493 = vmatprep.subr.bf16.mxu0 0
        %494 = vmatpush1.bf16.msra.mxu0 0
        %495 = vmatprep.subr.bf16.mxu0 0
        %496 = vmatpush1.bf16.msra.mxu0 0
        %497 = vmatprep.subr.bf16.mxu0 0
        %498 = vmatpush1.bf16.msra.mxu0 0
        %499 = vmatprep.subr.bf16.mxu0 0
        %500 = vmatpush1.bf16.msra.mxu0 0
        %501 = vmatprep.subr.bf16.mxu0 0
        %502 = vmatpush1.bf16.msra.mxu0 0
        %503 = vmatprep.subr.bf16.mxu0 0
        %504 = vmatpush1.bf16.msra.mxu0 0
        %505 = vmatprep.subr.bf16.mxu0 0
        %506 = vmatpush1.bf16.msra.mxu0 0
        %507 = vmatprep.subr.bf16.mxu0 0
        %508 = vmatpush1.bf16.msra.mxu0 0
        %509 = vmatprep.subr.bf16.mxu0 0
        %510 = vmatpush1.bf16.msra.mxu0 0
        %511 = vmatprep.subr.bf16.mxu0 0
        %512 = vmatpush1.bf16.msra.mxu0 0
        %513 = vmatprep.subr.bf16.mxu0 0
        %514 = vmatpush1.bf16.msra.mxu0 0
        %515 = vmatprep.subr.bf16.mxu0 0
        %516 = vmatpush1.bf16.msra.mxu0 0
        %517 = vmatprep.subr.bf16.mxu0 0
        %518 = vmatpush1.bf16.msra.mxu0 0
        %519 = vmatprep.mubr.bf16.mxu0 0
        %520 = vmatmul.mubr.bf16.gmra.mrb[0].mxu0 %v485
        %v521 = vpop.f32.mrb[0].mxu0
        %v522 = vadd.f32 0.0, %v521
        %v523 = vpop.f32.mrb[0].mxu0
        %v524 = vpop.f32.mrb[0].mxu0
        %v525 = vpop.f32.mrb[0].mxu0
        %526 = vdwg.mxu0
        %v527 = vmul.f32 %v522, 0.35355338
        %529 = vrot.lane.b32.xlu0 %v527, 120
        %v530 = vpop.permute.xlu0 %529
        %532 = vrot.lane.b32.xlu0 %v527, 112
        %v533 = vpop.permute.xlu0 %532
        %535 = vrot.lane.b32.xlu0 %v527, 104
        %v536 = vpop.permute.xlu0 %535
        %v538 = vpack.c.bf16 %v527, %v527
        %v539 = vpack.c.bf16 %v530, %v530
        %v540 = vpack.c.bf16 %v533, %v533
        %v541 = vpack.c.bf16 %v536, %v536
        %543 = vrot.lane.b32.xlu0 %v522, 120
        %v544 = vpop.permute.xlu0 %543
        %546 = vrot.lane.b32.xlu0 %v522, 112
        %v547 = vpop.permute.xlu0 %546
        %549 = vrot.lane.b32.xlu0 %v522, 104
        %v550 = vpop.permute.xlu0 %549
        %v552 = vpack.c.bf16 %v522, %v522
        %v553 = vpack.c.bf16 %v544, %v544
        %v554 = vpack.c.bf16 %v547, %v547
        %v555 = vpack.c.bf16 %v550, %v550
        %v556 = vld [vmem:[%s1] sm:$0xff]
        %558 = vrot.lane.b32.xlu0 %v552, 96
        %v559 = vpop.permute.xlu0 %558
        %vm560 = vcmask 64512
        %v562 = vsel %vm560, %v538, 0
        %v565 = vsel %vm560, %v559, 0
        %567 = vmatprep.subr.bf16.mxu0 0
        %568 = vmatpush1.bf16.xpose.msra.mxu0 %v565
        %569 = vmatprep.subr.bf16.mxu0 0
        %570 = vmatpush1.bf16.xpose.msra.mxu0 0
        %571 = vmatprep.subr.bf16.mxu0 0
        %572 = vmatpush1.bf16.xpose.msra.mxu0 0
        %573 = vmatprep.subr.bf16.mxu0 0
        %574 = vmatpush1.bf16.xpose.msra.mxu0 0
        %575 = vmatprep.subr.bf16.mxu0 0
        %576 = vmatpush1.bf16.xpose.msra.mxu0 0
        %577 = vmatprep.subr.bf16.mxu0 0
        %578 = vmatpush1.bf16.xpose.msra.mxu0 0
        %579 = vmatprep.subr.bf16.mxu0 0
        %580 = vmatpush1.bf16.xpose.msra.mxu0 0
        %581 = vmatprep.subr.bf16.mxu0 0
        %582 = vmatpush1.bf16.xpose.msra.mxu0 0
        %583 = vmatprep.subr.bf16.mxu0 0
        %584 = vmatpush1.bf16.xpose.msra.mxu0 0
        %585 = vmatprep.subr.bf16.mxu0 0
        %586 = vmatpush1.bf16.xpose.msra.mxu0 0
        %587 = vmatprep.subr.bf16.mxu0 0
        %588 = vmatpush1.bf16.xpose.msra.mxu0 0
        %589 = vmatprep.subr.bf16.mxu0 0
        %590 = vmatpush1.bf16.xpose.msra.mxu0 0
        %591 = vmatprep.subr.bf16.mxu0 0
        %592 = vmatpush1.bf16.xpose.msra.mxu0 0
        %593 = vmatprep.subr.bf16.mxu0 0
        %594 = vmatpush1.bf16.xpose.msra.mxu0 0
        %595 = vmatprep.subr.bf16.mxu0 0
        %596 = vmatpush1.bf16.xpose.msra.mxu0 0
        %597 = vmatprep.subr.bf16.mxu0 0
        %598 = vmatpush1.bf16.xpose.msra.mxu0 0
        %599 = vmatprep.mubr.bf16.mxu0 0
        %600 = vmatmul.mubr.bf16.gmra.mrb[0].mxu0 %v562
        %v601 = vpop.f32.mrb[0].mxu0
        %v602 = vadd.f32 %v556, %v601
        %v603 = vpop.f32.mrb[0].mxu0
        %v604 = vpop.f32.mrb[0].mxu0
        %v605 = vpop.f32.mrb[0].mxu0
        %606 = vdwg.mxu0
        %608 = vrot.lane.b32.xlu0 %v553, 96
        %v609 = vpop.permute.xlu0 %608
        %v611 = vsel %vm560, %v539, 0
        %v614 = vsel %vm560, %v609, 0
        %616 = vmatprep.subr.bf16.mxu0 0
        %617 = vmatpush1.bf16.xpose.msra.mxu0 %v614
        %618 = vmatprep.subr.bf16.mxu0 0
        %619 = vmatpush1.bf16.xpose.msra.mxu0 0
        %620 = vmatprep.subr.bf16.mxu0 0
        %621 = vmatpush1.bf16.xpose.msra.mxu0 0
        %622 = vmatprep.subr.bf16.mxu0 0
        %623 = vmatpush1.bf16.xpose.msra.mxu0 0
        %624 = vmatprep.subr.bf16.mxu0 0
        %625 = vmatpush1.bf16.xpose.msra.mxu0 0
        %626 = vmatprep.subr.bf16.mxu0 0
        %627 = vmatpush1.bf16.xpose.msra.mxu0 0
        %628 = vmatprep.subr.bf16.mxu0 0
        %629 = vmatpush1.bf16.xpose.msra.mxu0 0
        %630 = vmatprep.subr.bf16.mxu0 0
        %631 = vmatpush1.bf16.xpose.msra.mxu0 0
        %632 = vmatprep.subr.bf16.mxu0 0
        %633 = vmatpush1.bf16.xpose.msra.mxu0 0
        %634 = vmatprep.subr.bf16.mxu0 0
        %635 = vmatpush1.bf16.xpose.msra.mxu0 0
        %636 = vmatprep.subr.bf16.mxu0 0
        %637 = vmatpush1.bf16.xpose.msra.mxu0 0
        %638 = vmatprep.subr.bf16.mxu0 0
        %639 = vmatpush1.bf16.xpose.msra.mxu0 0
        %640 = vmatprep.subr.bf16.mxu0 0
        %641 = vmatpush1.bf16.xpose.msra.mxu0 0
        %642 = vmatprep.subr.bf16.mxu0 0
        %643 = vmatpush1.bf16.xpose.msra.mxu0 0
        %644 = vmatprep.subr.bf16.mxu0 0
        %645 = vmatpush1.bf16.xpose.msra.mxu0 0
        %646 = vmatprep.subr.bf16.mxu0 0
        %647 = vmatpush1.bf16.xpose.msra.mxu0 0
        %648 = vmatprep.mubr.bf16.mxu0 0
        %649 = vmatmul.mubr.bf16.gmra.mrb[0].mxu0 %v611
        %v650 = vpop.f32.mrb[0].mxu0
        %v651 = vadd.f32 %v556, %v650
        %v652 = vpop.f32.mrb[0].mxu0
        %v653 = vpop.f32.mrb[0].mxu0
        %v654 = vpop.f32.mrb[0].mxu0
        %655 = vdwg.mxu0
        %657 = vrot.lane.b32.xlu0 %v554, 96
        %v658 = vpop.permute.xlu0 %657
        %v660 = vsel %vm560, %v540, 0
        %v663 = vsel %vm560, %v658, 0
        %665 = vmatprep.subr.bf16.mxu0 0
        %666 = vmatpush1.bf16.xpose.msra.mxu0 %v663
        %667 = vmatprep.subr.bf16.mxu0 0
        %668 = vmatpush1.bf16.xpose.msra.mxu0 0
        %669 = vmatprep.subr.bf16.mxu0 0
        %670 = vmatpush1.bf16.xpose.msra.mxu0 0
        %671 = vmatprep.subr.bf16.mxu0 0
        %672 = vmatpush1.bf16.xpose.msra.mxu0 0
        %673 = vmatprep.subr.bf16.mxu0 0
        %674 = vmatpush1.bf16.xpose.msra.mxu0 0
        %675 = vmatprep.subr.bf16.mxu0 0
        %676 = vmatpush1.bf16.xpose.msra.mxu0 0
        %677 = vmatprep.subr.bf16.mxu0 0
        %678 = vmatpush1.bf16.xpose.msra.mxu0 0
        %679 = vmatprep.subr.bf16.mxu0 0
        %680 = vmatpush1.bf16.xpose.msra.mxu0 0
        %681 = vmatprep.subr.bf16.mxu0 0
        %682 = vmatpush1.bf16.xpose.msra.mxu0 0
        %683 = vmatprep.subr.bf16.mxu0 0
        %684 = vmatpush1.bf16.xpose.msra.mxu0 0
        %685 = vmatprep.subr.bf16.mxu0 0
        %686 = vmatpush1.bf16.xpose.msra.mxu0 0
        %687 = vmatprep.subr.bf16.mxu0 0
        %688 = vmatpush1.bf16.xpose.msra.mxu0 0
        %689 = vmatprep.subr.bf16.mxu0 0
        %690 = vmatpush1.bf16.xpose.msra.mxu0 0
        %691 = vmatprep.subr.bf16.mxu0 0
        %692 = vmatpush1.bf16.xpose.msra.mxu0 0
        %693 = vmatprep.subr.bf16.mxu0 0
        %694 = vmatpush1.bf16.xpose.msra.mxu0 0
        %695 = vmatprep.subr.bf16.mxu0 0
        %696 = vmatpush1.bf16.xpose.msra.mxu0 0
        %697 = vmatprep.mubr.bf16.mxu0 0
        %698 = vmatmul.mubr.bf16.gmra.mrb[0].mxu0 %v660
        %v699 = vpop.f32.mrb[0].mxu0
        %v700 = vadd.f32 %v556, %v699
        %v701 = vpop.f32.mrb[0].mxu0
        %v702 = vpop.f32.mrb[0].mxu0
        %v703 = vpop.f32.mrb[0].mxu0
        %704 = vdwg.mxu0
        %706 = vrot.lane.b32.xlu0 %v555, 96
        %v707 = vpop.permute.xlu0 %706
        %v709 = vsel %vm560, %v541, 0
        %v712 = vsel %vm560, %v707, 0
        %714 = vmatprep.subr.bf16.mxu0 0
        %715 = vmatpush1.bf16.xpose.msra.mxu0 %v712
        %716 = vmatprep.subr.bf16.mxu0 0
        %717 = vmatpush1.bf16.xpose.msra.mxu0 0
        %718 = vmatprep.subr.bf16.mxu0 0
        %719 = vmatpush1.bf16.xpose.msra.mxu0 0
        %720 = vmatprep.subr.bf16.mxu0 0
        %721 = vmatpush1.bf16.xpose.msra.mxu0 0
        %722 = vmatprep.subr.bf16.mxu0 0
        %723 = vmatpush1.bf16.xpose.msra.mxu0 0
        %724 = vmatprep.subr.bf16.mxu0 0
        %725 = vmatpush1.bf16.xpose.msra.mxu0 0
        %726 = vmatprep.subr.bf16.mxu0 0
        %727 = vmatpush1.bf16.xpose.msra.mxu0 0
        %728 = vmatprep.subr.bf16.mxu0 0
        %729 = vmatpush1.bf16.xpose.msra.mxu0 0
        %730 = vmatprep.subr.bf16.mxu0 0
        %731 = vmatpush1.bf16.xpose.msra.mxu0 0
        %732 = vmatprep.subr.bf16.mxu0 0
        %733 = vmatpush1.bf16.xpose.msra.mxu0 0
        %734 = vmatprep.subr.bf16.mxu0 0
        %735 = vmatpush1.bf16.xpose.msra.mxu0 0
        %736 = vmatprep.subr.bf16.mxu0 0
        %737 = vmatpush1.bf16.xpose.msra.mxu0 0
        %738 = vmatprep.subr.bf16.mxu0 0
        %739 = vmatpush1.bf16.xpose.msra.mxu0 0
        %740 = vmatprep.subr.bf16.mxu0 0
        %741 = vmatpush1.bf16.xpose.msra.mxu0 0
        %742 = vmatprep.subr.bf16.mxu0 0
        %743 = vmatpush1.bf16.xpose.msra.mxu0 0
        %744 = vmatprep.subr.bf16.mxu0 0
        %745 = vmatpush1.bf16.xpose.msra.mxu0 0
        %746 = vmatprep.mubr.bf16.mxu0 0
        %747 = vmatmul.mubr.bf16.gmra.mrb[0].mxu0 %v709
        %v748 = vpop.f32.mrb[0].mxu0
        %v749 = vadd.f32 %v556, %v748
        %v750 = vpop.f32.mrb[0].mxu0
        %v751 = vpop.f32.mrb[0].mxu0
        %v752 = vpop.f32.mrb[0].mxu0
        %753 = vdwg.mxu0
        %v754 = vsel %vm560, %v602, -inf
        %755 = vmax.xlane.f32.xlu0 %v754
        %v756 = vpop.xlane.xlu0 %755
        %v757 = vsel %vm560, %v651, -inf
        %758 = vmax.xlane.f32.xlu0 %v757
        %v759 = vpop.xlane.xlu0 %758
        %v760 = vsel %vm560, %v700, -inf
        %761 = vmax.xlane.f32.xlu0 %v760
        %v762 = vpop.xlane.xlu0 %761
        %v763 = vsel %vm560, %v749, -inf
        %764 = vmax.xlane.f32.xlu0 %v763
        %v765 = vpop.xlane.xlu0 %764
        %v766 = vsub.f32 %v602, %v756
        %v767 = vsub.f32 %v651, %v759
        %v768 = vsub.f32 %v700, %v762
        %v769 = vsub.f32 %v749, %v765
        %v770 = vmul.f32 %v766, 1.442695
        %v771 = vpow.pop %v770
        %v772 = vmul.f32 %v767, 1.442695
        %v773 = vpow.pop %v772
        %v774 = vmul.f32 %v768, 1.442695
        %v775 = vpow.pop %v774
        %v776 = vmul.f32 %v769, 1.442695
        %v777 = vpow.pop %v776
        %v778 = vsel %vm560, %v771, 0.0
        %779 = vadd.xlane.f32.xlu0 %v778
        %v780 = vpop.xlane.xlu0 %779
        %v781 = vsel %vm560, %v773, 0.0
        %782 = vadd.xlane.f32.xlu0 %v781
        %v783 = vpop.xlane.xlu0 %782
        %v784 = vsel %vm560, %v775, 0.0
        %785 = vadd.xlane.f32.xlu0 %v784
        %v786 = vpop.xlane.xlu0 %785
        %v787 = vsel %vm560, %v777, 0.0
        %788 = vadd.xlane.f32.xlu0 %v787
        %v789 = vpop.xlane.xlu0 %788
        %v790 = vrcp.pop %v780
        %v791 = vrcp.pop %v783
        %v792 = vrcp.pop %v786
        %v793 = vrcp.pop %v789
        %v794 = vmul.f32 %v771, %v790
        %v795 = vmul.f32 %v773, %v791
        %v796 = vmul.f32 %v775, %v792
        %v797 = vmul.f32 %v777, %v793
        %v798 = vpack.c.bf16 %v794, %v794
        %v799 = vpack.c.bf16 %v795, %v795
        %v800 = vpack.c.bf16 %v796, %v796
        %v801 = vpack.c.bf16 %v797, %v797
        %802 = vrot.lane.b32.xlu0 %v552, 64
        %v803 = vpop.permute.xlu0 %802
        %v805 = vsel %vm560, %v798, 0
        %v808 = vsel %vm443, %v803, 0
        %810 = vmatprep.subr.bf16.mxu0 0
        %811 = vmatpush1.bf16.msra.mxu0 %v808
        %812 = vmatprep.subr.bf16.mxu0 0
        %813 = vmatpush1.bf16.msra.mxu0 0
        %814 = vmatprep.subr.bf16.mxu0 0
        %815 = vmatpush1.bf16.msra.mxu0 0
        %816 = vmatprep.subr.bf16.mxu0 0
        %817 = vmatpush1.bf16.msra.mxu0 0
        %818 = vmatprep.subr.bf16.mxu0 0
        %819 = vmatpush1.bf16.msra.mxu0 0
        %820 = vmatprep.subr.bf16.mxu0 0
        %821 = vmatpush1.bf16.msra.mxu0 0
        %822 = vmatprep.subr.bf16.mxu0 0
        %823 = vmatpush1.bf16.msra.mxu0 0
        %824 = vmatprep.subr.bf16.mxu0 0
        %825 = vmatpush1.bf16.msra.mxu0 0
        %826 = vmatprep.subr.bf16.mxu0 0
        %827 = vmatpush1.bf16.msra.mxu0 0
        %828 = vmatprep.subr.bf16.mxu0 0
        %829 = vmatpush1.bf16.msra.mxu0 0
        %830 = vmatprep.subr.bf16.mxu0 0
        %831 = vmatpush1.bf16.msra.mxu0 0
        %832 = vmatprep.subr.bf16.mxu0 0
        %833 = vmatpush1.bf16.msra.mxu0 0
        %834 = vmatprep.subr.bf16.mxu0 0
        %835 = vmatpush1.bf16.msra.mxu0 0
        %836 = vmatprep.subr.bf16.mxu0 0
        %837 = vmatpush1.bf16.msra.mxu0 0
        %838 = vmatprep.subr.bf16.mxu0 0
        %839 = vmatpush1.bf16.msra.mxu0 0
        %840 = vmatprep.subr.bf16.mxu0 0
        %841 = vmatpush1.bf16.msra.mxu0 0
        %842 = vmatprep.mubr.bf16.mxu0 0
        %843 = vmatmul.mubr.bf16.gmra.mrb[0].mxu0 %v805
        %v844 = vpop.f32.mrb[0].mxu0
        %v845 = vadd.f32 0.0, %v844
        %v846 = vpop.f32.mrb[0].mxu0
        %v847 = vpop.f32.mrb[0].mxu0
        %v848 = vpop.f32.mrb[0].mxu0
        %849 = vdwg.mxu0
        %850 = vrot.lane.b32.xlu0 %v553, 64
        %v851 = vpop.permute.xlu0 %850
        %v853 = vsel %vm560, %v799, 0
        %v856 = vsel %vm443, %v851, 0
        %858 = vmatprep.subr.bf16.mxu0 0
        %859 = vmatpush1.bf16.msra.mxu0 %v856
        %860 = vmatprep.subr.bf16.mxu0 0
        %861 = vmatpush1.bf16.msra.mxu0 0
        %862 = vmatprep.subr.bf16.mxu0 0
        %863 = vmatpush1.bf16.msra.mxu0 0
        %864 = vmatprep.subr.bf16.mxu0 0
        %865 = vmatpush1.bf16.msra.mxu0 0
        %866 = vmatprep.subr.bf16.mxu0 0
        %867 = vmatpush1.bf16.msra.mxu0 0
        %868 = vmatprep.subr.bf16.mxu0 0
        %869 = vmatpush1.bf16.msra.mxu0 0
        %870 = vmatprep.subr.bf16.mxu0 0
        %871 = vmatpush1.bf16.msra.mxu0 0
        %872 = vmatprep.subr.bf16.mxu0 0
        %873 = vmatpush1.bf16.msra.mxu0 0
        %874 = vmatprep.subr.bf16.mxu0 0
        %875 = vmatpush1.bf16.msra.mxu0 0
        %876 = vmatprep.subr.bf16.mxu0 0
        %877 = vmatpush1.bf16.msra.mxu0 0
        %878 = vmatprep.subr.bf16.mxu0 0
        %879 = vmatpush1.bf16.msra.mxu0 0
        %880 = vmatprep.subr.bf16.mxu0 0
        %881 = vmatpush1.bf16.msra.mxu0 0
        %882 = vmatprep.subr.bf16.mxu0 0
        %883 = vmatpush1.bf16.msra.mxu0 0
        %884 = vmatprep.subr.bf16.mxu0 0
        %885 = vmatpush1.bf16.msra.mxu0 0
        %886 = vmatprep.subr.bf16.mxu0 0
        %887 = vmatpush1.bf16.msra.mxu0 0
        %888 = vmatprep.subr.bf16.mxu0 0
        %889 = vmatpush1.bf16.msra.mxu0 0
        %890 = vmatprep.mubr.bf16.mxu0 0
        %891 = vmatmul.mubr.bf16.gmra.mrb[0].mxu0 %v853
        %v892 = vpop.f32.mrb[0].mxu0
        %v893 = vadd.f32 0.0, %v892
        %v894 = vpop.f32.mrb[0].mxu0
        %v895 = vpop.f32.mrb[0].mxu0
        %v896 = vpop.f32.mrb[0].mxu0
        %897 = vdwg.mxu0
        %898 = vrot.lane.b32.xlu0 %v554, 64
        %v899 = vpop.permute.xlu0 %898
        %v901 = vsel %vm560, %v800, 0
        %v904 = vsel %vm443, %v899, 0
        %906 = vmatprep.subr.bf16.mxu0 0
        %907 = vmatpush1.bf16.msra.mxu0 %v904
        %908 = vmatprep.subr.bf16.mxu0 0
        %909 = vmatpush1.bf16.msra.mxu0 0
        %910 = vmatprep.subr.bf16.mxu0 0
        %911 = vmatpush1.bf16.msra.mxu0 0
        %912 = vmatprep.subr.bf16.mxu0 0
        %913 = vmatpush1.bf16.msra.mxu0 0
        %914 = vmatprep.subr.bf16.mxu0 0
        %915 = vmatpush1.bf16.msra.mxu0 0
        %916 = vmatprep.subr.bf16.mxu0 0
        %917 = vmatpush1.bf16.msra.mxu0 0
        %918 = vmatprep.subr.bf16.mxu0 0
        %919 = vmatpush1.bf16.msra.mxu0 0
        %920 = vmatprep.subr.bf16.mxu0 0
        %921 = vmatpush1.bf16.msra.mxu0 0
        %922 = vmatprep.subr.bf16.mxu0 0
        %923 = vmatpush1.bf16.msra.mxu0 0
        %924 = vmatprep.subr.bf16.mxu0 0
        %925 = vmatpush1.bf16.msra.mxu0 0
        %926 = vmatprep.subr.bf16.mxu0 0
        %927 = vmatpush1.bf16.msra.mxu0 0
        %928 = vmatprep.subr.bf16.mxu0 0
        %929 = vmatpush1.bf16.msra.mxu0 0
        %930 = vmatprep.subr.bf16.mxu0 0
        %931 = vmatpush1.bf16.msra.mxu0 0
        %932 = vmatprep.subr.bf16.mxu0 0
        %933 = vmatpush1.bf16.msra.mxu0 0
        %934 = vmatprep.subr.bf16.mxu0 0
        %935 = vmatpush1.bf16.msra.mxu0 0
        %936 = vmatprep.subr.bf16.mxu0 0
        %937 = vmatpush1.bf16.msra.mxu0 0
        %938 = vmatprep.mubr.bf16.mxu0 0
        %939 = vmatmul.mubr.bf16.gmra.mrb[0].mxu0 %v901
        %v940 = vpop.f32.mrb[0].mxu0
        %v941 = vadd.f32 0.0, %v940
        %v942 = vpop.f32.mrb[0].mxu0
        %v943 = vpop.f32.mrb[0].mxu0
        %v944 = vpop.f32.mrb[0].mxu0
        %945 = vdwg.mxu0
        %946 = vrot.lane.b32.xlu0 %v555, 64
        %v947 = vpop.permute.xlu0 %946
        %v949 = vsel %vm560, %v801, 0
        %v952 = vsel %vm443, %v947, 0
        %954 = vmatprep.subr.bf16.mxu0 0
        %955 = vmatpush1.bf16.msra.mxu0 %v952
        %956 = vmatprep.subr.bf16.mxu0 0
        %957 = vmatpush1.bf16.msra.mxu0 0
        %958 = vmatprep.subr.bf16.mxu0 0
        %959 = vmatpush1.bf16.msra.mxu0 0
        %960 = vmatprep.subr.bf16.mxu0 0
        %961 = vmatpush1.bf16.msra.mxu0 0
        %962 = vmatprep.subr.bf16.mxu0 0
        %963 = vmatpush1.bf16.msra.mxu0 0
        %964 = vmatprep.subr.bf16.mxu0 0
        %965 = vmatpush1.bf16.msra.mxu0 0
        %966 = vmatprep.subr.bf16.mxu0 0
        %967 = vmatpush1.bf16.msra.mxu0 0
        %968 = vmatprep.subr.bf16.mxu0 0
        %969 = vmatpush1.bf16.msra.mxu0 0
        %970 = vmatprep.subr.bf16.mxu0 0
        %971 = vmatpush1.bf16.msra.mxu0 0
        %972 = vmatprep.subr.bf16.mxu0 0
        %973 = vmatpush1.bf16.msra.mxu0 0
        %974 = vmatprep.subr.bf16.mxu0 0
        %975 = vmatpush1.bf16.msra.mxu0 0
        %976 = vmatprep.subr.bf16.mxu0 0
        %977 = vmatpush1.bf16.msra.mxu0 0
        %978 = vmatprep.subr.bf16.mxu0 0
        %979 = vmatpush1.bf16.msra.mxu0 0
        %980 = vmatprep.subr.bf16.mxu0 0
        %981 = vmatpush1.bf16.msra.mxu0 0
        %982 = vmatprep.subr.bf16.mxu0 0
        %983 = vmatpush1.bf16.msra.mxu0 0
        %984 = vmatprep.subr.bf16.mxu0 0
        %985 = vmatpush1.bf16.msra.mxu0 0
        %986 = vmatprep.mubr.bf16.mxu0 0
        %987 = vmatmul.mubr.bf16.gmra.mrb[0].mxu0 %v949
        %v988 = vpop.f32.mrb[0].mxu0
        %v989 = vadd.f32 0.0, %v988
        %v990 = vpop.f32.mrb[0].mxu0
        %v991 = vpop.f32.mrb[0].mxu0
        %v992 = vpop.f32.mrb[0].mxu0
        %993 = vdwg.mxu0
        %v994 = vpack.c.bf16 %v845, %v845
        %v995 = vpack.c.bf16 %v893, %v893
        %v996 = vpack.c.bf16 %v941, %v941
        %v997 = vpack.c.bf16 %v989, %v989
        %v998 = vld [vmem:[%s5] sm:$0xf]
        %v999 = vld [vmem:[%s5 + $0x4] sm:$0xf]
        %v1000 = vld [vmem:[%s5 + $0x8] sm:$0xf]
        %v1001 = vld [vmem:[%s5 + $0xc] sm:$0xf]
        %v1003 = vsel %vm560, %v994, 0
        %v1006 = vsel %vm443, %v998, 0
        %1008 = vmatprep.subr.bf16.mxu0 0
        %1009 = vmatpush1.bf16.msra.mxu0 %v1006
        %1010 = vmatprep.subr.bf16.mxu0 0
        %1011 = vmatpush1.bf16.msra.mxu0 0
        %1012 = vmatprep.subr.bf16.mxu0 0
        %1013 = vmatpush1.bf16.msra.mxu0 0
        %1014 = vmatprep.subr.bf16.mxu0 0
        %1015 = vmatpush1.bf16.msra.mxu0 0
        %1016 = vmatprep.subr.bf16.mxu0 0
        %1017 = vmatpush1.bf16.msra.mxu0 0
        %1018 = vmatprep.subr.bf16.mxu0 0
        %1019 = vmatpush1.bf16.msra.mxu0 0
        %1020 = vmatprep.subr.bf16.mxu0 0
        %1021 = vmatpush1.bf16.msra.mxu0 0
        %1022 = vmatprep.subr.bf16.mxu0 0
        %1023 = vmatpush1.bf16.msra.mxu0 0
        %1024 = vmatprep.subr.bf16.mxu0 0
        %1025 = vmatpush1.bf16.msra.mxu0 0
        %1026 = vmatprep.subr.bf16.mxu0 0
        %1027 = vmatpush1.bf16.msra.mxu0 0
        %1028 = vmatprep.subr.bf16.mxu0 0
        %1029 = vmatpush1.bf16.msra.mxu0 0
        %1030 = vmatprep.subr.bf16.mxu0 0
        %1031 = vmatpush1.bf16.msra.mxu0 0
        %1032 = vmatprep.subr.bf16.mxu0 0
        %1033 = vmatpush1.bf16.msra.mxu0 0
        %1034 = vmatprep.subr.bf16.mxu0 0
        %1035 = vmatpush1.bf16.msra.mxu0 0
        %1036 = vmatprep.subr.bf16.mxu0 0
        %1037 = vmatpush1.bf16.msra.mxu0 0
        %1038 = vmatprep.subr.bf16.mxu0 0
        %1039 = vmatpush1.bf16.msra.mxu0 0
        %1040 = vmatprep.mubr.bf16.mxu0 0
        %1041 = vmatmul.mubr.bf16.gmra.mrb[0].mxu0 %v1003
        %v1042 = vpop.f32.mrb[0].mxu0
        %v1043 = vadd.f32 0.0, %v1042
        %v1044 = vpop.f32.mrb[0].mxu0
        %v1045 = vpop.f32.mrb[0].mxu0
        %v1046 = vpop.f32.mrb[0].mxu0
        %1047 = vdwg.mxu0
        %v1049 = vsel %vm560, %v995, 0
        %v1052 = vsel %vm443, %v999, 0
        %1054 = vmatprep.subr.bf16.mxu0 0
        %1055 = vmatpush1.bf16.msra.mxu0 %v1052
        %1056 = vmatprep.subr.bf16.mxu0 0
        %1057 = vmatpush1.bf16.msra.mxu0 0
        %1058 = vmatprep.subr.bf16.mxu0 0
        %1059 = vmatpush1.bf16.msra.mxu0 0
        %1060 = vmatprep.subr.bf16.mxu0 0
        %1061 = vmatpush1.bf16.msra.mxu0 0
        %1062 = vmatprep.subr.bf16.mxu0 0
        %1063 = vmatpush1.bf16.msra.mxu0 0
        %1064 = vmatprep.subr.bf16.mxu0 0
        %1065 = vmatpush1.bf16.msra.mxu0 0
        %1066 = vmatprep.subr.bf16.mxu0 0
        %1067 = vmatpush1.bf16.msra.mxu0 0
        %1068 = vmatprep.subr.bf16.mxu0 0
        %1069 = vmatpush1.bf16.msra.mxu0 0
        %1070 = vmatprep.subr.bf16.mxu0 0
        %1071 = vmatpush1.bf16.msra.mxu0 0
        %1072 = vmatprep.subr.bf16.mxu0 0
        %1073 = vmatpush1.bf16.msra.mxu0 0
        %1074 = vmatprep.subr.bf16.mxu0 0
        %1075 = vmatpush1.bf16.msra.mxu0 0
        %1076 = vmatprep.subr.bf16.mxu0 0
        %1077 = vmatpush1.bf16.msra.mxu0 0
        %1078 = vmatprep.subr.bf16.mxu0 0
        %1079 = vmatpush1.bf16.msra.mxu0 0
        %1080 = vmatprep.subr.bf16.mxu0 0
        %1081 = vmatpush1.bf16.msra.mxu0 0
        %1082 = vmatprep.subr.bf16.mxu0 0
        %1083 = vmatpush1.bf16.msra.mxu0 0
        %1084 = vmatprep.subr.bf16.mxu0 0
        %1085 = vmatpush1.bf16.msra.mxu0 0
        %1086 = vmatprep.mubr.bf16.mxu0 0
        %1087 = vmatmul.mubr.bf16.gmra.mrb[0].mxu0 %v1049
        %v1088 = vpop.f32.mrb[0].mxu0
        %v1089 = vadd.f32 0.0, %v1088
        %v1090 = vpop.f32.mrb[0].mxu0
        %v1091 = vpop.f32.mrb[0].mxu0
        %v1092 = vpop.f32.mrb[0].mxu0
        %1093 = vdwg.mxu0
        %v1095 = vsel %vm560, %v996, 0
        %v1098 = vsel %vm443, %v1000, 0
        %1100 = vmatprep.subr.bf16.mxu0 0
        %1101 = vmatpush1.bf16.msra.mxu0 %v1098
        %1102 = vmatprep.subr.bf16.mxu0 0
        %1103 = vmatpush1.bf16.msra.mxu0 0
        %1104 = vmatprep.subr.bf16.mxu0 0
        %1105 = vmatpush1.bf16.msra.mxu0 0
        %1106 = vmatprep.subr.bf16.mxu0 0
        %1107 = vmatpush1.bf16.msra.mxu0 0
        %1108 = vmatprep.subr.bf16.mxu0 0
        %1109 = vmatpush1.bf16.msra.mxu0 0
        %1110 = vmatprep.subr.bf16.mxu0 0
        %1111 = vmatpush1.bf16.msra.mxu0 0
        %1112 = vmatprep.subr.bf16.mxu0 0
        %1113 = vmatpush1.bf16.msra.mxu0 0
        %1114 = vmatprep.subr.bf16.mxu0 0
        %1115 = vmatpush1.bf16.msra.mxu0 0
        %1116 = vmatprep.subr.bf16.mxu0 0
        %1117 = vmatpush1.bf16.msra.mxu0 0
        %1118 = vmatprep.subr.bf16.mxu0 0
        %1119 = vmatpush1.bf16.msra.mxu0 0
        %1120 = vmatprep.subr.bf16.mxu0 0
        %1121 = vmatpush1.bf16.msra.mxu0 0
        %1122 = vmatprep.subr.bf16.mxu0 0
        %1123 = vmatpush1.bf16.msra.mxu0 0
        %1124 = vmatprep.subr.bf16.mxu0 0
        %1125 = vmatpush1.bf16.msra.mxu0 0
        %1126 = vmatprep.subr.bf16.mxu0 0
        %1127 = vmatpush1.bf16.msra.mxu0 0
        %1128 = vmatprep.subr.bf16.mxu0 0
        %1129 = vmatpush1.bf16.msra.mxu0 0
        %1130 = vmatprep.subr.bf16.mxu0 0
        %1131 = vmatpush1.bf16.msra.mxu0 0
        %1132 = vmatprep.mubr.bf16.mxu0 0
        %1133 = vmatmul.mubr.bf16.gmra.mrb[0].mxu0 %v1095
        %v1134 = vpop.f32.mrb[0].mxu0
        %v1135 = vadd.f32 0.0, %v1134
        %v1136 = vpop.f32.mrb[0].mxu0
        %v1137 = vpop.f32.mrb[0].mxu0
        %v1138 = vpop.f32.mrb[0].mxu0
        %1139 = vdwg.mxu0
        %v1141 = vsel %vm560, %v997, 0
        %v1144 = vsel %vm443, %v1001, 0
        %1146 = vmatprep.subr.bf16.mxu0 0
        %1147 = vmatpush1.bf16.msra.mxu0 %v1144
        %1148 = vmatprep.subr.bf16.mxu0 0
        %1149 = vmatpush1.bf16.msra.mxu0 0
        %1150 = vmatprep.subr.bf16.mxu0 0
        %1151 = vmatpush1.bf16.msra.mxu0 0
        %1152 = vmatprep.subr.bf16.mxu0 0
        %1153 = vmatpush1.bf16.msra.mxu0 0
        %1154 = vmatprep.subr.bf16.mxu0 0
        %1155 = vmatpush1.bf16.msra.mxu0 0
        %1156 = vmatprep.subr.bf16.mxu0 0
        %1157 = vmatpush1.bf16.msra.mxu0 0
        %1158 = vmatprep.subr.bf16.mxu0 0
        %1159 = vmatpush1.bf16.msra.mxu0 0
        %1160 = vmatprep.subr.bf16.mxu0 0
        %1161 = vmatpush1.bf16.msra.mxu0 0
        %1162 = vmatprep.subr.bf16.mxu0 0
        %1163 = vmatpush1.bf16.msra.mxu0 0
        %1164 = vmatprep.subr.bf16.mxu0 0
        %1165 = vmatpush1.bf16.msra.mxu0 0
        %1166 = vmatprep.subr.bf16.mxu0 0
        %1167 = vmatpush1.bf16.msra.mxu0 0
        %1168 = vmatprep.subr.bf16.mxu0 0
        %1169 = vmatpush1.bf16.msra.mxu0 0
        %1170 = vmatprep.subr.bf16.mxu0 0
        %1171 = vmatpush1.bf16.msra.mxu0 0
        %1172 = vmatprep.subr.bf16.mxu0 0
        %1173 = vmatpush1.bf16.msra.mxu0 0
        %1174 = vmatprep.subr.bf16.mxu0 0
        %1175 = vmatpush1.bf16.msra.mxu0 0
        %1176 = vmatprep.subr.bf16.mxu0 0
        %1177 = vmatpush1.bf16.msra.mxu0 0
        %1178 = vmatprep.mubr.bf16.mxu0 0
        %1179 = vmatmul.mubr.bf16.gmra.mrb[0].mxu0 %v1141
        %v1180 = vpop.f32.mrb[0].mxu0
        %v1181 = vadd.f32 0.0, %v1180
        %v1182 = vpop.f32.mrb[0].mxu0
        %v1183 = vpop.f32.mrb[0].mxu0
        %v1184 = vpop.f32.mrb[0].mxu0
        %1185 = vdwg.mxu0
        %v1186 = vsel %vm452, %v1043, 0.0
        %v1187 = vsel %vm452, %v1089, 0.0
        %v1188 = vadd.f32 %v1186, %v1187
        %v1189 = vsel %vm452, %v1135, 0.0
        %v1190 = vadd.f32 %v1188, %v1189
        %v1191 = vsel %vm452, %v1181, 0.0
        %v1192 = vadd.f32 %v1190, %v1191
        %v1193 = vadd.f32 %v450, %v1192
        %v1194 = vmul.f32 %v1193, %v1193
        %v1195 = vsel %vm452, %v1194, 0.0
        %1196 = vadd.xlane.f32.xlu0 %v1195
        %v1197 = vpop.xlane.xlu0 %1196
        %v1198 = vadd.f32 %v1197, 1e-05
        %v1199 = vrsqrt.pop %v1198
        %v1200 = vmul.f32 %v1193, %v1199
        %v1201 = vld [vmem:[%s3] sm:$0x1]
        %v1203 = vlaneseq
        %v1204 = vshrl.u32 %v1203, 7
        %v1205 = vsub.s32 0, %v1204
        %v1206 = vrot.slane %v1201, %v1205
        %v1208 = vmul.f32 %v1200, %v1206
        %v1209 = vpack.c.bf16 %v1208, %v1208
        %v1210 = vld [vmem:[%s6] sm:$0xf]
        %v1211 = vld [vmem:[%s6 + $0x4] sm:$0xf]
        %v1212 = vld [vmem:[%s6 + $0x8] sm:$0xf]
        %v1213 = vld [vmem:[%s6 + $0xc] sm:$0xf]
        %v1214 = vld [vmem:[%s8] sm:$0x1]
        %v1216 = vlaneseq
        %v1217 = vshrl.u32 %v1216, 7
        %v1218 = vsub.s32 0, %v1217
        %v1219 = vrot.slane %v1214, %v1218
        %v1225 = vunpack.c.l.b16 %v1210
        %v1226 = vunpack.c.l.b16 %v1211
        %v1227 = vunpack.c.l.b16 %v1212
        %v1228 = vunpack.c.l.b16 %v1213
        %v1229 = vpack.c.b16 %v1226, %v1225
        %v1230 = vpack.c.b16 %v1228, %v1227
        %v1234 = vsel %vm452, %v1209, 0
        %1236 = vmatprep.subr.bf16.mxu0 0
        %1237 = vmatpush1.bf16.msra.mxu0 %v1229
        %1238 = vmatprep.subr.bf16.mxu0 0
        %1239 = vmatpush1.bf16.msra.mxu0 %v1230
        %1240 = vmatprep.subr.bf16.mxu0 0
        %1241 = vmatpush1.bf16.msra.mxu0 0
        %1242 = vmatprep.subr.bf16.mxu0 0
        %1243 = vmatpush1.bf16.msra.mxu0 0
        %1244 = vmatprep.subr.bf16.mxu0 0
        %1245 = vmatpush1.bf16.msra.mxu0 0
        %1246 = vmatprep.subr.bf16.mxu0 0
        %1247 = vmatpush1.bf16.msra.mxu0 0
        %1248 = vmatprep.subr.bf16.mxu0 0
        %1249 = vmatpush1.bf16.msra.mxu0 0
        %1250 = vmatprep.subr.bf16.mxu0 0
        %1251 = vmatpush1.bf16.msra.mxu0 0
        %1252 = vmatprep.subr.bf16.mxu0 0
        %1253 = vmatpush1.bf16.msra.mxu0 0
        %1254 = vmatprep.subr.bf16.mxu0 0
        %1255 = vmatpush1.bf16.msra.mxu0 0
        %1256 = vmatprep.subr.bf16.mxu0 0
        %1257 = vmatpush1.bf16.msra.mxu0 0
        %1258 = vmatprep.subr.bf16.mxu0 0
        %1259 = vmatpush1.bf16.msra.mxu0 0
        %1260 = vmatprep.subr.bf16.mxu0 0
        %1261 = vmatpush1.bf16.msra.mxu0 0
        %1262 = vmatprep.subr.bf16.mxu0 0
        %1263 = vmatpush1.bf16.msra.mxu0 0
        %1264 = vmatprep.subr.bf16.mxu0 0
        %1265 = vmatpush1.bf16.msra.mxu0 0
        %1266 = vmatprep.subr.bf16.mxu0 0
        %1267 = vmatpush1.bf16.msra.mxu0 0
        %1268 = vmatprep.mubr.bf16.mxu0 0
        %1269 = vmatmul.mubr.bf16.gmra.mrb[0].mxu0 %v1234
        %v1270 = vpop.f32.mrb[0].mxu0
        %v1271 = vadd.f32 %v1219, %v1270
        %v1272 = vpop.f32.mrb[0].mxu0
        %v1273 = vpop.f32.mrb[0].mxu0
        %v1274 = vpop.f32.mrb[0].mxu0
        %1275 = vdwg.mxu0
        %v1276 = vld [vmem:[%s7] sm:$0xf]
        %v1277 = vld [vmem:[%s7 + $0x4] sm:$0xf]
        %v1278 = vld [vmem:[%s7 + $0x8] sm:$0xf]
        %v1279 = vld [vmem:[%s7 + $0xc] sm:$0xf]
        %v1280 = vld [vmem:[%s9] sm:$0x1]
        %v1282 = vlaneseq
        %v1283 = vshrl.u32 %v1282, 7
        %v1284 = vsub.s32 0, %v1283
        %v1285 = vrot.slane %v1280, %v1284
        %v1291 = vunpack.c.l.b16 %v1276
        %v1292 = vunpack.c.l.b16 %v1277
        %v1293 = vunpack.c.l.b16 %v1278
        %v1294 = vunpack.c.l.b16 %v1279
        %v1295 = vpack.c.b16 %v1292, %v1291
        %v1296 = vpack.c.b16 %v1294, %v1293
        %1299 = vmatprep.subr.bf16.mxu0 0
        %1300 = vmatpush1.bf16.msra.mxu0 %v1295
        %1301 = vmatprep.subr.bf16.mxu0 0
        %1302 = vmatpush1.bf16.msra.mxu0 %v1296
        %1303 = vmatprep.subr.bf16.mxu0 0
        %1304 = vmatpush1.bf16.msra.mxu0 0
        %1305 = vmatprep.subr.bf16.mxu0 0
        %1306 = vmatpush1.bf16.msra.mxu0 0
        %1307 = vmatprep.subr.bf16.mxu0 0
        %1308 = vmatpush1.bf16.msra.mxu0 0
        %1309 = vmatprep.subr.bf16.mxu0 0
        %1310 = vmatpush1.bf16.msra.mxu0 0
        %1311 = vmatprep.subr.bf16.mxu0 0
        %1312 = vmatpush1.bf16.msra.mxu0 0
        %1313 = vmatprep.subr.bf16.mxu0 0
        %1314 = vmatpush1.bf16.msra.mxu0 0
        %1315 = vmatprep.subr.bf16.mxu0 0
        %1316 = vmatpush1.bf16.msra.mxu0 0
        %1317 = vmatprep.subr.bf16.mxu0 0
        %1318 = vmatpush1.bf16.msra.mxu0 0
        %1319 = vmatprep.subr.bf16.mxu0 0
        %1320 = vmatpush1.bf16.msra.mxu0 0
        %1321 = vmatprep.subr.bf16.mxu0 0
        %1322 = vmatpush1.bf16.msra.mxu0 0
        %1323 = vmatprep.subr.bf16.mxu0 0
        %1324 = vmatpush1.bf16.msra.mxu0 0
        %1325 = vmatprep.subr.bf16.mxu0 0
        %1326 = vmatpush1.bf16.msra.mxu0 0
        %1327 = vmatprep.subr.bf16.mxu0 0
        %1328 = vmatpush1.bf16.msra.mxu0 0
        %1329 = vmatprep.subr.bf16.mxu0 0
        %1330 = vmatpush1.bf16.msra.mxu0 0
        %1331 = vmatprep.mubr.bf16.mxu0 0
        %1332 = vmatmul.mubr.bf16.gmra.mrb[0].mxu0 %v1234
        %v1333 = vpop.f32.mrb[0].mxu0
        %v1334 = vadd.f32 %v1285, %v1333
        %v1335 = vpop.f32.mrb[0].mxu0
        %v1336 = vpop.f32.mrb[0].mxu0
        %v1337 = vpop.f32.mrb[0].mxu0
        %1338 = vdwg.mxu0
        %v1339 = vmax.f32 %v1334, 0.0
        %v1340 = vmul.f32 %v1271, %v1339
        %v1341 = vpack.c.bf16 %v1340, %v1340
        %v1342 = vld [vmem:[%s10] sm:$0xf]
        %v1343 = vld [vmem:[%s10 + $0x4] sm:$0xf]
        %v1344 = vld [vmem:[%s10 + $0x8] sm:$0xf]
        %v1345 = vld [vmem:[%s10 + $0xc] sm:$0xf]
        %v1346 = vld [vmem:[%s10 + $0x10] sm:$0xf]
        %v1347 = vld [vmem:[%s10 + $0x14] sm:$0xf]
        %v1348 = vld [vmem:[%s10 + $0x18] sm:$0xf]
        %v1349 = vld [vmem:[%s10 + $0x1c] sm:$0xf]
        %v1350 = vld [vmem:[%s10 + $0x20] sm:$0xf]
        %v1351 = vld [vmem:[%s10 + $0x24] sm:$0xf]
        %v1352 = vld [vmem:[%s10 + $0x28] sm:$0xf]
        %v1353 = vld [vmem:[%s10 + $0x2c] sm:$0xf]
        %v1354 = vld [vmem:[%s10 + $0x30] sm:$0xf]
        %v1355 = vld [vmem:[%s10 + $0x34] sm:$0xf]
        %v1356 = vld [vmem:[%s10 + $0x38] sm:$0xf]
        %v1357 = vld [vmem:[%s10 + $0x3c] sm:$0xf]
        %v1358 = vld [vmem:[%s11] sm:$0x1]
        %v1360 = vlaneseq
        %v1361 = vshrl.u32 %v1360, 7
        %v1362 = vsub.s32 0, %v1361
        %v1363 = vrot.slane %v1358, %v1362
        %v1381 = vunpack.c.l.b16 %v1342
        %v1382 = vunpack.c.l.b16 %v1343
        %v1383 = vunpack.c.l.b16 %v1344
        %v1384 = vunpack.c.l.b16 %v1345
        %v1385 = vunpack.c.l.b16 %v1346
        %v1386 = vunpack.c.l.b16 %v1347
        %v1387 = vunpack.c.l.b16 %v1348
        %v1388 = vunpack.c.l.b16 %v1349
        %v1389 = vunpack.c.l.b16 %v1350
        %v1390 = vunpack.c.l.b16 %v1351
        %v1391 = vunpack.c.l.b16 %v1352
        %v1392 = vunpack.c.l.b16 %v1353
        %v1393 = vunpack.c.l.b16 %v1354
        %v1394 = vunpack.c.l.b16 %v1355
        %v1395 = vunpack.c.l.b16 %v1356
        %v1396 = vunpack.c.l.b16 %v1357
        %v1397 = vpack.c.b16 %v1382, %v1381
        %v1398 = vpack.c.b16 %v1384, %v1383
        %v1399 = vpack.c.b16 %v1386, %v1385
        %v1400 = vpack.c.b16 %v1388, %v1387
        %v1401 = vpack.c.b16 %v1390, %v1389
        %v1402 = vpack.c.b16 %v1392, %v1391
        %v1403 = vpack.c.b16 %v1394, %v1393
        %v1404 = vpack.c.b16 %v1396, %v1395
        %1413 = vmatprep.subr.bf16.mxu0 0
        %1414 = vmatpush1.bf16.msra.mxu0 %v1397
        %1415 = vmatprep.subr.bf16.mxu0 0
        %1416 = vmatpush1.bf16.msra.mxu0 %v1398
        %1417 = vmatprep.subr.bf16.mxu0 0
        %1418 = vmatpush1.bf16.msra.mxu0 %v1399
        %1419 = vmatprep.subr.bf16.mxu0 0
        %1420 = vmatpush1.bf16.msra.mxu0 %v1400
        %1421 = vmatprep.subr.bf16.mxu0 0
        %1422 = vmatpush1.bf16.msra.mxu0 %v1401
        %1423 = vmatprep.subr.bf16.mxu0 0
        %1424 = vmatpush1.bf16.msra.mxu0 %v1402
        %1425 = vmatprep.subr.bf16.mxu0 0
        %1426 = vmatpush1.bf16.msra.mxu0 %v1403
        %1427 = vmatprep.subr.bf16.mxu0 0
        %1428 = vmatpush1.bf16.msra.mxu0 %v1404
        %1429 = vmatprep.subr.bf16.mxu0 0
        %1430 = vmatpush1.bf16.msra.mxu0 0
        %1431 = vmatprep.subr.bf16.mxu0 0
        %1432 = vmatpush1.bf16.msra.mxu0 0
        %1433 = vmatprep.subr.bf16.mxu0 0
        %1434 = vmatpush1.bf16.msra.mxu0 0
        %1435 = vmatprep.subr.bf16.mxu0 0
        %1436 = vmatpush1.bf16.msra.mxu0 0
        %1437 = vmatprep.subr.bf16.mxu0 0
        %1438 = vmatpush1.bf16.msra.mxu0 0
        %1439 = vmatprep.subr.bf16.mxu0 0
        %1440 = vmatpush1.bf16.msra.mxu0 0
        %1441 = vmatprep.subr.bf16.mxu0 0
        %1442 = vmatpush1.bf16.msra.mxu0 0
        %1443 = vmatprep.subr.bf16.mxu0 0
        %1444 = vmatpush1.bf16.msra.mxu0 0
        %1445 = vmatprep.mubr.bf16.mxu0 0
        %1446 = vmatmul.mubr.bf16.gmra.mrb[0].mxu0 %v1341
        %v1447 = vpop.f32.mrb[0].mxu0
        %v1448 = vadd.f32 %v1363, %v1447
        %v1449 = vpop.f32.mrb[0].mxu0
        %v1450 = vpop.f32.mrb[0].mxu0
        %v1451 = vpop.f32.mrb[0].mxu0
        %1452 = vdwg.mxu0
        %v1453 = vadd.f32 %v1193, %v1448
        %v1455 = vrot.slane %v1453, 1
        %1456 = vrot.lane.b32.xlu0 %v1455, 32
        %v1457 = vpop.permute.xlu0 %1456
        %v1459 = vrot.slane %v1453, 2
        %1460 = vrot.lane.b32.xlu0 %v1459, 64
        %v1461 = vpop.permute.xlu0 %1460
        %v1463 = vrot.slane %v1453, 3
        %1464 = vrot.lane.b32.xlu0 %v1463, 96
        %v1465 = vpop.permute.xlu0 %1464
        %v1467 = vsel %vm452, %v1453, %v1457
        %vm1468 = vcmask 523264
        %v1469 = vsel %vm1468, %v1467, %v1461
        %vm1470 = vcmask 785408
        %v1471 = vsel %vm1470, %v1469, %v1465
        %v1473 = vrot.slane %v1471, 3
        %v1475 = vsel %vm437, %v1471, %v1473
        %1476 = vst [vmem:[%s404] sm:$0x3] %v1475
        %s1477 = sand.u32 %s291, 1
        %s1478 = scalar_lea.sflag [#allocation3], %s1477
        %s1479 = sand.u32 %s291, 1
        %s1480 = smul.addr %s1479, 2
        %s1481 = scalar_lea.vmem [#allocation2], %s1480
        // Predicated region
        $region69: #{tpu_custom_call.1} parent=67 // pred_check
          %p1482 = pneg %p301
        $region70: #{tpu_custom_call.1} parent=67 // pred_check_branch
          %1484 = sbr.rel (%p1482) target = $region72
        $region71: #{tpu_custom_call.1} parent=67 // pred_region
          %s1486 = ssub.s32 32, 32
          %1487 = vsyncadd %s1478, %s1486
          %s1488 = smul.addr %s26, 32
          %s1489 = scalar_lea.hbm %s12, %s1488
          %s1491 = sshll.u32 %s1481, 4
          %s1492 = int_to_ptr.vmem [resolvable:$true] %s1491
          %1494 = dma.vmem_to_hbm [thread:$0]  %s1492, 32, %s1489, %s1478
        $region72: #{tpu_custom_call.1} parent=67 // pred_fallthru
          _
      $region68: #{tpu_custom_call.1} parent=5 // pred_fallthru
        _
      %p1495 = scmp.le.s32.totalorder 2, %s21
      // Predicated region
      $region73: #{tpu_custom_call.1} parent=5 // pred_check
        %p1496 = pneg %p1495
      $region74: #{tpu_custom_call.1} parent=5 // pred_check_branch
        %1498 = sbr.rel (%p1496) target = $region76
      $region75: #{tpu_custom_call.1} parent=5 // pred_region
        %s1499 = ssub.s32 %s21, 2
        // Predicated region
        $region77: #{tpu_custom_call.1} parent=75 // pred_check
          %p1500 = pneg %p307
        $region78: #{tpu_custom_call.1} parent=75 // pred_check_branch
          %1502 = sbr.rel (%p1500) target = $region80
        $region79: #{tpu_custom_call.1} parent=75 // pred_region
          %s1503 = sand.u32 %s292, 1
          %s1504 = scalar_lea.sflag [#allocation3], %s1503
          %s1505 = sand.u32 %s292, 1
          %s1506 = smul.addr %s1505, 2
          %s1507 = scalar_lea.vmem [#allocation2], %s1506
          %1508 = dma.done %s1504, 32
        $region80: #{tpu_custom_call.1} parent=75 // pred_fallthru
          _
      $region76: #{tpu_custom_call.1} parent=5 // pred_fallthru
        _
    $region6: #{tpu_custom_call.1} parent=1 // loop_footer
      %s25 = sadd.s32 1, %s21
    $region7: #{tpu_custom_call.1} parent=1 // loop_footer_branch
      %20 = sbr.rel target = $region3
    $region8: #{tpu_custom_call.1} parent=1 // loop_exit
      _
    %1509 = vsyncpa [#allocation3], 1
    %s1510 = scalar_lea.sflag [#allocation3], 1
    %1511 = vsyncpa %s1510, 1

</llo_original>
